<compile_context>
chip_gen: v6e
topology: v6e:2x2x1
jax: 0.10.0
libtpu: 0.0.40
codegen_flags: <defaults>
</compile_context>

<pallas_src>
import numpy as np
import jax
import jax.numpy as jnp
from jax.experimental import pallas as pl

# ------------------------- model hyper-parameters (scaled down) ----------------
BATCH   = 2
IN_CH   = 3
IMG     = 32          # image side (real model: 384)
PATCH   = 16          # patch side (same as real model)
EMBED   = 32          # hidden dim (real model: 768)
HEADS   = 2           # attn heads (real model: 12)
DEPTH   = 2           # blocks     (real model: 12)
MLP_DIM = 4 * EMBED   # MLP hidden (ratio 4, same as real model)
NUM_CLS = 2           # replaced head: nn.Linear(n_features, 2)
LN_EPS  = 1e-6

_GRID  = IMG // PATCH
NPATCH = _GRID * _GRID
SEQ    = NPATCH + 1              # +1 cls token
HEAD_D = EMBED // HEADS
BN     = BATCH * SEQ             # total token rows
CPP    = IN_CH * PATCH * PATCH   # flattened patch size

# padded output tile so the final store is a full, unmasked (8, 128) vreg
OUT_ROWS = ((BATCH + 7) // 8) * 8
OUT_COLS = 128
assert NUM_CLS <= OUT_COLS


# ------------------------------ shared math helpers -----------------------------
def _gelu_tanh(y):
    # TODO(synk): timm uses exact erf-GELU; tanh approximation used for Mosaic-safe
    # lowering (max abs deviation ~1e-3).
    c = 0.7978845608028654  # sqrt(2/pi)
    return 0.5 * y * (1.0 + jnp.tanh(c * (y + 0.044715 * y * y * y)))


def _layernorm(x, g, b):
    mean = jnp.mean(x, axis=-1, keepdims=True)
    xc = x - mean
    var = jnp.mean(xc * xc, axis=-1, keepdims=True)
    return xc * jax.lax.rsqrt(var + LN_EPS) * g + b


# ------------------------------- the fused kernel --------------------------------
def _vit_kernel(patches_ref, pe_w_ref, tok_add_ref,
                attn_bias_ref, head_mask_ref, cls_sel_ref,
                ln1_g_ref, ln1_b_ref,
                wq_ref, bq_ref, wk_ref, bk_ref, wv_ref, bv_ref,
                proj_w_ref, proj_b_ref,
                ln2_g_ref, ln2_b_ref,
                fc1_w_ref, fc1_b_ref, fc2_w_ref, fc2_b_ref,
                norm_g_ref, norm_b_ref, head_w_ref, head_b_ref,
                o_ref):
    f32 = jnp.float32

    # ---- patch embedding + (cls + pos + conv-bias) fused additive init ---------
    # patches_ref already has an all-zero row at every cls position, so the single
    # precomputed tok_add operand supplies cls+pos on those rows and bias+pos on
    # the patch rows — one MXU matmul + one VPU add, no in-kernel masks.
    x = (jnp.dot(patches_ref[...], pe_w_ref[...], preferred_element_type=f32)
         + tok_add_ref[...])

    scale = HEAD_D ** -0.5
    attn_bias = attn_bias_ref[...]            # (BN, BN): 0 in-batch, -1e30 cross

    # ---- transformer blocks (statically unrolled; x never leaves VMEM) ----------
    for d in range(DEPTH):
        # --- attention branch ---
        h1 = _layernorm(x, ln1_g_ref[d], ln1_b_ref[d])
        q = jnp.dot(h1, wq_ref[d], preferred_element_type=f32) + bq_ref[d]
        k = jnp.dot(h1, wk_ref[d], preferred_element_type=f32) + bk_ref[d]
        v = jnp.dot(h1, wv_ref[d], preferred_element_type=f32) + bv_ref[d]

        attn = jnp.zeros((BN, EMBED), f32)
        for h in range(HEADS):
            hm = head_mask_ref[h]             # (1, EMBED) 0/1 lane mask for head h
            # scores for this head: contract over this head's lanes only (q masked),
            # all batches at once; cross-batch pairs killed by additive bias.
            s = jax.lax.dot_general(q * hm, k, (((1,), (1,)), ((), ())),
                                    preferred_element_type=f32) * scale + attn_bias
            s = s - jnp.max(s, axis=-1, keepdims=True)
            p = jnp.exp(s)
            p = p * pl.reciprocal(jnp.sum(p, axis=-1, keepdims=True), approx=True)
            # masked V puts the result in this head's lanes; summing over heads
            # reassembles (BN, EMBED) with no transpose / concat / scatter.
            attn = attn + jnp.dot(p, v * hm, preferred_element_type=f32)

        x = x + jnp.dot(attn, proj_w_ref[d], preferred_element_type=f32) + proj_b_ref[d]

        # --- MLP branch ---
        h2 = _layernorm(x, ln2_g_ref[d], ln2_b_ref[d])
        m = _gelu_tanh(jnp.dot(h2, fc1_w_ref[d], preferred_element_type=f32)
                       + fc1_b_ref[d])
        x = x + jnp.dot(m, fc2_w_ref[d], preferred_element_type=f32) + fc2_b_ref[d]

    # ---- final norm + classification head on the cls tokens ---------------------
    xn = _layernorm(x, norm_g_ref[...], norm_b_ref[...])
    # cls_sel picks rows 0, SEQ, 2*SEQ, ... into the first BATCH output rows;
    # extra rows / lanes are padding and sliced away outside the kernel.
    cls_tok = jnp.dot(cls_sel_ref[...], xn, preferred_element_type=f32)  # (OUT_ROWS, D)
    logits = (jnp.dot(cls_tok, head_w_ref[...], preferred_element_type=f32)
              + head_b_ref[...])                                         # (OUT_ROWS, 128)
    o_ref[...] = logits.astype(o_ref.dtype)                              # full-tile store


# ------------------------------ parameter setup ---------------------------------
def init_params(key):
    """All layout transforms (conv->matmul transpose, qkv split, per-block stacking)
    AND all constant mask/selector tensors are built here, once — not per call."""
    def nrm(k, shape, std=0.02):
        return (std * jax.random.normal(k, shape)).astype(jnp.float32)

    keys = iter(jax.random.split(key, 8 + DEPTH * 8))

    # conv weight initialized in PyTorch layout (out, in, kh, kw), transposed once.
    patch_w = nrm(next(keys), (EMBED, IN_CH, PATCH, PATCH))
    params = {
        "pe_w":   patch_w.reshape(EMBED, CPP).T,                  # (CPP, EMBED)
        "pe_b":   nrm(next(keys), (EMBED,)).reshape(1, EMBED),
        "cls":    nrm(next(keys), (EMBED,)).reshape(1, EMBED),
        "pos":    nrm(next(keys), (SEQ, EMBED)),
        "norm_g": jnp.ones((1, EMBED), jnp.float32),
        "norm_b": jnp.zeros((1, EMBED), jnp.float32),
        "head_w": nrm(next(keys), (EMBED, NUM_CLS)),
        "head_b": jnp.zeros((1, NUM_CLS), jnp.float32),
    }

    names = ("ln1_g", "ln1_b", "wq", "bq", "wk", "bk", "wv", "bv",
             "proj_w", "proj_b", "ln2_g", "ln2_b",
             "fc1_w", "fc1_b", "fc2_w", "fc2_b")
    blocks = {n: [] for n in names}
    for _ in range(DEPTH):
        qkv_w = nrm(next(keys), (EMBED, 3 * EMBED))               # fused qkv, split once
        blocks["ln1_g"].append(jnp.ones((1, EMBED), jnp.float32))
        blocks["ln1_b"].append(jnp.zeros((1, EMBED), jnp.float32))
        blocks["wq"].append(qkv_w[:, 0:EMBED])
        blocks["wk"].append(qkv_w[:, EMBED:2 * EMBED])
        blocks["wv"].append(qkv_w[:, 2 * EMBED:3 * EMBED])
        blocks["bq"].append(jnp.zeros((1, EMBED), jnp.float32))
        blocks["bk"].append(jnp.zeros((1, EMBED), jnp.float32))
        blocks["bv"].append(jnp.zeros((1, EMBED), jnp.float32))
        blocks["proj_w"].append(nrm(next(keys), (EMBED, EMBED)))
        blocks["proj_b"].append(jnp.zeros((1, EMBED), jnp.float32))
        blocks["ln2_g"].append(jnp.ones((1, EMBED), jnp.float32))
        blocks["ln2_b"].append(jnp.zeros((1, EMBED), jnp.float32))
        blocks["fc1_w"].append(nrm(next(keys), (EMBED, MLP_DIM)))
        blocks["fc1_b"].append(jnp.zeros((1, MLP_DIM), jnp.float32))
        blocks["fc2_w"].append(nrm(next(keys), (MLP_DIM, EMBED)))
        blocks["fc2_b"].append(jnp.zeros((1, EMBED), jnp.float32))
    for n in names:
        params[n] = jnp.stack(blocks[n], axis=0)                  # (DEPTH, ...)

    # ---- precomputed constants consumed by the kernel --------------------------
    # fused additive token init: cls+pos[0] at cls rows, conv-bias+pos[1:] elsewhere
    per_batch = jnp.concatenate(
        [params["cls"] + params["pos"][0:1],
         params["pe_b"] + params["pos"][1:]], axis=0)             # (SEQ, EMBED)
    params["tok_add"] = jnp.tile(per_batch, (BATCH, 1))           # (BN, EMBED)

    # additive same-batch attention bias (0 in-batch, -1e30 cross-batch)
    ab = np.full((BN, BN), -1e30, np.float32)
    for b in range(BATCH):
        ab[b * SEQ:(b + 1) * SEQ, b * SEQ:(b + 1) * SEQ] = 0.0
    params["attn_bias"] = jnp.asarray(ab)

    # per-head lane masks (heads stay folded in the lane dimension)
    hm = np.zeros((HEADS, 1, EMBED), np.float32)
    for h in range(HEADS):
        hm[h, 0, h * HEAD_D:(h + 1) * HEAD_D] = 1.0
    params["head_mask"] = jnp.asarray(hm)

    # cls-row selector, padded to OUT_ROWS so the output is a full (8, 128) tile
    cs = np.zeros((OUT_ROWS, BN), np.float32)
    for b in range(BATCH):
        cs[b, b * SEQ] = 1.0
    params["cls_sel"] = jnp.asarray(cs)

    # lane-padded head weights / bias (extra lanes are zero, sliced away outside)
    params["head_w_pad"] = jnp.zeros((EMBED, OUT_COLS), jnp.float32).at[:, :NUM_CLS].set(params["head_w"])
    params["head_b_pad"] = jnp.zeros((1, OUT_COLS), jnp.float32).at[:, :NUM_CLS].set(params["head_b"])
    return params


# --------------------------------- forward pass ---------------------------------
def vit_forward(params, x):
    """x: (B, C, H, W) float32 NCHW -> logits (B, NUM_CLS)."""
    B, C, H, W = x.shape
    gh, gw = H // PATCH, W // PATCH

    # Conv2d(k=16, s=16) == patch extraction (cheap XLA-side layout plumbing)
    # feeding the in-kernel patch-embedding matmul.
    patches = x.reshape(B, C, gh, PATCH, gw, PATCH).transpose(0, 2, 4, 1, 3, 5)
    patches = patches.reshape(B, gh * gw, C * PATCH * PATCH)
    # prepend an all-zero row per batch at the cls position so the kernel's token
    # matrix is already (B*SEQ, C*P*P) and no in-kernel row scatter is needed.
    patches_ext = jnp.concatenate(
        [jnp.zeros((B, 1, C * PATCH * PATCH), x.dtype), patches], axis=1
    ).reshape(B * SEQ, C * PATCH * PATCH)

    # Single fused pallas_call: no grid, every operand is a full-array VMEM block
    # (total working set << 1 MiB); the output is one dense (8, 128) tile.
    out = pl.pallas_call(
        _vit_kernel,
        out_shape=jax.ShapeDtypeStruct((OUT_ROWS, OUT_COLS), jnp.float32),
    )(
        patches_ext, params["pe_w"], params["tok_add"],
        params["attn_bias"], params["head_mask"], params["cls_sel"],
        params["ln1_g"], params["ln1_b"],
        params["wq"], params["bq"], params["wk"], params["bk"],
        params["wv"], params["bv"],
        params["proj_w"], params["proj_b"],
        params["ln2_g"], params["ln2_b"],
        params["fc1_w"], params["fc1_b"], params["fc2_w"], params["fc2_b"],
        params["norm_g"], params["norm_b"],
        params["head_w_pad"], params["head_b_pad"],
    )
    return out[:B, :NUM_CLS]


# --------------------------- pure-JAX reference (check) --------------------------
def vit_reference(params, x):
    B, C, H, W = x.shape
    gh, gw = H // PATCH, W // PATCH
    patches = x.reshape(B, C, gh, PATCH, gw, PATCH).transpose(0, 2, 4, 1, 3, 5)
    patches = patches.reshape(B, gh * gw, C * PATCH * PATCH)
    tok = patches @ params["pe_w"] + params["pe_b"]
    cls = jnp.broadcast_to(params["cls"][None], (B, 1, EMBED))
    xs = jnp.concatenate([cls, tok], axis=1) + params["pos"][None]
    scale = HEAD_D ** -0.5
    for d in range(DEPTH):
        h = _layernorm(xs, params["ln1_g"][d], params["ln1_b"][d])
        q = (h @ params["wq"][d] + params["bq"][d]).reshape(B, SEQ, HEADS, HEAD_D)
        k = (h @ params["wk"][d] + params["bk"][d]).reshape(B, SEQ, HEADS, HEAD_D)
        v = (h @ params["wv"][d] + params["bv"][d]).reshape(B, SEQ, HEADS, HEAD_D)
        q, k, v = (t.transpose(0, 2, 1, 3) for t in (q, k, v))
        s = jnp.einsum("bhqd,bhkd->bhqk", q, k) * scale
        p = jax.nn.softmax(s, axis=-1)
        o = jnp.einsum("bhqk,bhkd->bhqd", p, v).transpose(0, 2, 1, 3)
        o = o.reshape(B, SEQ, EMBED)
        xs = xs + o @ params["proj_w"][d] + params["proj_b"][d]
        h = _layernorm(xs, params["ln2_g"][d], params["ln2_b"][d])
        xs = xs + _gelu_tanh(h @ params["fc1_w"][d] + params["fc1_b"][d]) \
                  @ params["fc2_w"][d] + params["fc2_b"][d]
    xn = _layernorm(xs, params["norm_g"], params["norm_b"])
    return xn[:, 0] @ params["head_w"] + params["head_b"]


# ------------------------------------- main --------------------------------------
if __name__ == "__main__":
    key = jax.random.PRNGKey(0)
    k_param, k_input = jax.random.split(key)
    params = init_params(k_param)
    x = jax.random.normal(k_input, (BATCH, IN_CH, IMG, IMG), dtype=jnp.float32)

    logits = jax.block_until_ready(jax.jit(vit_forward)(params, x))
    assert logits.shape == (BATCH, NUM_CLS)

    ref = jax.block_until_ready(jax.jit(vit_reference)(params, x))
    np.testing.assert_allclose(np.asarray(logits), np.asarray(ref),
                               rtol=2e-2, atol=2e-3)
    print("KERNEL_OK")
</pallas_src>

<mosaic_0001>
module attributes {stable_mosaic.version = 11 : i64} {
  func.func @_vit_kernel(%arg0: memref<10x768xf32, #tpu.memory_space<vmem>>, %arg1: memref<768x32xf32, #tpu.memory_space<vmem>>, %arg2: memref<10x32xf32, #tpu.memory_space<vmem>>, %arg3: memref<10x10xf32, #tpu.memory_space<vmem>>, %arg4: memref<2x1x32xf32, #tpu.memory_space<vmem>>, %arg5: memref<8x10xf32, #tpu.memory_space<vmem>>, %arg6: memref<2x1x32xf32, #tpu.memory_space<vmem>>, %arg7: memref<2x1x32xf32, #tpu.memory_space<vmem>>, %arg8: memref<2x32x32xf32, #tpu.memory_space<vmem>>, %arg9: memref<2x1x32xf32, #tpu.memory_space<vmem>>, %arg10: memref<2x32x32xf32, #tpu.memory_space<vmem>>, %arg11: memref<2x1x32xf32, #tpu.memory_space<vmem>>, %arg12: memref<2x32x32xf32, #tpu.memory_space<vmem>>, %arg13: memref<2x1x32xf32, #tpu.memory_space<vmem>>, %arg14: memref<2x32x32xf32, #tpu.memory_space<vmem>>, %arg15: memref<2x1x32xf32, #tpu.memory_space<vmem>>, %arg16: memref<2x1x32xf32, #tpu.memory_space<vmem>>, %arg17: memref<2x1x32xf32, #tpu.memory_space<vmem>>, %arg18: memref<2x32x128xf32, #tpu.memory_space<vmem>>, %arg19: memref<2x1x128xf32, #tpu.memory_space<vmem>>, %arg20: memref<2x128x32xf32, #tpu.memory_space<vmem>>, %arg21: memref<2x1x32xf32, #tpu.memory_space<vmem>>, %arg22: memref<1x32xf32, #tpu.memory_space<vmem>>, %arg23: memref<1x32xf32, #tpu.memory_space<vmem>>, %arg24: memref<32x128xf32, #tpu.memory_space<vmem>>, %arg25: memref<1x128xf32, #tpu.memory_space<vmem>>, %arg26: memref<8x128xf32, #tpu.memory_space<vmem>>) attributes {dimension_semantics = [], scalar_prefetch = 0 : i64, scratch_operands = 0 : i64, tpu.core_type = #tpu.core_type<tc>} {
    %c0 = arith.constant 0 : index
    %c0_0 = arith.constant 0 : index
    %0 = vector.load %arg0[%c0, %c0_0] : memref<10x768xf32, #tpu.memory_space<vmem>>, vector<10x768xf32>
    %c0_1 = arith.constant 0 : index
    %c0_2 = arith.constant 0 : index
    %1 = vector.load %arg1[%c0_1, %c0_2] : memref<768x32xf32, #tpu.memory_space<vmem>>, vector<768x32xf32>
    %cst = arith.constant dense<0.000000e+00> : vector<10x32xf32>
    %2 = tpu.matmul %0, %1, %cst {dimension_numbers = #tpu.dot_dimension_numbers<[1], [0], [0], [1], [0, 0, 1, 1], [], []>} : vector<10x768xf32>, vector<768x32xf32>, vector<10x32xf32> -> vector<10x32xf32>
    %c0_3 = arith.constant 0 : index
    %c0_4 = arith.constant 0 : index
    %3 = vector.load %arg2[%c0_3, %c0_4] : memref<10x32xf32, #tpu.memory_space<vmem>>, vector<10x32xf32>
    %4 = arith.addf %2, %3 : vector<10x32xf32>
    %c0_5 = arith.constant 0 : index
    %c0_6 = arith.constant 0 : index
    %5 = vector.load %arg3[%c0_5, %c0_6] : memref<10x10xf32, #tpu.memory_space<vmem>>, vector<10x10xf32>
    %c0_7 = arith.constant 0 : index
    %c0_8 = arith.constant 0 : index
    %c0_9 = arith.constant 0 : index
    %6 = vector.load %arg6[%c0_7, %c0_8, %c0_9] : memref<2x1x32xf32, #tpu.memory_space<vmem>>, vector<1x1x32xf32>
    %7 = vector.shape_cast %6 : vector<1x1x32xf32> to vector<1x32xf32>
    %c0_10 = arith.constant 0 : index
    %c0_11 = arith.constant 0 : index
    %c0_12 = arith.constant 0 : index
    %8 = vector.load %arg7[%c0_10, %c0_11, %c0_12] : memref<2x1x32xf32, #tpu.memory_space<vmem>>, vector<1x1x32xf32>
    %9 = vector.shape_cast %8 : vector<1x1x32xf32> to vector<1x32xf32>
    %cst_13 = arith.constant dense<0.000000e+00> : vector<10xf32>
    %10 = vector.multi_reduction <add>, %4, %cst_13 [1] : vector<10x32xf32> to vector<10xf32>
    %11 = vector.shape_cast %10 : vector<10xf32> to vector<10x1xf32>
    %cst_14 = arith.constant 3.200000e+01 : f32
    %12 = vector.broadcast %cst_14 : f32 to vector<10x1xf32>
    %13 = arith.divf %11, %12 : vector<10x1xf32>
    %14 = vector.broadcast %13 : vector<10x1xf32> to vector<10x32xf32>
    %15 = arith.subf %4, %14 : vector<10x32xf32>
    %16 = arith.mulf %15, %15 : vector<10x32xf32>
    %cst_15 = arith.constant dense<0.000000e+00> : vector<10xf32>
    %17 = vector.multi_reduction <add>, %16, %cst_15 [1] : vector<10x32xf32> to vector<10xf32>
    %18 = vector.shape_cast %17 : vector<10xf32> to vector<10x1xf32>
    %cst_16 = arith.constant 3.200000e+01 : f32
    %19 = vector.broadcast %cst_16 : f32 to vector<10x1xf32>
    %20 = arith.divf %18, %19 : vector<10x1xf32>
    %cst_17 = arith.constant 9.99999997E-7 : f32
    %21 = vector.broadcast %cst_17 : f32 to vector<10x1xf32>
    %22 = arith.addf %20, %21 : vector<10x1xf32>
    %23 = math.rsqrt %22 : vector<10x1xf32>
    %24 = vector.broadcast %23 : vector<10x1xf32> to vector<10x32xf32>
    %25 = arith.mulf %15, %24 : vector<10x32xf32>
    %26 = vector.broadcast %7 : vector<1x32xf32> to vector<10x32xf32>
    %27 = arith.mulf %25, %26 : vector<10x32xf32>
    %28 = vector.broadcast %9 : vector<1x32xf32> to vector<10x32xf32>
    %29 = arith.addf %27, %28 : vector<10x32xf32>
    %c0_18 = arith.constant 0 : index
    %c0_19 = arith.constant 0 : index
    %c0_20 = arith.constant 0 : index
    %30 = vector.load %arg8[%c0_18, %c0_19, %c0_20] : memref<2x32x32xf32, #tpu.memory_space<vmem>>, vector<1x32x32xf32>
    %31 = vector.shape_cast %30 : vector<1x32x32xf32> to vector<32x32xf32>
    %cst_21 = arith.constant dense<0.000000e+00> : vector<10x32xf32>
    %32 = tpu.matmul %29, %31, %cst_21 {dimension_numbers = #tpu.dot_dimension_numbers<[1], [0], [0], [1], [0, 0, 1, 1], [], []>} : vector<10x32xf32>, vector<32x32xf32>, vector<10x32xf32> -> vector<10x32xf32>
    %c0_22 = arith.constant 0 : index
    %c0_23 = arith.constant 0 : index
    %c0_24 = arith.constant 0 : index
    %33 = vector.load %arg9[%c0_22, %c0_23, %c0_24] : memref<2x1x32xf32, #tpu.memory_space<vmem>>, vector<1x1x32xf32>
    %34 = vector.shape_cast %33 : vector<1x1x32xf32> to vector<1x32xf32>
    %35 = vector.broadcast %34 : vector<1x32xf32> to vector<10x32xf32>
    %36 = arith.addf %32, %35 : vector<10x32xf32>
    %c0_25 = arith.constant 0 : index
    %c0_26 = arith.constant 0 : index
    %c0_27 = arith.constant 0 : index
    %37 = vector.load %arg10[%c0_25, %c0_26, %c0_27] : memref<2x32x32xf32, #tpu.memory_space<vmem>>, vector<1x32x32xf32>
    %38 = vector.shape_cast %37 : vector<1x32x32xf32> to vector<32x32xf32>
    %cst_28 = arith.constant dense<0.000000e+00> : vector<10x32xf32>
    %39 = tpu.matmul %29, %38, %cst_28 {dimension_numbers = #tpu.dot_dimension_numbers<[1], [0], [0], [1], [0, 0, 1, 1], [], []>} : vector<10x32xf32>, vector<32x32xf32>, vector<10x32xf32> -> vector<10x32xf32>
    %c0_29 = arith.constant 0 : index
    %c0_30 = arith.constant 0 : index
    %c0_31 = arith.constant 0 : index
    %40 = vector.load %arg11[%c0_29, %c0_30, %c0_31] : memref<2x1x32xf32, #tpu.memory_space<vmem>>, vector<1x1x32xf32>
    %41 = vector.shape_cast %40 : vector<1x1x32xf32> to vector<1x32xf32>
    %42 = vector.broadcast %41 : vector<1x32xf32> to vector<10x32xf32>
    %43 = arith.addf %39, %42 : vector<10x32xf32>
    %c0_32 = arith.constant 0 : index
    %c0_33 = arith.constant 0 : index
    %c0_34 = arith.constant 0 : index
    %44 = vector.load %arg12[%c0_32, %c0_33, %c0_34] : memref<2x32x32xf32, #tpu.memory_space<vmem>>, vector<1x32x32xf32>
    %45 = vector.shape_cast %44 : vector<1x32x32xf32> to vector<32x32xf32>
    %cst_35 = arith.constant dense<0.000000e+00> : vector<10x32xf32>
    %46 = tpu.matmul %29, %45, %cst_35 {dimension_numbers = #tpu.dot_dimension_numbers<[1], [0], [0], [1], [0, 0, 1, 1], [], []>} : vector<10x32xf32>, vector<32x32xf32>, vector<10x32xf32> -> vector<10x32xf32>
    %c0_36 = arith.constant 0 : index
    %c0_37 = arith.constant 0 : index
    %c0_38 = arith.constant 0 : index
    %47 = vector.load %arg13[%c0_36, %c0_37, %c0_38] : memref<2x1x32xf32, #tpu.memory_space<vmem>>, vector<1x1x32xf32>
    %48 = vector.shape_cast %47 : vector<1x1x32xf32> to vector<1x32xf32>
    %49 = vector.broadcast %48 : vector<1x32xf32> to vector<10x32xf32>
    %50 = arith.addf %46, %49 : vector<10x32xf32>
    %cst_39 = arith.constant 0.000000e+00 : f32
    %51 = vector.broadcast %cst_39 : f32 to vector<10x32xf32>
    %c0_40 = arith.constant 0 : index
    %c0_41 = arith.constant 0 : index
    %c0_42 = arith.constant 0 : index
    %52 = vector.load %arg4[%c0_40, %c0_41, %c0_42] : memref<2x1x32xf32, #tpu.memory_space<vmem>>, vector<1x1x32xf32>
    %53 = vector.shape_cast %52 : vector<1x1x32xf32> to vector<1x32xf32>
    %54 = vector.broadcast %53 : vector<1x32xf32> to vector<10x32xf32>
    %55 = arith.mulf %36, %54 : vector<10x32xf32>
    %cst_43 = arith.constant dense<0.000000e+00> : vector<10x10xf32>
    %56 = tpu.matmul %55, %43, %cst_43 {dimension_numbers = #tpu.dot_dimension_numbers<[1], [1], [0], [0], [0, 0, 1, 0], [], []>} : vector<10x32xf32>, vector<10x32xf32>, vector<10x10xf32> -> vector<10x10xf32>
    %cst_44 = arith.constant 2.500000e-01 : f32
    %57 = vector.broadcast %cst_44 : f32 to vector<10x10xf32>
    %58 = arith.mulf %56, %57 : vector<10x10xf32>
    %59 = arith.addf %58, %5 : vector<10x10xf32>
    %cst_45 = arith.constant dense<0xFF800000> : vector<10xf32>
    %60 = vector.multi_reduction <maximumf>, %59, %cst_45 [1] : vector<10x10xf32> to vector<10xf32>
    %61 = vector.shape_cast %60 : vector<10xf32> to vector<10x1xf32>
    %62 = vector.broadcast %61 : vector<10x1xf32> to vector<10x10xf32>
    %63 = arith.subf %59, %62 : vector<10x10xf32>
    %64 = math.exp %63 : vector<10x10xf32>
    %cst_46 = arith.constant dense<0.000000e+00> : vector<10xf32>
    %65 = vector.multi_reduction <add>, %64, %cst_46 [1] : vector<10x10xf32> to vector<10xf32>
    %66 = vector.shape_cast %65 : vector<10xf32> to vector<10x1xf32>
    %67 = tpu.reciprocal %66 {approx = true} : vector<10x1xf32> -> vector<10x1xf32>
    %68 = vector.broadcast %67 : vector<10x1xf32> to vector<10x10xf32>
    %69 = arith.mulf %64, %68 : vector<10x10xf32>
    %70 = vector.broadcast %53 : vector<1x32xf32> to vector<10x32xf32>
    %71 = arith.mulf %50, %70 : vector<10x32xf32>
    %cst_47 = arith.constant dense<0.000000e+00> : vector<10x32xf32>
    %72 = tpu.matmul %69, %71, %cst_47 {dimension_numbers = #tpu.dot_dimension_numbers<[1], [0], [0], [1], [0, 0, 1, 1], [], []>} : vector<10x10xf32>, vector<10x32xf32>, vector<10x32xf32> -> vector<10x32xf32>
    %73 = arith.addf %51, %72 : vector<10x32xf32>
    %c1 = arith.constant 1 : index
    %c0_48 = arith.constant 0 : index
    %c0_49 = arith.constant 0 : index
    %74 = vector.load %arg4[%c1, %c0_48, %c0_49] : memref<2x1x32xf32, #tpu.memory_space<vmem>>, vector<1x1x32xf32>
    %75 = vector.shape_cast %74 : vector<1x1x32xf32> to vector<1x32xf32>
    %76 = vector.broadcast %75 : vector<1x32xf32> to vector<10x32xf32>
    %77 = arith.mulf %36, %76 : vector<10x32xf32>
    %cst_50 = arith.constant dense<0.000000e+00> : vector<10x10xf32>
    %78 = tpu.matmul %77, %43, %cst_50 {dimension_numbers = #tpu.dot_dimension_numbers<[1], [1], [0], [0], [0, 0, 1, 0], [], []>} : vector<10x32xf32>, vector<10x32xf32>, vector<10x10xf32> -> vector<10x10xf32>
    %cst_51 = arith.constant 2.500000e-01 : f32
    %79 = vector.broadcast %cst_51 : f32 to vector<10x10xf32>
    %80 = arith.mulf %78, %79 : vector<10x10xf32>
    %81 = arith.addf %80, %5 : vector<10x10xf32>
    %cst_52 = arith.constant dense<0xFF800000> : vector<10xf32>
    %82 = vector.multi_reduction <maximumf>, %81, %cst_52 [1] : vector<10x10xf32> to vector<10xf32>
    %83 = vector.shape_cast %82 : vector<10xf32> to vector<10x1xf32>
    %84 = vector.broadcast %83 : vector<10x1xf32> to vector<10x10xf32>
    %85 = arith.subf %81, %84 : vector<10x10xf32>
    %86 = math.exp %85 : vector<10x10xf32>
    %cst_53 = arith.constant dense<0.000000e+00> : vector<10xf32>
    %87 = vector.multi_reduction <add>, %86, %cst_53 [1] : vector<10x10xf32> to vector<10xf32>
    %88 = vector.shape_cast %87 : vector<10xf32> to vector<10x1xf32>
    %89 = tpu.reciprocal %88 {approx = true} : vector<10x1xf32> -> vector<10x1xf32>
    %90 = vector.broadcast %89 : vector<10x1xf32> to vector<10x10xf32>
    %91 = arith.mulf %86, %90 : vector<10x10xf32>
    %92 = vector.broadcast %75 : vector<1x32xf32> to vector<10x32xf32>
    %93 = arith.mulf %50, %92 : vector<10x32xf32>
    %cst_54 = arith.constant dense<0.000000e+00> : vector<10x32xf32>
    %94 = tpu.matmul %91, %93, %cst_54 {dimension_numbers = #tpu.dot_dimension_numbers<[1], [0], [0], [1], [0, 0, 1, 1], [], []>} : vector<10x10xf32>, vector<10x32xf32>, vector<10x32xf32> -> vector<10x32xf32>
    %95 = arith.addf %73, %94 : vector<10x32xf32>
    %c0_55 = arith.constant 0 : index
    %c0_56 = arith.constant 0 : index
    %c0_57 = arith.constant 0 : index
    %96 = vector.load %arg14[%c0_55, %c0_56, %c0_57] : memref<2x32x32xf32, #tpu.memory_space<vmem>>, vector<1x32x32xf32>
    %97 = vector.shape_cast %96 : vector<1x32x32xf32> to vector<32x32xf32>
    %cst_58 = arith.constant dense<0.000000e+00> : vector<10x32xf32>
    %98 = tpu.matmul %95, %97, %cst_58 {dimension_numbers = #tpu.dot_dimension_numbers<[1], [0], [0], [1], [0, 0, 1, 1], [], []>} : vector<10x32xf32>, vector<32x32xf32>, vector<10x32xf32> -> vector<10x32xf32>
    %99 = arith.addf %4, %98 : vector<10x32xf32>
    %c0_59 = arith.constant 0 : index
    %c0_60 = arith.constant 0 : index
    %c0_61 = arith.constant 0 : index
    %100 = vector.load %arg15[%c0_59, %c0_60, %c0_61] : memref<2x1x32xf32, #tpu.memory_space<vmem>>, vector<1x1x32xf32>
    %101 = vector.shape_cast %100 : vector<1x1x32xf32> to vector<1x32xf32>
    %102 = vector.broadcast %101 : vector<1x32xf32> to vector<10x32xf32>
    %103 = arith.addf %99, %102 : vector<10x32xf32>
    %c0_62 = arith.constant 0 : index
    %c0_63 = arith.constant 0 : index
    %c0_64 = arith.constant 0 : index
    %104 = vector.load %arg16[%c0_62, %c0_63, %c0_64] : memref<2x1x32xf32, #tpu.memory_space<vmem>>, vector<1x1x32xf32>
    %105 = vector.shape_cast %104 : vector<1x1x32xf32> to vector<1x32xf32>
    %c0_65 = arith.constant 0 : index
    %c0_66 = arith.constant 0 : index
    %c0_67 = arith.constant 0 : index
    %106 = vector.load %arg17[%c0_65, %c0_66, %c0_67] : memref<2x1x32xf32, #tpu.memory_space<vmem>>, vector<1x1x32xf32>
    %107 = vector.shape_cast %106 : vector<1x1x32xf32> to vector<1x32xf32>
    %cst_68 = arith.constant dense<0.000000e+00> : vector<10xf32>
    %108 = vector.multi_reduction <add>, %103, %cst_68 [1] : vector<10x32xf32> to vector<10xf32>
    %109 = vector.shape_cast %108 : vector<10xf32> to vector<10x1xf32>
    %cst_69 = arith.constant 3.200000e+01 : f32
    %110 = vector.broadcast %cst_69 : f32 to vector<10x1xf32>
    %111 = arith.divf %109, %110 : vector<10x1xf32>
    %112 = vector.broadcast %111 : vector<10x1xf32> to vector<10x32xf32>
    %113 = arith.subf %103, %112 : vector<10x32xf32>
    %114 = arith.mulf %113, %113 : vector<10x32xf32>
    %cst_70 = arith.constant dense<0.000000e+00> : vector<10xf32>
    %115 = vector.multi_reduction <add>, %114, %cst_70 [1] : vector<10x32xf32> to vector<10xf32>
    %116 = vector.shape_cast %115 : vector<10xf32> to vector<10x1xf32>
    %cst_71 = arith.constant 3.200000e+01 : f32
    %117 = vector.broadcast %cst_71 : f32 to vector<10x1xf32>
    %118 = arith.divf %116, %117 : vector<10x1xf32>
    %cst_72 = arith.constant 9.99999997E-7 : f32
    %119 = vector.broadcast %cst_72 : f32 to vector<10x1xf32>
    %120 = arith.addf %118, %119 : vector<10x1xf32>
    %121 = math.rsqrt %120 : vector<10x1xf32>
    %122 = vector.broadcast %121 : vector<10x1xf32> to vector<10x32xf32>
    %123 = arith.mulf %113, %122 : vector<10x32xf32>
    %124 = vector.broadcast %105 : vector<1x32xf32> to vector<10x32xf32>
    %125 = arith.mulf %123, %124 : vector<10x32xf32>
    %126 = vector.broadcast %107 : vector<1x32xf32> to vector<10x32xf32>
    %127 = arith.addf %125, %126 : vector<10x32xf32>
    %c0_73 = arith.constant 0 : index
    %c0_74 = arith.constant 0 : index
    %c0_75 = arith.constant 0 : index
    %128 = vector.load %arg18[%c0_73, %c0_74, %c0_75] : memref<2x32x128xf32, #tpu.memory_space<vmem>>, vector<1x32x128xf32>
    %129 = vector.shape_cast %128 : vector<1x32x128xf32> to vector<32x128xf32>
    %cst_76 = arith.constant dense<0.000000e+00> : vector<10x128xf32>
    %130 = tpu.matmul %127, %129, %cst_76 {dimension_numbers = #tpu.dot_dimension_numbers<[1], [0], [0], [1], [0, 0, 1, 1], [], []>} : vector<10x32xf32>, vector<32x128xf32>, vector<10x128xf32> -> vector<10x128xf32>
    %c0_77 = arith.constant 0 : index
    %c0_78 = arith.constant 0 : index
    %c0_79 = arith.constant 0 : index
    %131 = vector.load %arg19[%c0_77, %c0_78, %c0_79] : memref<2x1x128xf32, #tpu.memory_space<vmem>>, vector<1x1x128xf32>
    %132 = vector.shape_cast %131 : vector<1x1x128xf32> to vector<1x128xf32>
    %133 = vector.broadcast %132 : vector<1x128xf32> to vector<10x128xf32>
    %134 = arith.addf %130, %133 : vector<10x128xf32>
    %cst_80 = arith.constant 5.000000e-01 : f32
    %135 = vector.broadcast %cst_80 : f32 to vector<10x128xf32>
    %136 = arith.mulf %135, %134 : vector<10x128xf32>
    %cst_81 = arith.constant 4.471500e-02 : f32
    %137 = vector.broadcast %cst_81 : f32 to vector<10x128xf32>
    %138 = arith.mulf %137, %134 : vector<10x128xf32>
    %139 = arith.mulf %138, %134 : vector<10x128xf32>
    %140 = arith.mulf %139, %134 : vector<10x128xf32>
    %141 = arith.addf %134, %140 : vector<10x128xf32>
    %cst_82 = arith.constant 0.797884583 : f32
    %142 = vector.broadcast %cst_82 : f32 to vector<10x128xf32>
    %143 = arith.mulf %142, %141 : vector<10x128xf32>
    %144 = math.tanh %143 : vector<10x128xf32>
    %cst_83 = arith.constant 1.000000e+00 : f32
    %145 = vector.broadcast %cst_83 : f32 to vector<10x128xf32>
    %146 = arith.addf %145, %144 : vector<10x128xf32>
    %147 = arith.mulf %136, %146 : vector<10x128xf32>
    %c0_84 = arith.constant 0 : index
    %c0_85 = arith.constant 0 : index
    %c0_86 = arith.constant 0 : index
    %148 = vector.load %arg20[%c0_84, %c0_85, %c0_86] : memref<2x128x32xf32, #tpu.memory_space<vmem>>, vector<1x128x32xf32>
    %149 = vector.shape_cast %148 : vector<1x128x32xf32> to vector<128x32xf32>
    %cst_87 = arith.constant dense<0.000000e+00> : vector<10x32xf32>
    %150 = tpu.matmul %147, %149, %cst_87 {dimension_numbers = #tpu.dot_dimension_numbers<[1], [0], [0], [1], [0, 0, 1, 1], [], []>} : vector<10x128xf32>, vector<128x32xf32>, vector<10x32xf32> -> vector<10x32xf32>
    %151 = arith.addf %103, %150 : vector<10x32xf32>
    %c0_88 = arith.constant 0 : index
    %c0_89 = arith.constant 0 : index
    %c0_90 = arith.constant 0 : index
    %152 = vector.load %arg21[%c0_88, %c0_89, %c0_90] : memref<2x1x32xf32, #tpu.memory_space<vmem>>, vector<1x1x32xf32>
    %153 = vector.shape_cast %152 : vector<1x1x32xf32> to vector<1x32xf32>
    %154 = vector.broadcast %153 : vector<1x32xf32> to vector<10x32xf32>
    %155 = arith.addf %151, %154 : vector<10x32xf32>
    %c1_91 = arith.constant 1 : index
    %c0_92 = arith.constant 0 : index
    %c0_93 = arith.constant 0 : index
    %156 = vector.load %arg6[%c1_91, %c0_92, %c0_93] : memref<2x1x32xf32, #tpu.memory_space<vmem>>, vector<1x1x32xf32>
    %157 = vector.shape_cast %156 : vector<1x1x32xf32> to vector<1x32xf32>
    %c1_94 = arith.constant 1 : index
    %c0_95 = arith.constant 0 : index
    %c0_96 = arith.constant 0 : index
    %158 = vector.load %arg7[%c1_94, %c0_95, %c0_96] : memref<2x1x32xf32, #tpu.memory_space<vmem>>, vector<1x1x32xf32>
    %159 = vector.shape_cast %158 : vector<1x1x32xf32> to vector<1x32xf32>
    %cst_97 = arith.constant dense<0.000000e+00> : vector<10xf32>
    %160 = vector.multi_reduction <add>, %155, %cst_97 [1] : vector<10x32xf32> to vector<10xf32>
    %161 = vector.shape_cast %160 : vector<10xf32> to vector<10x1xf32>
    %cst_98 = arith.constant 3.200000e+01 : f32
    %162 = vector.broadcast %cst_98 : f32 to vector<10x1xf32>
    %163 = arith.divf %161, %162 : vector<10x1xf32>
    %164 = vector.broadcast %163 : vector<10x1xf32> to vector<10x32xf32>
    %165 = arith.subf %155, %164 : vector<10x32xf32>
    %166 = arith.mulf %165, %165 : vector<10x32xf32>
    %cst_99 = arith.constant dense<0.000000e+00> : vector<10xf32>
    %167 = vector.multi_reduction <add>, %166, %cst_99 [1] : vector<10x32xf32> to vector<10xf32>
    %168 = vector.shape_cast %167 : vector<10xf32> to vector<10x1xf32>
    %cst_100 = arith.constant 3.200000e+01 : f32
    %169 = vector.broadcast %cst_100 : f32 to vector<10x1xf32>
    %170 = arith.divf %168, %169 : vector<10x1xf32>
    %cst_101 = arith.constant 9.99999997E-7 : f32
    %171 = vector.broadcast %cst_101 : f32 to vector<10x1xf32>
    %172 = arith.addf %170, %171 : vector<10x1xf32>
    %173 = math.rsqrt %172 : vector<10x1xf32>
    %174 = vector.broadcast %173 : vector<10x1xf32> to vector<10x32xf32>
    %175 = arith.mulf %165, %174 : vector<10x32xf32>
    %176 = vector.broadcast %157 : vector<1x32xf32> to vector<10x32xf32>
    %177 = arith.mulf %175, %176 : vector<10x32xf32>
    %178 = vector.broadcast %159 : vector<1x32xf32> to vector<10x32xf32>
    %179 = arith.addf %177, %178 : vector<10x32xf32>
    %c1_102 = arith.constant 1 : index
    %c0_103 = arith.constant 0 : index
    %c0_104 = arith.constant 0 : index
    %180 = vector.load %arg8[%c1_102, %c0_103, %c0_104] : memref<2x32x32xf32, #tpu.memory_space<vmem>>, vector<1x32x32xf32>
    %181 = vector.shape_cast %180 : vector<1x32x32xf32> to vector<32x32xf32>
    %cst_105 = arith.constant dense<0.000000e+00> : vector<10x32xf32>
    %182 = tpu.matmul %179, %181, %cst_105 {dimension_numbers = #tpu.dot_dimension_numbers<[1], [0], [0], [1], [0, 0, 1, 1], [], []>} : vector<10x32xf32>, vector<32x32xf32>, vector<10x32xf32> -> vector<10x32xf32>
    %c1_106 = arith.constant 1 : index
    %c0_107 = arith.constant 0 : index
    %c0_108 = arith.constant 0 : index
    %183 = vector.load %arg9[%c1_106, %c0_107, %c0_108] : memref<2x1x32xf32, #tpu.memory_space<vmem>>, vector<1x1x32xf32>
    %184 = vector.shape_cast %183 : vector<1x1x32xf32> to vector<1x32xf32>
    %185 = vector.broadcast %184 : vector<1x32xf32> to vector<10x32xf32>
    %186 = arith.addf %182, %185 : vector<10x32xf32>
    %c1_109 = arith.constant 1 : index
    %c0_110 = arith.constant 0 : index
    %c0_111 = arith.constant 0 : index
    %187 = vector.load %arg10[%c1_109, %c0_110, %c0_111] : memref<2x32x32xf32, #tpu.memory_space<vmem>>, vector<1x32x32xf32>
    %188 = vector.shape_cast %187 : vector<1x32x32xf32> to vector<32x32xf32>
    %cst_112 = arith.constant dense<0.000000e+00> : vector<10x32xf32>
    %189 = tpu.matmul %179, %188, %cst_112 {dimension_numbers = #tpu.dot_dimension_numbers<[1], [0], [0], [1], [0, 0, 1, 1], [], []>} : vector<10x32xf32>, vector<32x32xf32>, vector<10x32xf32> -> vector<10x32xf32>
    %c1_113 = arith.constant 1 : index
    %c0_114 = arith.constant 0 : index
    %c0_115 = arith.constant 0 : index
    %190 = vector.load %arg11[%c1_113, %c0_114, %c0_115] : memref<2x1x32xf32, #tpu.memory_space<vmem>>, vector<1x1x32xf32>
    %191 = vector.shape_cast %190 : vector<1x1x32xf32> to vector<1x32xf32>
    %192 = vector.broadcast %191 : vector<1x32xf32> to vector<10x32xf32>
    %193 = arith.addf %189, %192 : vector<10x32xf32>
    %c1_116 = arith.constant 1 : index
    %c0_117 = arith.constant 0 : index
    %c0_118 = arith.constant 0 : index
    %194 = vector.load %arg12[%c1_116, %c0_117, %c0_118] : memref<2x32x32xf32, #tpu.memory_space<vmem>>, vector<1x32x32xf32>
    %195 = vector.shape_cast %194 : vector<1x32x32xf32> to vector<32x32xf32>
    %cst_119 = arith.constant dense<0.000000e+00> : vector<10x32xf32>
    %196 = tpu.matmul %179, %195, %cst_119 {dimension_numbers = #tpu.dot_dimension_numbers<[1], [0], [0], [1], [0, 0, 1, 1], [], []>} : vector<10x32xf32>, vector<32x32xf32>, vector<10x32xf32> -> vector<10x32xf32>
    %c1_120 = arith.constant 1 : index
    %c0_121 = arith.constant 0 : index
    %c0_122 = arith.constant 0 : index
    %197 = vector.load %arg13[%c1_120, %c0_121, %c0_122] : memref<2x1x32xf32, #tpu.memory_space<vmem>>, vector<1x1x32xf32>
    %198 = vector.shape_cast %197 : vector<1x1x32xf32> to vector<1x32xf32>
    %199 = vector.broadcast %198 : vector<1x32xf32> to vector<10x32xf32>
    %200 = arith.addf %196, %199 : vector<10x32xf32>
    %cst_123 = arith.constant 0.000000e+00 : f32
    %201 = vector.broadcast %cst_123 : f32 to vector<10x32xf32>
    %c0_124 = arith.constant 0 : index
    %c0_125 = arith.constant 0 : index
    %c0_126 = arith.constant 0 : index
    %202 = vector.load %arg4[%c0_124, %c0_125, %c0_126] : memref<2x1x32xf32, #tpu.memory_space<vmem>>, vector<1x1x32xf32>
    %203 = vector.shape_cast %202 : vector<1x1x32xf32> to vector<1x32xf32>
    %204 = vector.broadcast %203 : vector<1x32xf32> to vector<10x32xf32>
    %205 = arith.mulf %186, %204 : vector<10x32xf32>
    %cst_127 = arith.constant dense<0.000000e+00> : vector<10x10xf32>
    %206 = tpu.matmul %205, %193, %cst_127 {dimension_numbers = #tpu.dot_dimension_numbers<[1], [1], [0], [0], [0, 0, 1, 0], [], []>} : vector<10x32xf32>, vector<10x32xf32>, vector<10x10xf32> -> vector<10x10xf32>
    %cst_128 = arith.constant 2.500000e-01 : f32
    %207 = vector.broadcast %cst_128 : f32 to vector<10x10xf32>
    %208 = arith.mulf %206, %207 : vector<10x10xf32>
    %209 = arith.addf %208, %5 : vector<10x10xf32>
    %cst_129 = arith.constant dense<0xFF800000> : vector<10xf32>
    %210 = vector.multi_reduction <maximumf>, %209, %cst_129 [1] : vector<10x10xf32> to vector<10xf32>
    %211 = vector.shape_cast %210 : vector<10xf32> to vector<10x1xf32>
    %212 = vector.broadcast %211 : vector<10x1xf32> to vector<10x10xf32>
    %213 = arith.subf %209, %212 : vector<10x10xf32>
    %214 = math.exp %213 : vector<10x10xf32>
    %cst_130 = arith.constant dense<0.000000e+00> : vector<10xf32>
    %215 = vector.multi_reduction <add>, %214, %cst_130 [1] : vector<10x10xf32> to vector<10xf32>
    %216 = vector.shape_cast %215 : vector<10xf32> to vector<10x1xf32>
    %217 = tpu.reciprocal %216 {approx = true} : vector<10x1xf32> -> vector<10x1xf32>
    %218 = vector.broadcast %217 : vector<10x1xf32> to vector<10x10xf32>
    %219 = arith.mulf %214, %218 : vector<10x10xf32>
    %220 = vector.broadcast %203 : vector<1x32xf32> to vector<10x32xf32>
    %221 = arith.mulf %200, %220 : vector<10x32xf32>
    %cst_131 = arith.constant dense<0.000000e+00> : vector<10x32xf32>
    %222 = tpu.matmul %219, %221, %cst_131 {dimension_numbers = #tpu.dot_dimension_numbers<[1], [0], [0], [1], [0, 0, 1, 1], [], []>} : vector<10x10xf32>, vector<10x32xf32>, vector<10x32xf32> -> vector<10x32xf32>
    %223 = arith.addf %201, %222 : vector<10x32xf32>
    %c1_132 = arith.constant 1 : index
    %c0_133 = arith.constant 0 : index
    %c0_134 = arith.constant 0 : index
    %224 = vector.load %arg4[%c1_132, %c0_133, %c0_134] : memref<2x1x32xf32, #tpu.memory_space<vmem>>, vector<1x1x32xf32>
    %225 = vector.shape_cast %224 : vector<1x1x32xf32> to vector<1x32xf32>
    %226 = vector.broadcast %225 : vector<1x32xf32> to vector<10x32xf32>
    %227 = arith.mulf %186, %226 : vector<10x32xf32>
    %cst_135 = arith.constant dense<0.000000e+00> : vector<10x10xf32>
    %228 = tpu.matmul %227, %193, %cst_135 {dimension_numbers = #tpu.dot_dimension_numbers<[1], [1], [0], [0], [0, 0, 1, 0], [], []>} : vector<10x32xf32>, vector<10x32xf32>, vector<10x10xf32> -> vector<10x10xf32>
    %cst_136 = arith.constant 2.500000e-01 : f32
    %229 = vector.broadcast %cst_136 : f32 to vector<10x10xf32>
    %230 = arith.mulf %228, %229 : vector<10x10xf32>
    %231 = arith.addf %230, %5 : vector<10x10xf32>
    %cst_137 = arith.constant dense<0xFF800000> : vector<10xf32>
    %232 = vector.multi_reduction <maximumf>, %231, %cst_137 [1] : vector<10x10xf32> to vector<10xf32>
    %233 = vector.shape_cast %232 : vector<10xf32> to vector<10x1xf32>
    %234 = vector.broadcast %233 : vector<10x1xf32> to vector<10x10xf32>
    %235 = arith.subf %231, %234 : vector<10x10xf32>
    %236 = math.exp %235 : vector<10x10xf32>
    %cst_138 = arith.constant dense<0.000000e+00> : vector<10xf32>
    %237 = vector.multi_reduction <add>, %236, %cst_138 [1] : vector<10x10xf32> to vector<10xf32>
    %238 = vector.shape_cast %237 : vector<10xf32> to vector<10x1xf32>
    %239 = tpu.reciprocal %238 {approx = true} : vector<10x1xf32> -> vector<10x1xf32>
    %240 = vector.broadcast %239 : vector<10x1xf32> to vector<10x10xf32>
    %241 = arith.mulf %236, %240 : vector<10x10xf32>
    %242 = vector.broadcast %225 : vector<1x32xf32> to vector<10x32xf32>
    %243 = arith.mulf %200, %242 : vector<10x32xf32>
    %cst_139 = arith.constant dense<0.000000e+00> : vector<10x32xf32>
    %244 = tpu.matmul %241, %243, %cst_139 {dimension_numbers = #tpu.dot_dimension_numbers<[1], [0], [0], [1], [0, 0, 1, 1], [], []>} : vector<10x10xf32>, vector<10x32xf32>, vector<10x32xf32> -> vector<10x32xf32>
    %245 = arith.addf %223, %244 : vector<10x32xf32>
    %c1_140 = arith.constant 1 : index
    %c0_141 = arith.constant 0 : index
    %c0_142 = arith.constant 0 : index
    %246 = vector.load %arg14[%c1_140, %c0_141, %c0_142] : memref<2x32x32xf32, #tpu.memory_space<vmem>>, vector<1x32x32xf32>
    %247 = vector.shape_cast %246 : vector<1x32x32xf32> to vector<32x32xf32>
    %cst_143 = arith.constant dense<0.000000e+00> : vector<10x32xf32>
    %248 = tpu.matmul %245, %247, %cst_143 {dimension_numbers = #tpu.dot_dimension_numbers<[1], [0], [0], [1], [0, 0, 1, 1], [], []>} : vector<10x32xf32>, vector<32x32xf32>, vector<10x32xf32> -> vector<10x32xf32>
    %249 = arith.addf %155, %248 : vector<10x32xf32>
    %c1_144 = arith.constant 1 : index
    %c0_145 = arith.constant 0 : index
    %c0_146 = arith.constant 0 : index
    %250 = vector.load %arg15[%c1_144, %c0_145, %c0_146] : memref<2x1x32xf32, #tpu.memory_space<vmem>>, vector<1x1x32xf32>
    %251 = vector.shape_cast %250 : vector<1x1x32xf32> to vector<1x32xf32>
    %252 = vector.broadcast %251 : vector<1x32xf32> to vector<10x32xf32>
    %253 = arith.addf %249, %252 : vector<10x32xf32>
    %c1_147 = arith.constant 1 : index
    %c0_148 = arith.constant 0 : index
    %c0_149 = arith.constant 0 : index
    %254 = vector.load %arg16[%c1_147, %c0_148, %c0_149] : memref<2x1x32xf32, #tpu.memory_space<vmem>>, vector<1x1x32xf32>
    %255 = vector.shape_cast %254 : vector<1x1x32xf32> to vector<1x32xf32>
    %c1_150 = arith.constant 1 : index
    %c0_151 = arith.constant 0 : index
    %c0_152 = arith.constant 0 : index
    %256 = vector.load %arg17[%c1_150, %c0_151, %c0_152] : memref<2x1x32xf32, #tpu.memory_space<vmem>>, vector<1x1x32xf32>
    %257 = vector.shape_cast %256 : vector<1x1x32xf32> to vector<1x32xf32>
    %cst_153 = arith.constant dense<0.000000e+00> : vector<10xf32>
    %258 = vector.multi_reduction <add>, %253, %cst_153 [1] : vector<10x32xf32> to vector<10xf32>
    %259 = vector.shape_cast %258 : vector<10xf32> to vector<10x1xf32>
    %cst_154 = arith.constant 3.200000e+01 : f32
    %260 = vector.broadcast %cst_154 : f32 to vector<10x1xf32>
    %261 = arith.divf %259, %260 : vector<10x1xf32>
    %262 = vector.broadcast %261 : vector<10x1xf32> to vector<10x32xf32>
    %263 = arith.subf %253, %262 : vector<10x32xf32>
    %264 = arith.mulf %263, %263 : vector<10x32xf32>
    %cst_155 = arith.constant dense<0.000000e+00> : vector<10xf32>
    %265 = vector.multi_reduction <add>, %264, %cst_155 [1] : vector<10x32xf32> to vector<10xf32>
    %266 = vector.shape_cast %265 : vector<10xf32> to vector<10x1xf32>
    %cst_156 = arith.constant 3.200000e+01 : f32
    %267 = vector.broadcast %cst_156 : f32 to vector<10x1xf32>
    %268 = arith.divf %266, %267 : vector<10x1xf32>
    %cst_157 = arith.constant 9.99999997E-7 : f32
    %269 = vector.broadcast %cst_157 : f32 to vector<10x1xf32>
    %270 = arith.addf %268, %269 : vector<10x1xf32>
    %271 = math.rsqrt %270 : vector<10x1xf32>
    %272 = vector.broadcast %271 : vector<10x1xf32> to vector<10x32xf32>
    %273 = arith.mulf %263, %272 : vector<10x32xf32>
    %274 = vector.broadcast %255 : vector<1x32xf32> to vector<10x32xf32>
    %275 = arith.mulf %273, %274 : vector<10x32xf32>
    %276 = vector.broadcast %257 : vector<1x32xf32> to vector<10x32xf32>
    %277 = arith.addf %275, %276 : vector<10x32xf32>
    %c1_158 = arith.constant 1 : index
    %c0_159 = arith.constant 0 : index
    %c0_160 = arith.constant 0 : index
    %278 = vector.load %arg18[%c1_158, %c0_159, %c0_160] : memref<2x32x128xf32, #tpu.memory_space<vmem>>, vector<1x32x128xf32>
    %279 = vector.shape_cast %278 : vector<1x32x128xf32> to vector<32x128xf32>
    %cst_161 = arith.constant dense<0.000000e+00> : vector<10x128xf32>
    %280 = tpu.matmul %277, %279, %cst_161 {dimension_numbers = #tpu.dot_dimension_numbers<[1], [0], [0], [1], [0, 0, 1, 1], [], []>} : vector<10x32xf32>, vector<32x128xf32>, vector<10x128xf32> -> vector<10x128xf32>
    %c1_162 = arith.constant 1 : index
    %c0_163 = arith.constant 0 : index
    %c0_164 = arith.constant 0 : index
    %281 = vector.load %arg19[%c1_162, %c0_163, %c0_164] : memref<2x1x128xf32, #tpu.memory_space<vmem>>, vector<1x1x128xf32>
    %282 = vector.shape_cast %281 : vector<1x1x128xf32> to vector<1x128xf32>
    %283 = vector.broadcast %282 : vector<1x128xf32> to vector<10x128xf32>
    %284 = arith.addf %280, %283 : vector<10x128xf32>
    %cst_165 = arith.constant 5.000000e-01 : f32
    %285 = vector.broadcast %cst_165 : f32 to vector<10x128xf32>
    %286 = arith.mulf %285, %284 : vector<10x128xf32>
    %cst_166 = arith.constant 4.471500e-02 : f32
    %287 = vector.broadcast %cst_166 : f32 to vector<10x128xf32>
    %288 = arith.mulf %287, %284 : vector<10x128xf32>
    %289 = arith.mulf %288, %284 : vector<10x128xf32>
    %290 = arith.mulf %289, %284 : vector<10x128xf32>
    %291 = arith.addf %284, %290 : vector<10x128xf32>
    %cst_167 = arith.constant 0.797884583 : f32
    %292 = vector.broadcast %cst_167 : f32 to vector<10x128xf32>
    %293 = arith.mulf %292, %291 : vector<10x128xf32>
    %294 = math.tanh %293 : vector<10x128xf32>
    %cst_168 = arith.constant 1.000000e+00 : f32
    %295 = vector.broadcast %cst_168 : f32 to vector<10x128xf32>
    %296 = arith.addf %295, %294 : vector<10x128xf32>
    %297 = arith.mulf %286, %296 : vector<10x128xf32>
    %c1_169 = arith.constant 1 : index
    %c0_170 = arith.constant 0 : index
    %c0_171 = arith.constant 0 : index
    %298 = vector.load %arg20[%c1_169, %c0_170, %c0_171] : memref<2x128x32xf32, #tpu.memory_space<vmem>>, vector<1x128x32xf32>
    %299 = vector.shape_cast %298 : vector<1x128x32xf32> to vector<128x32xf32>
    %cst_172 = arith.constant dense<0.000000e+00> : vector<10x32xf32>
    %300 = tpu.matmul %297, %299, %cst_172 {dimension_numbers = #tpu.dot_dimension_numbers<[1], [0], [0], [1], [0, 0, 1, 1], [], []>} : vector<10x128xf32>, vector<128x32xf32>, vector<10x32xf32> -> vector<10x32xf32>
    %301 = arith.addf %253, %300 : vector<10x32xf32>
    %c1_173 = arith.constant 1 : index
    %c0_174 = arith.constant 0 : index
    %c0_175 = arith.constant 0 : index
    %302 = vector.load %arg21[%c1_173, %c0_174, %c0_175] : memref<2x1x32xf32, #tpu.memory_space<vmem>>, vector<1x1x32xf32>
    %303 = vector.shape_cast %302 : vector<1x1x32xf32> to vector<1x32xf32>
    %304 = vector.broadcast %303 : vector<1x32xf32> to vector<10x32xf32>
    %305 = arith.addf %301, %304 : vector<10x32xf32>
    %c0_176 = arith.constant 0 : index
    %c0_177 = arith.constant 0 : index
    %306 = vector.load %arg22[%c0_176, %c0_177] : memref<1x32xf32, #tpu.memory_space<vmem>>, vector<1x32xf32>
    %c0_178 = arith.constant 0 : index
    %c0_179 = arith.constant 0 : index
    %307 = vector.load %arg23[%c0_178, %c0_179] : memref<1x32xf32, #tpu.memory_space<vmem>>, vector<1x32xf32>
    %cst_180 = arith.constant dense<0.000000e+00> : vector<10xf32>
    %308 = vector.multi_reduction <add>, %305, %cst_180 [1] : vector<10x32xf32> to vector<10xf32>
    %309 = vector.shape_cast %308 : vector<10xf32> to vector<10x1xf32>
    %cst_181 = arith.constant 3.200000e+01 : f32
    %310 = vector.broadcast %cst_181 : f32 to vector<10x1xf32>
    %311 = arith.divf %309, %310 : vector<10x1xf32>
    %312 = vector.broadcast %311 : vector<10x1xf32> to vector<10x32xf32>
    %313 = arith.subf %305, %312 : vector<10x32xf32>
    %314 = arith.mulf %313, %313 : vector<10x32xf32>
    %cst_182 = arith.constant dense<0.000000e+00> : vector<10xf32>
    %315 = vector.multi_reduction <add>, %314, %cst_182 [1] : vector<10x32xf32> to vector<10xf32>
    %316 = vector.shape_cast %315 : vector<10xf32> to vector<10x1xf32>
    %cst_183 = arith.constant 3.200000e+01 : f32
    %317 = vector.broadcast %cst_183 : f32 to vector<10x1xf32>
    %318 = arith.divf %316, %317 : vector<10x1xf32>
    %cst_184 = arith.constant 9.99999997E-7 : f32
    %319 = vector.broadcast %cst_184 : f32 to vector<10x1xf32>
    %320 = arith.addf %318, %319 : vector<10x1xf32>
    %321 = math.rsqrt %320 : vector<10x1xf32>
    %322 = vector.broadcast %321 : vector<10x1xf32> to vector<10x32xf32>
    %323 = arith.mulf %313, %322 : vector<10x32xf32>
    %324 = vector.broadcast %306 : vector<1x32xf32> to vector<10x32xf32>
    %325 = arith.mulf %323, %324 : vector<10x32xf32>
    %326 = vector.broadcast %307 : vector<1x32xf32> to vector<10x32xf32>
    %327 = arith.addf %325, %326 : vector<10x32xf32>
    %c0_185 = arith.constant 0 : index
    %c0_186 = arith.constant 0 : index
    %328 = vector.load %arg5[%c0_185, %c0_186] : memref<8x10xf32, #tpu.memory_space<vmem>>, vector<8x10xf32>
    %cst_187 = arith.constant dense<0.000000e+00> : vector<8x32xf32>
    %329 = tpu.matmul %328, %327, %cst_187 {dimension_numbers = #tpu.dot_dimension_numbers<[1], [0], [0], [1], [0, 0, 1, 1], [], []>} : vector<8x10xf32>, vector<10x32xf32>, vector<8x32xf32> -> vector<8x32xf32>
    %c0_188 = arith.constant 0 : index
    %c0_189 = arith.constant 0 : index
    %330 = vector.load %arg24[%c0_188, %c0_189] : memref<32x128xf32, #tpu.memory_space<vmem>>, vector<32x128xf32>
    %cst_190 = arith.constant dense<0.000000e+00> : vector<8x128xf32>
    %331 = tpu.matmul %329, %330, %cst_190 {dimension_numbers = #tpu.dot_dimension_numbers<[1], [0], [0], [1], [0, 0, 1, 1], [], []>} : vector<8x32xf32>, vector<32x128xf32>, vector<8x128xf32> -> vector<8x128xf32>
    %c0_191 = arith.constant 0 : index
    %c0_192 = arith.constant 0 : index
    %332 = vector.load %arg25[%c0_191, %c0_192] : memref<1x128xf32, #tpu.memory_space<vmem>>, vector<1x128xf32>
    %333 = vector.broadcast %332 : vector<1x128xf32> to vector<8x128xf32>
    %334 = arith.addf %331, %333 : vector<8x128xf32>
    %c0_193 = arith.constant 0 : index
    %c0_194 = arith.constant 0 : index
    %335 = vector.load %arg26[%c0_193, %c0_194] : memref<8x128xf32, #tpu.memory_space<vmem>>, vector<8x128xf32>
    tpu.vector_store %arg26[%c0_193, %c0_194], %334 {strides = array<i32>} : memref<8x128xf32, #tpu.memory_space<vmem>>, vector<8x128xf32>,
    return
  }
}

</mosaic_0001>

<llo_original>
// kernel: vit_forward.1
$region0: #{vit_forward.1}
  #allocation0 [shape = 'u32[]', space=smem, size = 0x4, offset = 0x4, fixed_abs, tag = 'smem constant byte address 0x4 - core index']
  #allocation1 [shape = 'u32[144,128]{1,0:T(1,128)}', space=vmem, size = 0x12000, scoped, tag = 'internal scratch']
  %s0 = inlined_call_operand.vmem [shape: f32[10,768], index: 0, kind: input, shape index: {}]
  %s1 = inlined_call_operand.vmem [shape: f32[768,32], index: 1, kind: input, shape index: {}]
  %s2 = inlined_call_operand.vmem [shape: f32[10,32], index: 2, kind: input, shape index: {}]
  %s3 = inlined_call_operand.vmem [shape: f32[10,10], index: 3, kind: input, shape index: {}]
  %s4 = inlined_call_operand.vmem [shape: f32[2,1,32], index: 4, kind: input, shape index: {}]
  %s5 = inlined_call_operand.vmem [shape: f32[8,10], index: 5, kind: input, shape index: {}]
  %s6 = inlined_call_operand.vmem [shape: f32[2,1,32], index: 6, kind: input, shape index: {}]
  %s7 = inlined_call_operand.vmem [shape: f32[2,1,32], index: 7, kind: input, shape index: {}]
  %s8 = inlined_call_operand.vmem [shape: f32[2,32,32], index: 8, kind: input, shape index: {}]
  %s9 = inlined_call_operand.vmem [shape: f32[2,1,32], index: 9, kind: input, shape index: {}]
  %s10 = inlined_call_operand.vmem [shape: f32[2,32,32], index: 10, kind: input, shape index: {}]
  %s11 = inlined_call_operand.vmem [shape: f32[2,1,32], index: 11, kind: input, shape index: {}]
  %s12 = inlined_call_operand.vmem [shape: f32[2,32,32], index: 12, kind: input, shape index: {}]
  %s13 = inlined_call_operand.vmem [shape: f32[2,1,32], index: 13, kind: input, shape index: {}]
  %s14 = inlined_call_operand.vmem [shape: f32[2,32,32], index: 14, kind: input, shape index: {}]
  %s15 = inlined_call_operand.vmem [shape: f32[2,1,32], index: 15, kind: input, shape index: {}]
  %s16 = inlined_call_operand.vmem [shape: f32[2,1,32], index: 16, kind: input, shape index: {}]
  %s17 = inlined_call_operand.vmem [shape: f32[2,1,32], index: 17, kind: input, shape index: {}]
  %s18 = inlined_call_operand.vmem [shape: f32[2,32,128], index: 18, kind: input, shape index: {}]
  %s19 = inlined_call_operand.vmem [shape: f32[2,1,128], index: 19, kind: input, shape index: {}]
  %s20 = inlined_call_operand.vmem [shape: f32[2,128,32], index: 20, kind: input, shape index: {}]
  %s21 = inlined_call_operand.vmem [shape: f32[2,1,32], index: 21, kind: input, shape index: {}]
  %s22 = inlined_call_operand.vmem [shape: f32[1,32], index: 22, kind: input, shape index: {}]
  %s23 = inlined_call_operand.vmem [shape: f32[1,32], index: 23, kind: input, shape index: {}]
  %s24 = inlined_call_operand.vmem [shape: f32[32,128], index: 24, kind: input, shape index: {}]
  %s25 = inlined_call_operand.vmem [shape: f32[1,128], index: 25, kind: input, shape index: {}]
  %s26 = inlined_call_operand.vmem [shape: f32[8,128], index: 26, kind: output, shape index: {}]
  %s27 = sld [smem:[#allocation0]]
  $region114: #{vit_forward.1} parent=0
    _
  %s29 = ssub.s32 1, %s27
  %s30 = scalar_select 0, %s29, %s27
  // Predicated region
  $region2: #{vit_forward.1} parent=0 // pred_check
    _
  $region3: #{vit_forward.1} parent=0 // pred_check_branch
    %32 = sbr.rel (0) target = $region5
  $region4: #{vit_forward.1} parent=0 // pred_region
    _
  $region5: #{vit_forward.1} parent=0 // pred_fallthru
    _
  // Predicated region
  $region6: #{vit_forward.1} parent=0 // pred_check
    _
  $region7: #{vit_forward.1} parent=0 // pred_check_branch
    %34 = sbr.rel (0) target = $region9
  $region8: #{vit_forward.1} parent=0 // pred_region
    _
  $region9: #{vit_forward.1} parent=0 // pred_fallthru
    _
  // Predicated region
  $region10: #{vit_forward.1} parent=0 // pred_check
    _
  $region11: #{vit_forward.1} parent=0 // pred_check_branch
    %36 = sbr.rel (0) target = $region13
  $region12: #{vit_forward.1} parent=0 // pred_region
    _
  $region13: #{vit_forward.1} parent=0 // pred_fallthru
    _
  // Predicated region
  $region14: #{vit_forward.1} parent=0 // pred_check
    _
  $region15: #{vit_forward.1} parent=0 // pred_check_branch
    %38 = sbr.rel (0) target = $region17
  $region16: #{vit_forward.1} parent=0 // pred_region
    _
  $region17: #{vit_forward.1} parent=0 // pred_fallthru
    _
  // Predicated region
  $region18: #{vit_forward.1} parent=0 // pred_check
    _
  $region19: #{vit_forward.1} parent=0 // pred_check_branch
    %40 = sbr.rel (0) target = $region21
  $region20: #{vit_forward.1} parent=0 // pred_region
    _
  $region21: #{vit_forward.1} parent=0 // pred_fallthru
    _
  // Predicated region
  $region22: #{vit_forward.1} parent=0 // pred_check
    _
  $region23: #{vit_forward.1} parent=0 // pred_check_branch
    %42 = sbr.rel (0) target = $region25
  $region24: #{vit_forward.1} parent=0 // pred_region
    _
  $region25: #{vit_forward.1} parent=0 // pred_fallthru
    _
  // Predicated region
  $region26: #{vit_forward.1} parent=0 // pred_check
    _
  $region27: #{vit_forward.1} parent=0 // pred_check_branch
    %44 = sbr.rel (0) target = $region29
  $region28: #{vit_forward.1} parent=0 // pred_region
    _
  $region29: #{vit_forward.1} parent=0 // pred_fallthru
    _
  // Predicated region
  $region30: #{vit_forward.1} parent=0 // pred_check
    _
  $region31: #{vit_forward.1} parent=0 // pred_check_branch
    %46 = sbr.rel (0) target = $region33
  $region32: #{vit_forward.1} parent=0 // pred_region
    _
  $region33: #{vit_forward.1} parent=0 // pred_fallthru
    _
  // Predicated region
  $region34: #{vit_forward.1} parent=0 // pred_check
    _
  $region35: #{vit_forward.1} parent=0 // pred_check_branch
    %48 = sbr.rel (0) target = $region37
  $region36: #{vit_forward.1} parent=0 // pred_region
    _
  $region37: #{vit_forward.1} parent=0 // pred_fallthru
    _
  // Predicated region
  $region38: #{vit_forward.1} parent=0 // pred_check
    _
  $region39: #{vit_forward.1} parent=0 // pred_check_branch
    %50 = sbr.rel (0) target = $region41
  $region40: #{vit_forward.1} parent=0 // pred_region
    _
  $region41: #{vit_forward.1} parent=0 // pred_fallthru
    _
  // Predicated region
  $region42: #{vit_forward.1} parent=0 // pred_check
    _
  $region43: #{vit_forward.1} parent=0 // pred_check_branch
    %52 = sbr.rel (0) target = $region45
  $region44: #{vit_forward.1} parent=0 // pred_region
    _
  $region45: #{vit_forward.1} parent=0 // pred_fallthru
    _
  // Predicated region
  $region46: #{vit_forward.1} parent=0 // pred_check
    _
  $region47: #{vit_forward.1} parent=0 // pred_check_branch
    %54 = sbr.rel (0) target = $region49
  $region48: #{vit_forward.1} parent=0 // pred_region
    _
  $region49: #{vit_forward.1} parent=0 // pred_fallthru
    _
  // Predicated region
  $region50: #{vit_forward.1} parent=0 // pred_check
    _
  $region51: #{vit_forward.1} parent=0 // pred_check_branch
    %56 = sbr.rel (0) target = $region53
  $region52: #{vit_forward.1} parent=0 // pred_region
    _
  $region53: #{vit_forward.1} parent=0 // pred_fallthru
    _
  // Predicated region
  $region54: #{vit_forward.1} parent=0 // pred_check
    _
  $region55: #{vit_forward.1} parent=0 // pred_check_branch
    %58 = sbr.rel (0) target = $region57
  $region56: #{vit_forward.1} parent=0 // pred_region
    _
  $region57: #{vit_forward.1} parent=0 // pred_fallthru
    _
  // Predicated region
  $region58: #{vit_forward.1} parent=0 // pred_check
    _
  $region59: #{vit_forward.1} parent=0 // pred_check_branch
    %60 = sbr.rel (0) target = $region61
  $region60: #{vit_forward.1} parent=0 // pred_region
    _
  $region61: #{vit_forward.1} parent=0 // pred_fallthru
    _
  // Predicated region
  $region62: #{vit_forward.1} parent=0 // pred_check
    _
  $region63: #{vit_forward.1} parent=0 // pred_check_branch
    %62 = sbr.rel (0) target = $region65
  $region64: #{vit_forward.1} parent=0 // pred_region
    _
  $region65: #{vit_forward.1} parent=0 // pred_fallthru
    _
  // Predicated region
  $region66: #{vit_forward.1} parent=0 // pred_check
    _
  $region67: #{vit_forward.1} parent=0 // pred_check_branch
    %64 = sbr.rel (0) target = $region69
  $region68: #{vit_forward.1} parent=0 // pred_region
    _
  $region69: #{vit_forward.1} parent=0 // pred_fallthru
    _
  // Predicated region
  $region70: #{vit_forward.1} parent=0 // pred_check
    _
  $region71: #{vit_forward.1} parent=0 // pred_check_branch
    %66 = sbr.rel (0) target = $region73
  $region72: #{vit_forward.1} parent=0 // pred_region
    _
  $region73: #{vit_forward.1} parent=0 // pred_fallthru
    _
  // Predicated region
  $region74: #{vit_forward.1} parent=0 // pred_check
    _
  $region75: #{vit_forward.1} parent=0 // pred_check_branch
    %68 = sbr.rel (0) target = $region77
  $region76: #{vit_forward.1} parent=0 // pred_region
    _
  $region77: #{vit_forward.1} parent=0 // pred_fallthru
    _
  // Predicated region
  $region78: #{vit_forward.1} parent=0 // pred_check
    _
  $region79: #{vit_forward.1} parent=0 // pred_check_branch
    %70 = sbr.rel (0) target = $region81
  $region80: #{vit_forward.1} parent=0 // pred_region
    _
  $region81: #{vit_forward.1} parent=0 // pred_fallthru
    _
  // Predicated region
  $region82: #{vit_forward.1} parent=0 // pred_check
    _
  $region83: #{vit_forward.1} parent=0 // pred_check_branch
    %72 = sbr.rel (0) target = $region85
  $region84: #{vit_forward.1} parent=0 // pred_region
    _
  $region85: #{vit_forward.1} parent=0 // pred_fallthru
    _
  // Predicated region
  $region86: #{vit_forward.1} parent=0 // pred_check
    _
  $region87: #{vit_forward.1} parent=0 // pred_check_branch
    %74 = sbr.rel (0) target = $region89
  $region88: #{vit_forward.1} parent=0 // pred_region
    _
  $region89: #{vit_forward.1} parent=0 // pred_fallthru
    _
  // Predicated region
  $region90: #{vit_forward.1} parent=0 // pred_check
    _
  $region91: #{vit_forward.1} parent=0 // pred_check_branch
    %76 = sbr.rel (0) target = $region93
  $region92: #{vit_forward.1} parent=0 // pred_region
    _
  $region93: #{vit_forward.1} parent=0 // pred_fallthru
    _
  // Predicated region
  $region94: #{vit_forward.1} parent=0 // pred_check
    _
  $region95: #{vit_forward.1} parent=0 // pred_check_branch
    %78 = sbr.rel (0) target = $region97
  $region96: #{vit_forward.1} parent=0 // pred_region
    _
  $region97: #{vit_forward.1} parent=0 // pred_fallthru
    _
  // Predicated region
  $region98: #{vit_forward.1} parent=0 // pred_check
    _
  $region99: #{vit_forward.1} parent=0 // pred_check_branch
    %80 = sbr.rel (0) target = $region101
  $region100: #{vit_forward.1} parent=0 // pred_region
    _
  $region101: #{vit_forward.1} parent=0 // pred_fallthru
    _
  // Predicated region
  $region102: #{vit_forward.1} parent=0 // pred_check
    _
  $region103: #{vit_forward.1} parent=0 // pred_check_branch
    %82 = sbr.rel (0) target = $region105
  $region104: #{vit_forward.1} parent=0 // pred_region
    _
  $region105: #{vit_forward.1} parent=0 // pred_fallthru
    _
  %v83 = vld [vmem:[%s0] sm:$0xff]
  %v84 = vld [vmem:[%s0 + $0x8] sm:$0xff]
  %v85 = vld [vmem:[%s0 + $0x10] sm:$0xff]
  %v86 = vld [vmem:[%s0 + $0x18] sm:$0xff]
  %v87 = vld [vmem:[%s0 + $0x20] sm:$0xff]
  %v88 = vld [vmem:[%s0 + $0x28] sm:$0xff]
  %v89 = vld [vmem:[%s0 + $0x30] sm:$0x3]
  %v90 = vld [vmem:[%s0 + $0x38] sm:$0x3]
  %v91 = vld [vmem:[%s0 + $0x40] sm:$0x3]
  %v92 = vld [vmem:[%s0 + $0x48] sm:$0x3]
  %v93 = vld [vmem:[%s0 + $0x50] sm:$0x3]
  %v94 = vld [vmem:[%s0 + $0x58] sm:$0x3]
  %v95 = vld [vmem:[%s1] sm:$0xff]
  %v96 = vld [vmem:[%s1 + $0x8] sm:$0xff]
  %v97 = vld [vmem:[%s1 + $0x10] sm:$0xff]
  %v98 = vld [vmem:[%s1 + $0x18] sm:$0xff]
  %v99 = vld [vmem:[%s1 + $0x20] sm:$0xff]
  %v100 = vld [vmem:[%s1 + $0x28] sm:$0xff]
  %v101 = vld [vmem:[%s1 + $0x30] sm:$0xff]
  %v102 = vld [vmem:[%s1 + $0x38] sm:$0xff]
  %v103 = vld [vmem:[%s1 + $0x40] sm:$0xff]
  %v104 = vld [vmem:[%s1 + $0x48] sm:$0xff]
  %v105 = vld [vmem:[%s1 + $0x50] sm:$0xff]
  %v106 = vld [vmem:[%s1 + $0x58] sm:$0xff]
  %v107 = vld [vmem:[%s1 + $0x60] sm:$0xff]
  %v108 = vld [vmem:[%s1 + $0x68] sm:$0xff]
  %v109 = vld [vmem:[%s1 + $0x70] sm:$0xff]
  %v110 = vld [vmem:[%s1 + $0x78] sm:$0xff]
  %v111 = vld [vmem:[%s1 + $0x80] sm:$0xff]
  %v112 = vld [vmem:[%s1 + $0x88] sm:$0xff]
  %v113 = vld [vmem:[%s1 + $0x90] sm:$0xff]
  %v114 = vld [vmem:[%s1 + $0x98] sm:$0xff]
  %v115 = vld [vmem:[%s1 + $0xa0] sm:$0xff]
  %v116 = vld [vmem:[%s1 + $0xa8] sm:$0xff]
  %v117 = vld [vmem:[%s1 + $0xb0] sm:$0xff]
  %v118 = vld [vmem:[%s1 + $0xb8] sm:$0xff]
  %v119 = vld [vmem:[%s1 + $0xc0] sm:$0xff]
  %v120 = vld [vmem:[%s1 + $0xc8] sm:$0xff]
  %v121 = vld [vmem:[%s1 + $0xd0] sm:$0xff]
  %v122 = vld [vmem:[%s1 + $0xd8] sm:$0xff]
  %v123 = vld [vmem:[%s1 + $0xe0] sm:$0xff]
  %v124 = vld [vmem:[%s1 + $0xe8] sm:$0xff]
  %v125 = vld [vmem:[%s1 + $0xf0] sm:$0xff]
  %v126 = vld [vmem:[%s1 + $0xf8] sm:$0xff]
  %v127 = vld [vmem:[%s1 + $0x100] sm:$0xff]
  %v128 = vld [vmem:[%s1 + $0x108] sm:$0xff]
  %v129 = vld [vmem:[%s1 + $0x110] sm:$0xff]
  %v130 = vld [vmem:[%s1 + $0x118] sm:$0xff]
  %v131 = vld [vmem:[%s1 + $0x120] sm:$0xff]
  %v132 = vld [vmem:[%s1 + $0x128] sm:$0xff]
  %v133 = vld [vmem:[%s1 + $0x130] sm:$0xff]
  %v134 = vld [vmem:[%s1 + $0x138] sm:$0xff]
  %v135 = vld [vmem:[%s1 + $0x140] sm:$0xff]
  %v136 = vld [vmem:[%s1 + $0x148] sm:$0xff]
  %v137 = vld [vmem:[%s1 + $0x150] sm:$0xff]
  %v138 = vld [vmem:[%s1 + $0x158] sm:$0xff]
  %v139 = vld [vmem:[%s1 + $0x160] sm:$0xff]
  %v140 = vld [vmem:[%s1 + $0x168] sm:$0xff]
  %v141 = vld [vmem:[%s1 + $0x170] sm:$0xff]
  %v142 = vld [vmem:[%s1 + $0x178] sm:$0xff]
  %v143 = vld [vmem:[%s1 + $0x180] sm:$0xff]
  %v144 = vld [vmem:[%s1 + $0x188] sm:$0xff]
  %v145 = vld [vmem:[%s1 + $0x190] sm:$0xff]
  %v146 = vld [vmem:[%s1 + $0x198] sm:$0xff]
  %v147 = vld [vmem:[%s1 + $0x1a0] sm:$0xff]
  %v148 = vld [vmem:[%s1 + $0x1a8] sm:$0xff]
  %v149 = vld [vmem:[%s1 + $0x1b0] sm:$0xff]
  %v150 = vld [vmem:[%s1 + $0x1b8] sm:$0xff]
  %v151 = vld [vmem:[%s1 + $0x1c0] sm:$0xff]
  %v152 = vld [vmem:[%s1 + $0x1c8] sm:$0xff]
  %v153 = vld [vmem:[%s1 + $0x1d0] sm:$0xff]
  %v154 = vld [vmem:[%s1 + $0x1d8] sm:$0xff]
  %v155 = vld [vmem:[%s1 + $0x1e0] sm:$0xff]
  %v156 = vld [vmem:[%s1 + $0x1e8] sm:$0xff]
  %v157 = vld [vmem:[%s1 + $0x1f0] sm:$0xff]
  %v158 = vld [vmem:[%s1 + $0x1f8] sm:$0xff]
  %v159 = vld [vmem:[%s1 + $0x200] sm:$0xff]
  %v160 = vld [vmem:[%s1 + $0x208] sm:$0xff]
  %v161 = vld [vmem:[%s1 + $0x210] sm:$0xff]
  %v162 = vld [vmem:[%s1 + $0x218] sm:$0xff]
  %v163 = vld [vmem:[%s1 + $0x220] sm:$0xff]
  %v164 = vld [vmem:[%s1 + $0x228] sm:$0xff]
  %v165 = vld [vmem:[%s1 + $0x230] sm:$0xff]
  %v166 = vld [vmem:[%s1 + $0x238] sm:$0xff]
  %v167 = vld [vmem:[%s1 + $0x240] sm:$0xff]
  %v168 = vld [vmem:[%s1 + $0x248] sm:$0xff]
  %v169 = vld [vmem:[%s1 + $0x250] sm:$0xff]
  %v170 = vld [vmem:[%s1 + $0x258] sm:$0xff]
  %v171 = vld [vmem:[%s1 + $0x260] sm:$0xff]
  %v172 = vld [vmem:[%s1 + $0x268] sm:$0xff]
  %v173 = vld [vmem:[%s1 + $0x270] sm:$0xff]
  %v174 = vld [vmem:[%s1 + $0x278] sm:$0xff]
  %v175 = vld [vmem:[%s1 + $0x280] sm:$0xff]
  %v176 = vld [vmem:[%s1 + $0x288] sm:$0xff]
  %v177 = vld [vmem:[%s1 + $0x290] sm:$0xff]
  %v178 = vld [vmem:[%s1 + $0x298] sm:$0xff]
  %v179 = vld [vmem:[%s1 + $0x2a0] sm:$0xff]
  %v180 = vld [vmem:[%s1 + $0x2a8] sm:$0xff]
  %v181 = vld [vmem:[%s1 + $0x2b0] sm:$0xff]
  %v182 = vld [vmem:[%s1 + $0x2b8] sm:$0xff]
  %v183 = vld [vmem:[%s1 + $0x2c0] sm:$0xff]
  %v184 = vld [vmem:[%s1 + $0x2c8] sm:$0xff]
  %v185 = vld [vmem:[%s1 + $0x2d0] sm:$0xff]
  %v186 = vld [vmem:[%s1 + $0x2d8] sm:$0xff]
  %v187 = vld [vmem:[%s1 + $0x2e0] sm:$0xff]
  %v188 = vld [vmem:[%s1 + $0x2e8] sm:$0xff]
  %v189 = vld [vmem:[%s1 + $0x2f0] sm:$0xff]
  %v190 = vld [vmem:[%s1 + $0x2f8] sm:$0xff]
  %v191 = vld [vmem:[%s2] sm:$0xff]
  %v192 = vld [vmem:[%s2 + $0x8] sm:$0x3]
  %193 = vmatprep.subr.mxu0 0.0
  %194 = vmatpush1.msra.mxu0 %v110
  %195 = vmatprep.subr.mxu0 0.0
  %196 = vmatpush1.msra.mxu0 %v109
  %197 = vmatprep.subr.mxu0 0.0
  %198 = vmatpush1.msra.mxu0 %v108
  %199 = vmatprep.subr.mxu0 0.0
  %200 = vmatpush1.msra.mxu0 %v107
  %201 = vmatprep.subr.mxu0 0.0
  %202 = vmatpush1.msra.mxu0 %v106
  %203 = vmatprep.subr.mxu0 0.0
  %204 = vmatpush1.msra.mxu0 %v105
  %205 = vmatprep.subr.mxu0 0.0
  %206 = vmatpush1.msra.mxu0 %v104
  %207 = vmatprep.subr.mxu0 0.0
  %208 = vmatpush1.msra.mxu0 %v103
  %209 = vmatprep.subr.mxu0 0.0
  %210 = vmatpush1.msra.mxu0 %v102
  %211 = vmatprep.subr.mxu0 0.0
  %212 = vmatpush1.msra.mxu0 %v101
  %213 = vmatprep.subr.mxu0 0.0
  %214 = vmatpush1.msra.mxu0 %v100
  %215 = vmatprep.subr.mxu0 0.0
  %216 = vmatpush1.msra.mxu0 %v99
  %217 = vmatprep.subr.mxu0 0.0
  %218 = vmatpush1.msra.mxu0 %v98
  %219 = vmatprep.subr.mxu0 0.0
  %220 = vmatpush1.msra.mxu0 %v97
  %221 = vmatprep.subr.mxu0 0.0
  %222 = vmatpush1.msra.mxu0 %v96
  %223 = vmatprep.subr.mxu0 0.0
  %224 = vmatpush1.msra.mxu0 %v95
  %225 = vmatprep.subr.mxu0 0.0
  %226 = vmatpush2.msra.mxu0 %v126
  %227 = vmatprep.subr.mxu0 0.0
  %228 = vmatpush2.msra.mxu0 %v125
  %229 = vmatprep.subr.mxu0 0.0
  %230 = vmatpush2.msra.mxu0 %v124
  %231 = vmatprep.subr.mxu0 0.0
  %232 = vmatpush2.msra.mxu0 %v123
  %233 = vmatprep.subr.mxu0 0.0
  %234 = vmatpush2.msra.mxu0 %v122
  %235 = vmatprep.subr.mxu0 0.0
  %236 = vmatpush2.msra.mxu0 %v121
  %237 = vmatprep.subr.mxu0 0.0
  %238 = vmatpush2.msra.mxu0 %v120
  %239 = vmatprep.subr.mxu0 0.0
  %240 = vmatpush2.msra.mxu0 %v119
  %241 = vmatprep.subr.mxu0 0.0
  %242 = vmatpush2.msra.mxu0 %v118
  %243 = vmatprep.subr.mxu0 0.0
  %244 = vmatpush2.msra.mxu0 %v117
  %245 = vmatprep.subr.mxu0 0.0
  %246 = vmatpush2.msra.mxu0 %v116
  %247 = vmatprep.subr.mxu0 0.0
  %248 = vmatpush2.msra.mxu0 %v115
  %249 = vmatprep.subr.mxu0 0.0
  %250 = vmatpush2.msra.mxu0 %v114
  %251 = vmatprep.subr.mxu0 0.0
  %252 = vmatpush2.msra.mxu0 %v113
  %253 = vmatprep.subr.mxu0 0.0
  %254 = vmatpush2.msra.mxu0 %v112
  %255 = vmatprep.subr.mxu0 0.0
  %256 = vmatpush2.msra.mxu0 %v111
  %257 = vmatprep.mubr.f32.mxu0 %v84
  %258 = vmatmul.mubr.f32.gmra.mxu0 %v83
  %v259 = vpop.f32.mrf.mxu0
  %v260 = vadd.f32 %v191, %v259
  %v261 = vpop.f32.mrf.mxu0
  %262 = vmatprep.mubr.f32.mxu0 %v90
  %263 = vmatmul.mubr.f32.gmra.mxu0 %v89
  %v264 = vpop.f32.mrf.mxu0
  %v265 = vadd.f32 %v192, %v264
  %v266 = vpop.f32.mrf.mxu0
  %267 = vdwg.mxu0
  %268 = vmatprep.subr.mxu0 0.0
  %269 = vmatpush1.msra.mxu0 %v142
  %270 = vmatprep.subr.mxu0 0.0
  %271 = vmatpush1.msra.mxu0 %v141
  %272 = vmatprep.subr.mxu0 0.0
  %273 = vmatpush1.msra.mxu0 %v140
  %274 = vmatprep.subr.mxu0 0.0
  %275 = vmatpush1.msra.mxu0 %v139
  %276 = vmatprep.subr.mxu0 0.0
  %277 = vmatpush1.msra.mxu0 %v138
  %278 = vmatprep.subr.mxu0 0.0
  %279 = vmatpush1.msra.mxu0 %v137
  %280 = vmatprep.subr.mxu0 0.0
  %281 = vmatpush1.msra.mxu0 %v136
  %282 = vmatprep.subr.mxu0 0.0
  %283 = vmatpush1.msra.mxu0 %v135
  %284 = vmatprep.subr.mxu0 0.0
  %285 = vmatpush1.msra.mxu0 %v134
  %286 = vmatprep.subr.mxu0 0.0
  %287 = vmatpush1.msra.mxu0 %v133
  %288 = vmatprep.subr.mxu0 0.0
  %289 = vmatpush1.msra.mxu0 %v132
  %290 = vmatprep.subr.mxu0 0.0
  %291 = vmatpush1.msra.mxu0 %v131
  %292 = vmatprep.subr.mxu0 0.0
  %293 = vmatpush1.msra.mxu0 %v130
  %294 = vmatprep.subr.mxu0 0.0
  %295 = vmatpush1.msra.mxu0 %v129
  %296 = vmatprep.subr.mxu0 0.0
  %297 = vmatpush1.msra.mxu0 %v128
  %298 = vmatprep.subr.mxu0 0.0
  %299 = vmatpush1.msra.mxu0 %v127
  %300 = vmatprep.subr.mxu0 0.0
  %301 = vmatpush2.msra.mxu0 %v158
  %302 = vmatprep.subr.mxu0 0.0
  %303 = vmatpush2.msra.mxu0 %v157
  %304 = vmatprep.subr.mxu0 0.0
  %305 = vmatpush2.msra.mxu0 %v156
  %306 = vmatprep.subr.mxu0 0.0
  %307 = vmatpush2.msra.mxu0 %v155
  %308 = vmatprep.subr.mxu0 0.0
  %309 = vmatpush2.msra.mxu0 %v154
  %310 = vmatprep.subr.mxu0 0.0
  %311 = vmatpush2.msra.mxu0 %v153
  %312 = vmatprep.subr.mxu0 0.0
  %313 = vmatpush2.msra.mxu0 %v152
  %314 = vmatprep.subr.mxu0 0.0
  %315 = vmatpush2.msra.mxu0 %v151
  %316 = vmatprep.subr.mxu0 0.0
  %317 = vmatpush2.msra.mxu0 %v150
  %318 = vmatprep.subr.mxu0 0.0
  %319 = vmatpush2.msra.mxu0 %v149
  %320 = vmatprep.subr.mxu0 0.0
  %321 = vmatpush2.msra.mxu0 %v148
  %322 = vmatprep.subr.mxu0 0.0
  %323 = vmatpush2.msra.mxu0 %v147
  %324 = vmatprep.subr.mxu0 0.0
  %325 = vmatpush2.msra.mxu0 %v146
  %326 = vmatprep.subr.mxu0 0.0
  %327 = vmatpush2.msra.mxu0 %v145
  %328 = vmatprep.subr.mxu0 0.0
  %329 = vmatpush2.msra.mxu0 %v144
  %330 = vmatprep.subr.mxu0 0.0
  %331 = vmatpush2.msra.mxu0 %v143
  %332 = vmatprep.mubr.f32.mxu0 %v86
  %333 = vmatmul.mubr.f32.gmra.mxu0 %v85
  %v334 = vpop.f32.mrf.mxu0
  %v335 = vadd.f32 %v260, %v334
  %v336 = vpop.f32.mrf.mxu0
  %337 = vmatprep.mubr.f32.mxu0 %v92
  %338 = vmatmul.mubr.f32.gmra.mxu0 %v91
  %v339 = vpop.f32.mrf.mxu0
  %v340 = vadd.f32 %v265, %v339
  %v341 = vpop.f32.mrf.mxu0
  %342 = vdwg.mxu0
  %343 = vmatprep.subr.mxu0 0.0
  %344 = vmatpush1.msra.mxu0 %v174
  %345 = vmatprep.subr.mxu0 0.0
  %346 = vmatpush1.msra.mxu0 %v173
  %347 = vmatprep.subr.mxu0 0.0
  %348 = vmatpush1.msra.mxu0 %v172
  %349 = vmatprep.subr.mxu0 0.0
  %350 = vmatpush1.msra.mxu0 %v171
  %351 = vmatprep.subr.mxu0 0.0
  %352 = vmatpush1.msra.mxu0 %v170
  %353 = vmatprep.subr.mxu0 0.0
  %354 = vmatpush1.msra.mxu0 %v169
  %355 = vmatprep.subr.mxu0 0.0
  %356 = vmatpush1.msra.mxu0 %v168
  %357 = vmatprep.subr.mxu0 0.0
  %358 = vmatpush1.msra.mxu0 %v167
  %359 = vmatprep.subr.mxu0 0.0
  %360 = vmatpush1.msra.mxu0 %v166
  %361 = vmatprep.subr.mxu0 0.0
  %362 = vmatpush1.msra.mxu0 %v165
  %363 = vmatprep.subr.mxu0 0.0
  %364 = vmatpush1.msra.mxu0 %v164
  %365 = vmatprep.subr.mxu0 0.0
  %366 = vmatpush1.msra.mxu0 %v163
  %367 = vmatprep.subr.mxu0 0.0
  %368 = vmatpush1.msra.mxu0 %v162
  %369 = vmatprep.subr.mxu0 0.0
  %370 = vmatpush1.msra.mxu0 %v161
  %371 = vmatprep.subr.mxu0 0.0
  %372 = vmatpush1.msra.mxu0 %v160
  %373 = vmatprep.subr.mxu0 0.0
  %374 = vmatpush1.msra.mxu0 %v159
  %375 = vmatprep.subr.mxu0 0.0
  %376 = vmatpush2.msra.mxu0 %v190
  %377 = vmatprep.subr.mxu0 0.0
  %378 = vmatpush2.msra.mxu0 %v189
  %379 = vmatprep.subr.mxu0 0.0
  %380 = vmatpush2.msra.mxu0 %v188
  %381 = vmatprep.subr.mxu0 0.0
  %382 = vmatpush2.msra.mxu0 %v187
  %383 = vmatprep.subr.mxu0 0.0
  %384 = vmatpush2.msra.mxu0 %v186
  %385 = vmatprep.subr.mxu0 0.0
  %386 = vmatpush2.msra.mxu0 %v185
  %387 = vmatprep.subr.mxu0 0.0
  %388 = vmatpush2.msra.mxu0 %v184
  %389 = vmatprep.subr.mxu0 0.0
  %390 = vmatpush2.msra.mxu0 %v183
  %391 = vmatprep.subr.mxu0 0.0
  %392 = vmatpush2.msra.mxu0 %v182
  %393 = vmatprep.subr.mxu0 0.0
  %394 = vmatpush2.msra.mxu0 %v181
  %395 = vmatprep.subr.mxu0 0.0
  %396 = vmatpush2.msra.mxu0 %v180
  %397 = vmatprep.subr.mxu0 0.0
  %398 = vmatpush2.msra.mxu0 %v179
  %399 = vmatprep.subr.mxu0 0.0
  %400 = vmatpush2.msra.mxu0 %v178
  %401 = vmatprep.subr.mxu0 0.0
  %402 = vmatpush2.msra.mxu0 %v177
  %403 = vmatprep.subr.mxu0 0.0
  %404 = vmatpush2.msra.mxu0 %v176
  %405 = vmatprep.subr.mxu0 0.0
  %406 = vmatpush2.msra.mxu0 %v175
  %407 = vmatprep.mubr.f32.mxu0 %v88
  %408 = vmatmul.mubr.f32.gmra.mxu0 %v87
  %v409 = vpop.f32.mrf.mxu0
  %v410 = vadd.f32 %v335, %v409
  %v411 = vpop.f32.mrf.mxu0
  %412 = vmatprep.mubr.f32.mxu0 %v94
  %413 = vmatmul.mubr.f32.gmra.mxu0 %v93
  %v414 = vpop.f32.mrf.mxu0
  %v415 = vadd.f32 %v340, %v414
  %v416 = vpop.f32.mrf.mxu0
  %417 = vdwg.mxu0
  %v418 = vld [vmem:[%s3] sm:$0xff]
  %v419 = vld [vmem:[%s3 + $0x8] sm:$0x3]
  %v420 = vld [vmem:[%s6] sm:$0x1]
  %v421 = vld [vmem:[%s7] sm:$0x1]
  %vm422 = vcmask 261120
  %v423 = vsel %vm422, %v410, 0.0
  %424 = vadd.xlane.f32.xlu0 %v423
  %v425 = vpop.xlane.xlu0 %424
  %vm426 = vcmask 254976
  %v427 = vsel %vm426, %v415, 0.0
  %428 = vadd.xlane.f32.xlu0 %v427
  %v429 = vpop.xlane.xlu0 %428
  %v430 = vrcp.pop 32.0
  %v431 = vmul.f32 %v425, %v430
  %v432 = vmul.f32 %v429, %v430
  %v433 = vsub.f32 %v410, %v431
  %v434 = vsub.f32 %v415, %v432
  %v435 = vmul.f32 %v433, %v433
  %v436 = vmul.f32 %v434, %v434
  %v437 = vsel %vm422, %v435, 0.0
  %438 = vadd.xlane.f32.xlu0 %v437
  %v439 = vpop.xlane.xlu0 %438
  %v440 = vsel %vm426, %v436, 0.0
  %441 = vadd.xlane.f32.xlu0 %v440
  %v442 = vpop.xlane.xlu0 %441
  %v443 = vmul.f32 %v439, %v430
  %v444 = vmul.f32 %v442, %v430
  %v445 = vadd.f32 %v443, 1e-06
  %v446 = vadd.f32 %v444, 1e-06
  %v447 = vrsqrt.pop %v445
  %v448 = vrsqrt.pop %v446
  %v449 = vmul.f32 %v433, %v447
  %v450 = vmul.f32 %v434, %v448
  %v452 = vlaneseq
  %v453 = vshrl.u32 %v452, 7
  %v454 = vsub.s32 0, %v453
  %v455 = vrot.slane %v420, %v454
  %v457 = vmul.f32 %v449, %v455
  %v458 = vmul.f32 %v450, %v455
  %v460 = vlaneseq
  %v461 = vshrl.u32 %v460, 7
  %v462 = vsub.s32 0, %v461
  %v463 = vrot.slane %v421, %v462
  %v465 = vadd.f32 %v457, %v463
  %v466 = vadd.f32 %v458, %v463
  %v467 = vld [vmem:[%s8] sm:$0xff]
  %v468 = vld [vmem:[%s8 + $0x8] sm:$0xff]
  %v469 = vld [vmem:[%s8 + $0x10] sm:$0xff]
  %v470 = vld [vmem:[%s8 + $0x18] sm:$0xff]
  %v471 = vld [vmem:[%s9] sm:$0x1]
  %v473 = vlaneseq
  %v474 = vshrl.u32 %v473, 7
  %v475 = vsub.s32 0, %v474
  %v476 = vrot.slane %v471, %v475
  %v479 = vsel %vm422, %v465, 0
  %v482 = vsel %vm422, %v466, 0
  %484 = vmatprep.subr.mxu0 0.0
  %485 = vmatpush1.msra.mxu0 0.0
  %486 = vmatprep.subr.mxu0 0.0
  %487 = vmatpush1.msra.mxu0 0.0
  %488 = vmatprep.subr.mxu0 0.0
  %489 = vmatpush1.msra.mxu0 0.0
  %490 = vmatprep.subr.mxu0 0.0
  %491 = vmatpush1.msra.mxu0 0.0
  %492 = vmatprep.subr.mxu0 0.0
  %493 = vmatpush1.msra.mxu0 0.0
  %494 = vmatprep.subr.mxu0 0.0
  %495 = vmatpush1.msra.mxu0 0.0
  %496 = vmatprep.subr.mxu0 0.0
  %497 = vmatpush1.msra.mxu0 0.0
  %498 = vmatprep.subr.mxu0 0.0
  %499 = vmatpush1.msra.mxu0 0.0
  %500 = vmatprep.subr.mxu0 0.0
  %501 = vmatpush1.msra.mxu0 0.0
  %502 = vmatprep.subr.mxu0 0.0
  %503 = vmatpush1.msra.mxu0 0.0
  %504 = vmatprep.subr.mxu0 0.0
  %505 = vmatpush1.msra.mxu0 0.0
  %506 = vmatprep.subr.mxu0 0.0
  %507 = vmatpush1.msra.mxu0 0.0
  %508 = vmatprep.subr.mxu0 0.0
  %509 = vmatpush1.msra.mxu0 %v470
  %510 = vmatprep.subr.mxu0 0.0
  %511 = vmatpush1.msra.mxu0 %v469
  %512 = vmatprep.subr.mxu0 0.0
  %513 = vmatpush1.msra.mxu0 %v468
  %514 = vmatprep.subr.mxu0 0.0
  %515 = vmatpush1.msra.mxu0 %v467
  %516 = vmatprep.subr.mxu0 0.0
  %517 = vmatpush2.msra.mxu0 0.0
  %518 = vmatprep.subr.mxu0 0.0
  %519 = vmatpush2.msra.mxu0 0.0
  %520 = vmatprep.subr.mxu0 0.0
  %521 = vmatpush2.msra.mxu0 0.0
  %522 = vmatprep.subr.mxu0 0.0
  %523 = vmatpush2.msra.mxu0 0.0
  %524 = vmatprep.subr.mxu0 0.0
  %525 = vmatpush2.msra.mxu0 0.0
  %526 = vmatprep.subr.mxu0 0.0
  %527 = vmatpush2.msra.mxu0 0.0
  %528 = vmatprep.subr.mxu0 0.0
  %529 = vmatpush2.msra.mxu0 0.0
  %530 = vmatprep.subr.mxu0 0.0
  %531 = vmatpush2.msra.mxu0 0.0
  %532 = vmatprep.subr.mxu0 0.0
  %533 = vmatpush2.msra.mxu0 0.0
  %534 = vmatprep.subr.mxu0 0.0
  %535 = vmatpush2.msra.mxu0 0.0
  %536 = vmatprep.subr.mxu0 0.0
  %537 = vmatpush2.msra.mxu0 0.0
  %538 = vmatprep.subr.mxu0 0.0
  %539 = vmatpush2.msra.mxu0 0.0
  %540 = vmatprep.subr.mxu0 0.0
  %541 = vmatpush2.msra.mxu0 0.0
  %542 = vmatprep.subr.mxu0 0.0
  %543 = vmatpush2.msra.mxu0 0.0
  %544 = vmatprep.subr.mxu0 0.0
  %545 = vmatpush2.msra.mxu0 0.0
  %546 = vmatprep.subr.mxu0 0.0
  %547 = vmatpush2.msra.mxu0 0.0
  %548 = vmatprep.mubr.f32.mxu0 0.0
  %549 = vmatmul.mubr.f32.gmra.mxu0 %v479
  %v550 = vpop.f32.mrf.mxu0
  %v551 = vadd.f32 %v476, %v550
  %v552 = vpop.f32.mrf.mxu0
  %553 = vmatprep.mubr.f32.mxu0 0.0
  %554 = vmatmul.mubr.f32.gmra.mxu0 %v482
  %v555 = vpop.f32.mrf.mxu0
  %v556 = vadd.f32 %v476, %v555
  %v557 = vpop.f32.mrf.mxu0
  %558 = vdwg.mxu0
  %v559 = vld [vmem:[%s10] sm:$0xff]
  %v560 = vld [vmem:[%s10 + $0x8] sm:$0xff]
  %v561 = vld [vmem:[%s10 + $0x10] sm:$0xff]
  %v562 = vld [vmem:[%s10 + $0x18] sm:$0xff]
  %v563 = vld [vmem:[%s11] sm:$0x1]
  %v565 = vlaneseq
  %v566 = vshrl.u32 %v565, 7
  %v567 = vsub.s32 0, %v566
  %v568 = vrot.slane %v563, %v567
  %570 = vmatprep.subr.mxu0 0.0
  %571 = vmatpush1.msra.mxu0 0.0
  %572 = vmatprep.subr.mxu0 0.0
  %573 = vmatpush1.msra.mxu0 0.0
  %574 = vmatprep.subr.mxu0 0.0
  %575 = vmatpush1.msra.mxu0 0.0
  %576 = vmatprep.subr.mxu0 0.0
  %577 = vmatpush1.msra.mxu0 0.0
  %578 = vmatprep.subr.mxu0 0.0
  %579 = vmatpush1.msra.mxu0 0.0
  %580 = vmatprep.subr.mxu0 0.0
  %581 = vmatpush1.msra.mxu0 0.0
  %582 = vmatprep.subr.mxu0 0.0
  %583 = vmatpush1.msra.mxu0 0.0
  %584 = vmatprep.subr.mxu0 0.0
  %585 = vmatpush1.msra.mxu0 0.0
  %586 = vmatprep.subr.mxu0 0.0
  %587 = vmatpush1.msra.mxu0 0.0
  %588 = vmatprep.subr.mxu0 0.0
  %589 = vmatpush1.msra.mxu0 0.0
  %590 = vmatprep.subr.mxu0 0.0
  %591 = vmatpush1.msra.mxu0 0.0
  %592 = vmatprep.subr.mxu0 0.0
  %593 = vmatpush1.msra.mxu0 0.0
  %594 = vmatprep.subr.mxu0 0.0
  %595 = vmatpush1.msra.mxu0 %v562
  %596 = vmatprep.subr.mxu0 0.0
  %597 = vmatpush1.msra.mxu0 %v561
  %598 = vmatprep.subr.mxu0 0.0
  %599 = vmatpush1.msra.mxu0 %v560
  %600 = vmatprep.subr.mxu0 0.0
  %601 = vmatpush1.msra.mxu0 %v559
  %602 = vmatprep.subr.mxu0 0.0
  %603 = vmatpush2.msra.mxu0 0.0
  %604 = vmatprep.subr.mxu0 0.0
  %605 = vmatpush2.msra.mxu0 0.0
  %606 = vmatprep.subr.mxu0 0.0
  %607 = vmatpush2.msra.mxu0 0.0
  %608 = vmatprep.subr.mxu0 0.0
  %609 = vmatpush2.msra.mxu0 0.0
  %610 = vmatprep.subr.mxu0 0.0
  %611 = vmatpush2.msra.mxu0 0.0
  %612 = vmatprep.subr.mxu0 0.0
  %613 = vmatpush2.msra.mxu0 0.0
  %614 = vmatprep.subr.mxu0 0.0
  %615 = vmatpush2.msra.mxu0 0.0
  %616 = vmatprep.subr.mxu0 0.0
  %617 = vmatpush2.msra.mxu0 0.0
  %618 = vmatprep.subr.mxu0 0.0
  %619 = vmatpush2.msra.mxu0 0.0
  %620 = vmatprep.subr.mxu0 0.0
  %621 = vmatpush2.msra.mxu0 0.0
  %622 = vmatprep.subr.mxu0 0.0
  %623 = vmatpush2.msra.mxu0 0.0
  %624 = vmatprep.subr.mxu0 0.0
  %625 = vmatpush2.msra.mxu0 0.0
  %626 = vmatprep.subr.mxu0 0.0
  %627 = vmatpush2.msra.mxu0 0.0
  %628 = vmatprep.subr.mxu0 0.0
  %629 = vmatpush2.msra.mxu0 0.0
  %630 = vmatprep.subr.mxu0 0.0
  %631 = vmatpush2.msra.mxu0 0.0
  %632 = vmatprep.subr.mxu0 0.0
  %633 = vmatpush2.msra.mxu0 0.0
  %634 = vmatprep.mubr.f32.mxu0 0.0
  %635 = vmatmul.mubr.f32.gmra.mxu0 %v479
  %v636 = vpop.f32.mrf.mxu0
  %v637 = vadd.f32 %v568, %v636
  %v638 = vpop.f32.mrf.mxu0
  %639 = vmatprep.mubr.f32.mxu0 0.0
  %640 = vmatmul.mubr.f32.gmra.mxu0 %v482
  %v641 = vpop.f32.mrf.mxu0
  %v642 = vadd.f32 %v568, %v641
  %v643 = vpop.f32.mrf.mxu0
  %644 = vdwg.mxu0
  %v645 = vld [vmem:[%s12] sm:$0xff]
  %v646 = vld [vmem:[%s12 + $0x8] sm:$0xff]
  %v647 = vld [vmem:[%s12 + $0x10] sm:$0xff]
  %v648 = vld [vmem:[%s12 + $0x18] sm:$0xff]
  %v649 = vld [vmem:[%s13] sm:$0x1]
  %v651 = vlaneseq
  %v652 = vshrl.u32 %v651, 7
  %v653 = vsub.s32 0, %v652
  %v654 = vrot.slane %v649, %v653
  %656 = vmatprep.subr.mxu0 0.0
  %657 = vmatpush1.msra.mxu0 0.0
  %658 = vmatprep.subr.mxu0 0.0
  %659 = vmatpush1.msra.mxu0 0.0
  %660 = vmatprep.subr.mxu0 0.0
  %661 = vmatpush1.msra.mxu0 0.0
  %662 = vmatprep.subr.mxu0 0.0
  %663 = vmatpush1.msra.mxu0 0.0
  %664 = vmatprep.subr.mxu0 0.0
  %665 = vmatpush1.msra.mxu0 0.0
  %666 = vmatprep.subr.mxu0 0.0
  %667 = vmatpush1.msra.mxu0 0.0
  %668 = vmatprep.subr.mxu0 0.0
  %669 = vmatpush1.msra.mxu0 0.0
  %670 = vmatprep.subr.mxu0 0.0
  %671 = vmatpush1.msra.mxu0 0.0
  %672 = vmatprep.subr.mxu0 0.0
  %673 = vmatpush1.msra.mxu0 0.0
  %674 = vmatprep.subr.mxu0 0.0
  %675 = vmatpush1.msra.mxu0 0.0
  %676 = vmatprep.subr.mxu0 0.0
  %677 = vmatpush1.msra.mxu0 0.0
  %678 = vmatprep.subr.mxu0 0.0
  %679 = vmatpush1.msra.mxu0 0.0
  %680 = vmatprep.subr.mxu0 0.0
  %681 = vmatpush1.msra.mxu0 %v648
  %682 = vmatprep.subr.mxu0 0.0
  %683 = vmatpush1.msra.mxu0 %v647
  %684 = vmatprep.subr.mxu0 0.0
  %685 = vmatpush1.msra.mxu0 %v646
  %686 = vmatprep.subr.mxu0 0.0
  %687 = vmatpush1.msra.mxu0 %v645
  %688 = vmatprep.subr.mxu0 0.0
  %689 = vmatpush2.msra.mxu0 0.0
  %690 = vmatprep.subr.mxu0 0.0
  %691 = vmatpush2.msra.mxu0 0.0
  %692 = vmatprep.subr.mxu0 0.0
  %693 = vmatpush2.msra.mxu0 0.0
  %694 = vmatprep.subr.mxu0 0.0
  %695 = vmatpush2.msra.mxu0 0.0
  %696 = vmatprep.subr.mxu0 0.0
  %697 = vmatpush2.msra.mxu0 0.0
  %698 = vmatprep.subr.mxu0 0.0
  %699 = vmatpush2.msra.mxu0 0.0
  %700 = vmatprep.subr.mxu0 0.0
  %701 = vmatpush2.msra.mxu0 0.0
  %702 = vmatprep.subr.mxu0 0.0
  %703 = vmatpush2.msra.mxu0 0.0
  %704 = vmatprep.subr.mxu0 0.0
  %705 = vmatpush2.msra.mxu0 0.0
  %706 = vmatprep.subr.mxu0 0.0
  %707 = vmatpush2.msra.mxu0 0.0
  %708 = vmatprep.subr.mxu0 0.0
  %709 = vmatpush2.msra.mxu0 0.0
  %710 = vmatprep.subr.mxu0 0.0
  %711 = vmatpush2.msra.mxu0 0.0
  %712 = vmatprep.subr.mxu0 0.0
  %713 = vmatpush2.msra.mxu0 0.0
  %714 = vmatprep.subr.mxu0 0.0
  %715 = vmatpush2.msra.mxu0 0.0
  %716 = vmatprep.subr.mxu0 0.0
  %717 = vmatpush2.msra.mxu0 0.0
  %718 = vmatprep.subr.mxu0 0.0
  %719 = vmatpush2.msra.mxu0 0.0
  %720 = vmatprep.mubr.f32.mxu0 0.0
  %721 = vmatmul.mubr.f32.gmra.mxu0 %v479
  %v722 = vpop.f32.mrf.mxu0
  %v723 = vadd.f32 %v654, %v722
  %v724 = vpop.f32.mrf.mxu0
  %725 = vmatprep.mubr.f32.mxu0 0.0
  %726 = vmatmul.mubr.f32.gmra.mxu0 %v482
  %v727 = vpop.f32.mrf.mxu0
  %v728 = vadd.f32 %v654, %v727
  %v729 = vpop.f32.mrf.mxu0
  %730 = vdwg.mxu0
  %v731 = vld [vmem:[%s4] sm:$0x1]
  %v733 = vlaneseq
  %v734 = vshrl.u32 %v733, 7
  %v735 = vsub.s32 0, %v734
  %v736 = vrot.slane %v731, %v735
  %v738 = vmul.f32 %v551, %v736
  %v739 = vmul.f32 %v556, %v736
  %v741 = vsel %vm422, %v738, 0
  %v744 = vsel %vm422, %v739, 0
  %v747 = vsel %vm422, %v637, 0
  %v750 = vsel %vm422, %v642, 0
  %752 = vmatprep.subr.mxu0 0.0
  %753 = vmatpush1.xpose.msra.mxu0 0.0
  %754 = vmatprep.subr.mxu0 0.0
  %755 = vmatpush1.xpose.msra.mxu0 0.0
  %756 = vmatprep.subr.mxu0 0.0
  %757 = vmatpush1.xpose.msra.mxu0 0.0
  %758 = vmatprep.subr.mxu0 0.0
  %759 = vmatpush1.xpose.msra.mxu0 0.0
  %760 = vmatprep.subr.mxu0 0.0
  %761 = vmatpush1.xpose.msra.mxu0 0.0
  %762 = vmatprep.subr.mxu0 0.0
  %763 = vmatpush1.xpose.msra.mxu0 0.0
  %764 = vmatprep.subr.mxu0 0.0
  %765 = vmatpush1.xpose.msra.mxu0 0.0
  %766 = vmatprep.subr.mxu0 0.0
  %767 = vmatpush1.xpose.msra.mxu0 0.0
  %768 = vmatprep.subr.mxu0 0.0
  %769 = vmatpush1.xpose.msra.mxu0 0.0
  %770 = vmatprep.subr.mxu0 0.0
  %771 = vmatpush1.xpose.msra.mxu0 0.0
  %772 = vmatprep.subr.mxu0 0.0
  %773 = vmatpush1.xpose.msra.mxu0 0.0
  %774 = vmatprep.subr.mxu0 0.0
  %775 = vmatpush1.xpose.msra.mxu0 0.0
  %776 = vmatprep.subr.mxu0 0.0
  %777 = vmatpush1.xpose.msra.mxu0 0.0
  %778 = vmatprep.subr.mxu0 0.0
  %779 = vmatpush1.xpose.msra.mxu0 0.0
  %780 = vmatprep.subr.mxu0 0.0
  %781 = vmatpush1.xpose.msra.mxu0 %v750
  %782 = vmatprep.subr.mxu0 0.0
  %783 = vmatpush1.xpose.msra.mxu0 %v747
  %784 = vmatprep.subr.mxu0 0.0
  %785 = vmatpush2.xpose.msra.mxu0 0.0
  %786 = vmatprep.subr.mxu0 0.0
  %787 = vmatpush2.xpose.msra.mxu0 0.0
  %788 = vmatprep.subr.mxu0 0.0
  %789 = vmatpush2.xpose.msra.mxu0 0.0
  %790 = vmatprep.subr.mxu0 0.0
  %791 = vmatpush2.xpose.msra.mxu0 0.0
  %792 = vmatprep.subr.mxu0 0.0
  %793 = vmatpush2.xpose.msra.mxu0 0.0
  %794 = vmatprep.subr.mxu0 0.0
  %795 = vmatpush2.xpose.msra.mxu0 0.0
  %796 = vmatprep.subr.mxu0 0.0
  %797 = vmatpush2.xpose.msra.mxu0 0.0
  %798 = vmatprep.subr.mxu0 0.0
  %799 = vmatpush2.xpose.msra.mxu0 0.0
  %800 = vmatprep.subr.mxu0 0.0
  %801 = vmatpush2.xpose.msra.mxu0 0.0
  %802 = vmatprep.subr.mxu0 0.0
  %803 = vmatpush2.xpose.msra.mxu0 0.0
  %804 = vmatprep.subr.mxu0 0.0
  %805 = vmatpush2.xpose.msra.mxu0 0.0
  %806 = vmatprep.subr.mxu0 0.0
  %807 = vmatpush2.xpose.msra.mxu0 0.0
  %808 = vmatprep.subr.mxu0 0.0
  %809 = vmatpush2.xpose.msra.mxu0 0.0
  %810 = vmatprep.subr.mxu0 0.0
  %811 = vmatpush2.xpose.msra.mxu0 0.0
  %812 = vmatprep.subr.mxu0 0.0
  %813 = vmatpush2.xpose.msra.mxu0 0.0
  %814 = vmatprep.subr.mxu0 0.0
  %815 = vmatpush2.xpose.msra.mxu0 0.0
  %816 = vmatprep.mubr.f32.mxu0 0.0
  %817 = vmatmul.mubr.f32.gmra.mxu0 %v741
  %v818 = vpop.f32.mrf.mxu0
  %v819 = vadd.f32 0.0, %v818
  %v820 = vpop.f32.mrf.mxu0
  %821 = vmatprep.mubr.f32.mxu0 0.0
  %822 = vmatmul.mubr.f32.gmra.mxu0 %v744
  %v823 = vpop.f32.mrf.mxu0
  %v824 = vadd.f32 0.0, %v823
  %v825 = vpop.f32.mrf.mxu0
  %826 = vdwg.mxu0
  %v827 = vmul.f32 %v819, 0.25
  %v828 = vmul.f32 %v824, 0.25
  %v829 = vadd.f32 %v827, %v418
  %v830 = vadd.f32 %v828, %v419
  %vm831 = vcmask 80896
  %v832 = vsel %vm831, %v829, -inf
  %833 = vmax.xlane.f32.xlu0 %v832
  %v834 = vpop.xlane.xlu0 %833
  %vm835 = vcmask 74752
  %v836 = vsel %vm835, %v830, -inf
  %837 = vmax.xlane.f32.xlu0 %v836
  %v838 = vpop.xlane.xlu0 %837
  %v839 = vsub.f32 %v829, %v834
  %v840 = vsub.f32 %v830, %v838
  %v841 = vmul.f32 %v839, 1.442695
  %v842 = vpow.pop %v841
  %v843 = vmul.f32 %v840, 1.442695
  %v844 = vpow.pop %v843
  %v845 = vsel %vm831, %v842, 0.0
  %846 = vadd.xlane.f32.xlu0 %v845
  %v847 = vpop.xlane.xlu0 %846
  %v848 = vsel %vm835, %v844, 0.0
  %849 = vadd.xlane.f32.xlu0 %v848
  %v850 = vpop.xlane.xlu0 %849
  %v851 = vrcp.pop %v847
  %v852 = vrcp.pop %v850
  %v853 = vmul.f32 %v842, %v851
  %v854 = vmul.f32 %v844, %v852
  %v855 = vmul.f32 %v723, %v736
  %v856 = vmul.f32 %v728, %v736
  %s857 = scalar_lea.vmem %s4, 1
  %v858 = vld [vmem:[%s857] sm:$0x1]
  %v860 = vlaneseq
  %v861 = vshrl.u32 %v860, 7
  %v862 = vsub.s32 0, %v861
  %v863 = vrot.slane %v858, %v862
  %v865 = vmul.f32 %v551, %v863
  %v866 = vmul.f32 %v556, %v863
  %v868 = vsel %vm422, %v865, 0
  %v871 = vsel %vm422, %v866, 0
  %873 = vmatprep.subr.mxu0 0.0
  %874 = vmatpush1.xpose.msra.mxu0 0.0
  %875 = vmatprep.subr.mxu0 0.0
  %876 = vmatpush1.xpose.msra.mxu0 0.0
  %877 = vmatprep.subr.mxu0 0.0
  %878 = vmatpush1.xpose.msra.mxu0 0.0
  %879 = vmatprep.subr.mxu0 0.0
  %880 = vmatpush1.xpose.msra.mxu0 0.0
  %881 = vmatprep.subr.mxu0 0.0
  %882 = vmatpush1.xpose.msra.mxu0 0.0
  %883 = vmatprep.subr.mxu0 0.0
  %884 = vmatpush1.xpose.msra.mxu0 0.0
  %885 = vmatprep.subr.mxu0 0.0
  %886 = vmatpush1.xpose.msra.mxu0 0.0
  %887 = vmatprep.subr.mxu0 0.0
  %888 = vmatpush1.xpose.msra.mxu0 0.0
  %889 = vmatprep.subr.mxu0 0.0
  %890 = vmatpush1.xpose.msra.mxu0 0.0
  %891 = vmatprep.subr.mxu0 0.0
  %892 = vmatpush1.xpose.msra.mxu0 0.0
  %893 = vmatprep.subr.mxu0 0.0
  %894 = vmatpush1.xpose.msra.mxu0 0.0
  %895 = vmatprep.subr.mxu0 0.0
  %896 = vmatpush1.xpose.msra.mxu0 0.0
  %897 = vmatprep.subr.mxu0 0.0
  %898 = vmatpush1.xpose.msra.mxu0 0.0
  %899 = vmatprep.subr.mxu0 0.0
  %900 = vmatpush1.xpose.msra.mxu0 0.0
  %901 = vmatprep.subr.mxu0 0.0
  %902 = vmatpush1.xpose.msra.mxu0 %v750
  %903 = vmatprep.subr.mxu0 0.0
  %904 = vmatpush1.xpose.msra.mxu0 %v747
  %905 = vmatprep.subr.mxu0 0.0
  %906 = vmatpush2.xpose.msra.mxu0 0.0
  %907 = vmatprep.subr.mxu0 0.0
  %908 = vmatpush2.xpose.msra.mxu0 0.0
  %909 = vmatprep.subr.mxu0 0.0
  %910 = vmatpush2.xpose.msra.mxu0 0.0
  %911 = vmatprep.subr.mxu0 0.0
  %912 = vmatpush2.xpose.msra.mxu0 0.0
  %913 = vmatprep.subr.mxu0 0.0
  %914 = vmatpush2.xpose.msra.mxu0 0.0
  %915 = vmatprep.subr.mxu0 0.0
  %916 = vmatpush2.xpose.msra.mxu0 0.0
  %917 = vmatprep.subr.mxu0 0.0
  %918 = vmatpush2.xpose.msra.mxu0 0.0
  %919 = vmatprep.subr.mxu0 0.0
  %920 = vmatpush2.xpose.msra.mxu0 0.0
  %921 = vmatprep.subr.mxu0 0.0
  %922 = vmatpush2.xpose.msra.mxu0 0.0
  %923 = vmatprep.subr.mxu0 0.0
  %924 = vmatpush2.xpose.msra.mxu0 0.0
  %925 = vmatprep.subr.mxu0 0.0
  %926 = vmatpush2.xpose.msra.mxu0 0.0
  %927 = vmatprep.subr.mxu0 0.0
  %928 = vmatpush2.xpose.msra.mxu0 0.0
  %929 = vmatprep.subr.mxu0 0.0
  %930 = vmatpush2.xpose.msra.mxu0 0.0
  %931 = vmatprep.subr.mxu0 0.0
  %932 = vmatpush2.xpose.msra.mxu0 0.0
  %933 = vmatprep.subr.mxu0 0.0
  %934 = vmatpush2.xpose.msra.mxu0 0.0
  %935 = vmatprep.subr.mxu0 0.0
  %936 = vmatpush2.xpose.msra.mxu0 0.0
  %937 = vmatprep.mubr.f32.mxu0 0.0
  %938 = vmatmul.mubr.f32.gmra.mxu0 %v868
  %v939 = vpop.f32.mrf.mxu0
  %v940 = vadd.f32 0.0, %v939
  %v941 = vpop.f32.mrf.mxu0
  %942 = vmatprep.mubr.f32.mxu0 0.0
  %943 = vmatmul.mubr.f32.gmra.mxu0 %v871
  %v944 = vpop.f32.mrf.mxu0
  %v945 = vadd.f32 0.0, %v944
  %v946 = vpop.f32.mrf.mxu0
  %947 = vdwg.mxu0
  %v948 = vmul.f32 %v940, 0.25
  %v949 = vmul.f32 %v945, 0.25
  %v950 = vadd.f32 %v948, %v418
  %v951 = vadd.f32 %v949, %v419
  %v952 = vsel %vm831, %v950, -inf
  %953 = vmax.xlane.f32.xlu0 %v952
  %v954 = vpop.xlane.xlu0 %953
  %v955 = vsel %vm835, %v951, -inf
  %956 = vmax.xlane.f32.xlu0 %v955
  %v957 = vpop.xlane.xlu0 %956
  %v958 = vsub.f32 %v950, %v954
  %v959 = vsub.f32 %v951, %v957
  %v960 = vmul.f32 %v958, 1.442695
  %v961 = vpow.pop %v960
  %v962 = vmul.f32 %v959, 1.442695
  %v963 = vpow.pop %v962
  %v964 = vsel %vm831, %v961, 0.0
  %965 = vadd.xlane.f32.xlu0 %v964
  %v966 = vpop.xlane.xlu0 %965
  %v967 = vsel %vm835, %v963, 0.0
  %968 = vadd.xlane.f32.xlu0 %v967
  %v969 = vpop.xlane.xlu0 %968
  %v970 = vrcp.pop %v966
  %v971 = vrcp.pop %v969
  %v972 = vmul.f32 %v961, %v970
  %v973 = vmul.f32 %v963, %v971
  %v974 = vmul.f32 %v723, %v863
  %v975 = vmul.f32 %v728, %v863
  %v977 = vsel %vm831, %v972, 0
  %v980 = vsel %vm831, %v973, 0
  %vm982 = vcmask 1041408
  %v984 = vsel %vm982, %v975, 0
  %986 = vmatprep.subr.mxu0 0.0
  %987 = vmatpush1.msra.mxu0 0.0
  %988 = vmatprep.subr.mxu0 0.0
  %989 = vmatpush1.msra.mxu0 0.0
  %990 = vmatprep.subr.mxu0 0.0
  %991 = vmatpush1.msra.mxu0 0.0
  %992 = vmatprep.subr.mxu0 0.0
  %993 = vmatpush1.msra.mxu0 0.0
  %994 = vmatprep.subr.mxu0 0.0
  %995 = vmatpush1.msra.mxu0 0.0
  %996 = vmatprep.subr.mxu0 0.0
  %997 = vmatpush1.msra.mxu0 0.0
  %998 = vmatprep.subr.mxu0 0.0
  %999 = vmatpush1.msra.mxu0 0.0
  %1000 = vmatprep.subr.mxu0 0.0
  %1001 = vmatpush1.msra.mxu0 0.0
  %1002 = vmatprep.subr.mxu0 0.0
  %1003 = vmatpush1.msra.mxu0 0.0
  %1004 = vmatprep.subr.mxu0 0.0
  %1005 = vmatpush1.msra.mxu0 0.0
  %1006 = vmatprep.subr.mxu0 0.0
  %1007 = vmatpush1.msra.mxu0 0.0
  %1008 = vmatprep.subr.mxu0 0.0
  %1009 = vmatpush1.msra.mxu0 0.0
  %1010 = vmatprep.subr.mxu0 0.0
  %1011 = vmatpush1.msra.mxu0 0.0
  %1012 = vmatprep.subr.mxu0 0.0
  %1013 = vmatpush1.msra.mxu0 0.0
  %1014 = vmatprep.subr.mxu0 0.0
  %1015 = vmatpush1.msra.mxu0 %v984
  %1016 = vmatprep.subr.mxu0 0.0
  %1017 = vmatpush1.msra.mxu0 %v974
  %1018 = vmatprep.subr.mxu0 0.0
  %1019 = vmatpush2.msra.mxu0 0.0
  %1020 = vmatprep.subr.mxu0 0.0
  %1021 = vmatpush2.msra.mxu0 0.0
  %1022 = vmatprep.subr.mxu0 0.0
  %1023 = vmatpush2.msra.mxu0 0.0
  %1024 = vmatprep.subr.mxu0 0.0
  %1025 = vmatpush2.msra.mxu0 0.0
  %1026 = vmatprep.subr.mxu0 0.0
  %1027 = vmatpush2.msra.mxu0 0.0
  %1028 = vmatprep.subr.mxu0 0.0
  %1029 = vmatpush2.msra.mxu0 0.0
  %1030 = vmatprep.subr.mxu0 0.0
  %1031 = vmatpush2.msra.mxu0 0.0
  %1032 = vmatprep.subr.mxu0 0.0
  %1033 = vmatpush2.msra.mxu0 0.0
  %1034 = vmatprep.subr.mxu0 0.0
  %1035 = vmatpush2.msra.mxu0 0.0
  %1036 = vmatprep.subr.mxu0 0.0
  %1037 = vmatpush2.msra.mxu0 0.0
  %1038 = vmatprep.subr.mxu0 0.0
  %1039 = vmatpush2.msra.mxu0 0.0
  %1040 = vmatprep.subr.mxu0 0.0
  %1041 = vmatpush2.msra.mxu0 0.0
  %1042 = vmatprep.subr.mxu0 0.0
  %1043 = vmatpush2.msra.mxu0 0.0
  %1044 = vmatprep.subr.mxu0 0.0
  %1045 = vmatpush2.msra.mxu0 0.0
  %1046 = vmatprep.subr.mxu0 0.0
  %1047 = vmatpush2.msra.mxu0 0.0
  %1048 = vmatprep.subr.mxu0 0.0
  %1049 = vmatpush2.msra.mxu0 0.0
  %1050 = vmatprep.mubr.f32.mxu0 0.0
  %1051 = vmatmul.mubr.f32.gmra.mxu0 %v977
  %v1052 = vpop.f32.mrf.mxu0
  %v1053 = vadd.f32 0.0, %v1052
  %v1054 = vpop.f32.mrf.mxu0
  %1055 = vmatprep.mubr.f32.mxu0 0.0
  %1056 = vmatmul.mubr.f32.gmra.mxu0 %v980
  %v1057 = vpop.f32.mrf.mxu0
  %v1058 = vadd.f32 0.0, %v1057
  %v1059 = vpop.f32.mrf.mxu0
  %1060 = vdwg.mxu0
  %v1062 = vsel %vm831, %v853, 0
  %v1065 = vsel %vm831, %v854, 0
  %v1068 = vsel %vm982, %v856, 0
  %1070 = vmatprep.subr.mxu0 0.0
  %1071 = vmatpush1.msra.mxu0 0.0
  %1072 = vmatprep.subr.mxu0 0.0
  %1073 = vmatpush1.msra.mxu0 0.0
  %1074 = vmatprep.subr.mxu0 0.0
  %1075 = vmatpush1.msra.mxu0 0.0
  %1076 = vmatprep.subr.mxu0 0.0
  %1077 = vmatpush1.msra.mxu0 0.0
  %1078 = vmatprep.subr.mxu0 0.0
  %1079 = vmatpush1.msra.mxu0 0.0
  %1080 = vmatprep.subr.mxu0 0.0
  %1081 = vmatpush1.msra.mxu0 0.0
  %1082 = vmatprep.subr.mxu0 0.0
  %1083 = vmatpush1.msra.mxu0 0.0
  %1084 = vmatprep.subr.mxu0 0.0
  %1085 = vmatpush1.msra.mxu0 0.0
  %1086 = vmatprep.subr.mxu0 0.0
  %1087 = vmatpush1.msra.mxu0 0.0
  %1088 = vmatprep.subr.mxu0 0.0
  %1089 = vmatpush1.msra.mxu0 0.0
  %1090 = vmatprep.subr.mxu0 0.0
  %1091 = vmatpush1.msra.mxu0 0.0
  %1092 = vmatprep.subr.mxu0 0.0
  %1093 = vmatpush1.msra.mxu0 0.0
  %1094 = vmatprep.subr.mxu0 0.0
  %1095 = vmatpush1.msra.mxu0 0.0
  %1096 = vmatprep.subr.mxu0 0.0
  %1097 = vmatpush1.msra.mxu0 0.0
  %1098 = vmatprep.subr.mxu0 0.0
  %1099 = vmatpush1.msra.mxu0 %v1068
  %1100 = vmatprep.subr.mxu0 0.0
  %1101 = vmatpush1.msra.mxu0 %v855
  %1102 = vmatprep.subr.mxu0 0.0
  %1103 = vmatpush2.msra.mxu0 0.0
  %1104 = vmatprep.subr.mxu0 0.0
  %1105 = vmatpush2.msra.mxu0 0.0
  %1106 = vmatprep.subr.mxu0 0.0
  %1107 = vmatpush2.msra.mxu0 0.0
  %1108 = vmatprep.subr.mxu0 0.0
  %1109 = vmatpush2.msra.mxu0 0.0
  %1110 = vmatprep.subr.mxu0 0.0
  %1111 = vmatpush2.msra.mxu0 0.0
  %1112 = vmatprep.subr.mxu0 0.0
  %1113 = vmatpush2.msra.mxu0 0.0
  %1114 = vmatprep.subr.mxu0 0.0
  %1115 = vmatpush2.msra.mxu0 0.0
  %1116 = vmatprep.subr.mxu0 0.0
  %1117 = vmatpush2.msra.mxu0 0.0
  %1118 = vmatprep.subr.mxu0 0.0
  %1119 = vmatpush2.msra.mxu0 0.0
  %1120 = vmatprep.subr.mxu0 0.0
  %1121 = vmatpush2.msra.mxu0 0.0
  %1122 = vmatprep.subr.mxu0 0.0
  %1123 = vmatpush2.msra.mxu0 0.0
  %1124 = vmatprep.subr.mxu0 0.0
  %1125 = vmatpush2.msra.mxu0 0.0
  %1126 = vmatprep.subr.mxu0 0.0
  %1127 = vmatpush2.msra.mxu0 0.0
  %1128 = vmatprep.subr.mxu0 0.0
  %1129 = vmatpush2.msra.mxu0 0.0
  %1130 = vmatprep.subr.mxu0 0.0
  %1131 = vmatpush2.msra.mxu0 0.0
  %1132 = vmatprep.subr.mxu0 0.0
  %1133 = vmatpush2.msra.mxu0 0.0
  %1134 = vmatprep.mubr.f32.mxu0 0.0
  %1135 = vmatmul.mubr.f32.gmra.mxu0 %v1062
  %v1136 = vpop.f32.mrf.mxu0
  %v1137 = vadd.f32 %v1053, %v1136
  %v1138 = vpop.f32.mrf.mxu0
  %1139 = vmatprep.mubr.f32.mxu0 0.0
  %1140 = vmatmul.mubr.f32.gmra.mxu0 %v1065
  %v1141 = vpop.f32.mrf.mxu0
  %v1142 = vadd.f32 %v1058, %v1141
  %v1143 = vpop.f32.mrf.mxu0
  %1144 = vdwg.mxu0
  %v1145 = vld [vmem:[%s14] sm:$0xff]
  %v1146 = vld [vmem:[%s14 + $0x8] sm:$0xff]
  %v1147 = vld [vmem:[%s14 + $0x10] sm:$0xff]
  %v1148 = vld [vmem:[%s14 + $0x18] sm:$0xff]
  %v1150 = vsel %vm422, %v1137, 0
  %v1153 = vsel %vm422, %v1142, 0
  %1155 = vmatprep.subr.mxu0 0.0
  %1156 = vmatpush1.msra.mxu0 0.0
  %1157 = vmatprep.subr.mxu0 0.0
  %1158 = vmatpush1.msra.mxu0 0.0
  %1159 = vmatprep.subr.mxu0 0.0
  %1160 = vmatpush1.msra.mxu0 0.0
  %1161 = vmatprep.subr.mxu0 0.0
  %1162 = vmatpush1.msra.mxu0 0.0
  %1163 = vmatprep.subr.mxu0 0.0
  %1164 = vmatpush1.msra.mxu0 0.0
  %1165 = vmatprep.subr.mxu0 0.0
  %1166 = vmatpush1.msra.mxu0 0.0
  %1167 = vmatprep.subr.mxu0 0.0
  %1168 = vmatpush1.msra.mxu0 0.0
  %1169 = vmatprep.subr.mxu0 0.0
  %1170 = vmatpush1.msra.mxu0 0.0
  %1171 = vmatprep.subr.mxu0 0.0
  %1172 = vmatpush1.msra.mxu0 0.0
  %1173 = vmatprep.subr.mxu0 0.0
  %1174 = vmatpush1.msra.mxu0 0.0
  %1175 = vmatprep.subr.mxu0 0.0
  %1176 = vmatpush1.msra.mxu0 0.0
  %1177 = vmatprep.subr.mxu0 0.0
  %1178 = vmatpush1.msra.mxu0 0.0
  %1179 = vmatprep.subr.mxu0 0.0
  %1180 = vmatpush1.msra.mxu0 %v1148
  %1181 = vmatprep.subr.mxu0 0.0
  %1182 = vmatpush1.msra.mxu0 %v1147
  %1183 = vmatprep.subr.mxu0 0.0
  %1184 = vmatpush1.msra.mxu0 %v1146
  %1185 = vmatprep.subr.mxu0 0.0
  %1186 = vmatpush1.msra.mxu0 %v1145
  %1187 = vmatprep.subr.mxu0 0.0
  %1188 = vmatpush2.msra.mxu0 0.0
  %1189 = vmatprep.subr.mxu0 0.0
  %1190 = vmatpush2.msra.mxu0 0.0
  %1191 = vmatprep.subr.mxu0 0.0
  %1192 = vmatpush2.msra.mxu0 0.0
  %1193 = vmatprep.subr.mxu0 0.0
  %1194 = vmatpush2.msra.mxu0 0.0
  %1195 = vmatprep.subr.mxu0 0.0
  %1196 = vmatpush2.msra.mxu0 0.0
  %1197 = vmatprep.subr.mxu0 0.0
  %1198 = vmatpush2.msra.mxu0 0.0
  %1199 = vmatprep.subr.mxu0 0.0
  %1200 = vmatpush2.msra.mxu0 0.0
  %1201 = vmatprep.subr.mxu0 0.0
  %1202 = vmatpush2.msra.mxu0 0.0
  %1203 = vmatprep.subr.mxu0 0.0
  %1204 = vmatpush2.msra.mxu0 0.0
  %1205 = vmatprep.subr.mxu0 0.0
  %1206 = vmatpush2.msra.mxu0 0.0
  %1207 = vmatprep.subr.mxu0 0.0
  %1208 = vmatpush2.msra.mxu0 0.0
  %1209 = vmatprep.subr.mxu0 0.0
  %1210 = vmatpush2.msra.mxu0 0.0
  %1211 = vmatprep.subr.mxu0 0.0
  %1212 = vmatpush2.msra.mxu0 0.0
  %1213 = vmatprep.subr.mxu0 0.0
  %1214 = vmatpush2.msra.mxu0 0.0
  %1215 = vmatprep.subr.mxu0 0.0
  %1216 = vmatpush2.msra.mxu0 0.0
  %1217 = vmatprep.subr.mxu0 0.0
  %1218 = vmatpush2.msra.mxu0 0.0
  %1219 = vmatprep.mubr.f32.mxu0 0.0
  %1220 = vmatmul.mubr.f32.gmra.mxu0 %v1150
  %v1221 = vpop.f32.mrf.mxu0
  %v1222 = vadd.f32 0.0, %v1221
  %v1223 = vpop.f32.mrf.mxu0
  %1224 = vmatprep.mubr.f32.mxu0 0.0
  %1225 = vmatmul.mubr.f32.gmra.mxu0 %v1153
  %v1226 = vpop.f32.mrf.mxu0
  %v1227 = vadd.f32 0.0, %v1226
  %v1228 = vpop.f32.mrf.mxu0
  %1229 = vdwg.mxu0
  %v1230 = vadd.f32 %v410, %v1222
  %v1231 = vadd.f32 %v415, %v1227
  %v1232 = vld [vmem:[%s15] sm:$0x1]
  %v1234 = vlaneseq
  %v1235 = vshrl.u32 %v1234, 7
  %v1236 = vsub.s32 0, %v1235
  %v1237 = vrot.slane %v1232, %v1236
  %v1239 = vadd.f32 %v1230, %v1237
  %v1240 = vadd.f32 %v1231, %v1237
  %v1241 = vld [vmem:[%s16] sm:$0x1]
  %v1242 = vld [vmem:[%s17] sm:$0x1]
  %v1243 = vsel %vm422, %v1239, 0.0
  %1244 = vadd.xlane.f32.xlu0 %v1243
  %v1245 = vpop.xlane.xlu0 %1244
  %v1246 = vsel %vm426, %v1240, 0.0
  %1247 = vadd.xlane.f32.xlu0 %v1246
  %v1248 = vpop.xlane.xlu0 %1247
  %v1249 = vmul.f32 %v1245, %v430
  %v1250 = vmul.f32 %v1248, %v430
  %v1251 = vsub.f32 %v1239, %v1249
  %v1252 = vsub.f32 %v1240, %v1250
  %v1253 = vmul.f32 %v1251, %v1251
  %v1254 = vmul.f32 %v1252, %v1252
  %v1255 = vsel %vm422, %v1253, 0.0
  %1256 = vadd.xlane.f32.xlu0 %v1255
  %v1257 = vpop.xlane.xlu0 %1256
  %v1258 = vsel %vm426, %v1254, 0.0
  %1259 = vadd.xlane.f32.xlu0 %v1258
  %v1260 = vpop.xlane.xlu0 %1259
  %v1261 = vmul.f32 %v1257, %v430
  %v1262 = vmul.f32 %v1260, %v430
  %v1263 = vadd.f32 %v1261, 1e-06
  %v1264 = vadd.f32 %v1262, 1e-06
  %v1265 = vrsqrt.pop %v1263
  %v1266 = vrsqrt.pop %v1264
  %v1267 = vmul.f32 %v1251, %v1265
  %v1268 = vmul.f32 %v1252, %v1266
  %v1270 = vlaneseq
  %v1271 = vshrl.u32 %v1270, 7
  %v1272 = vsub.s32 0, %v1271
  %v1273 = vrot.slane %v1241, %v1272
  %v1275 = vmul.f32 %v1267, %v1273
  %v1276 = vmul.f32 %v1268, %v1273
  %v1278 = vlaneseq
  %v1279 = vshrl.u32 %v1278, 7
  %v1280 = vsub.s32 0, %v1279
  %v1281 = vrot.slane %v1242, %v1280
  %v1283 = vadd.f32 %v1275, %v1281
  %v1284 = vadd.f32 %v1276, %v1281
  %v1285 = vld [vmem:[%s18] sm:$0xff]
  %v1286 = vld [vmem:[%s18 + $0x8] sm:$0xff]
  %v1287 = vld [vmem:[%s18 + $0x10] sm:$0xff]
  %v1288 = vld [vmem:[%s18 + $0x18] sm:$0xff]
  %v1289 = vld [vmem:[%s19] sm:$0x1]
  %v1291 = vlaneseq
  %v1292 = vshrl.u32 %v1291, 7
  %v1293 = vsub.s32 0, %v1292
  %v1294 = vrot.slane %v1289, %v1293
  %v1297 = vsel %vm422, %v1283, 0
  %v1300 = vsel %vm422, %v1284, 0
  %1302 = vmatprep.subr.mxu0 0.0
  %1303 = vmatpush1.msra.mxu0 0.0
  %1304 = vmatprep.subr.mxu0 0.0
  %1305 = vmatpush1.msra.mxu0 0.0
  %1306 = vmatprep.subr.mxu0 0.0
  %1307 = vmatpush1.msra.mxu0 0.0
  %1308 = vmatprep.subr.mxu0 0.0
  %1309 = vmatpush1.msra.mxu0 0.0
  %1310 = vmatprep.subr.mxu0 0.0
  %1311 = vmatpush1.msra.mxu0 0.0
  %1312 = vmatprep.subr.mxu0 0.0
  %1313 = vmatpush1.msra.mxu0 0.0
  %1314 = vmatprep.subr.mxu0 0.0
  %1315 = vmatpush1.msra.mxu0 0.0
  %1316 = vmatprep.subr.mxu0 0.0
  %1317 = vmatpush1.msra.mxu0 0.0
  %1318 = vmatprep.subr.mxu0 0.0
  %1319 = vmatpush1.msra.mxu0 0.0
  %1320 = vmatprep.subr.mxu0 0.0
  %1321 = vmatpush1.msra.mxu0 0.0
  %1322 = vmatprep.subr.mxu0 0.0
  %1323 = vmatpush1.msra.mxu0 0.0
  %1324 = vmatprep.subr.mxu0 0.0
  %1325 = vmatpush1.msra.mxu0 0.0
  %1326 = vmatprep.subr.mxu0 0.0
  %1327 = vmatpush1.msra.mxu0 %v1288
  %1328 = vmatprep.subr.mxu0 0.0
  %1329 = vmatpush1.msra.mxu0 %v1287
  %1330 = vmatprep.subr.mxu0 0.0
  %1331 = vmatpush1.msra.mxu0 %v1286
  %1332 = vmatprep.subr.mxu0 0.0
  %1333 = vmatpush1.msra.mxu0 %v1285
  %1334 = vmatprep.subr.mxu0 0.0
  %1335 = vmatpush2.msra.mxu0 0.0
  %1336 = vmatprep.subr.mxu0 0.0
  %1337 = vmatpush2.msra.mxu0 0.0
  %1338 = vmatprep.subr.mxu0 0.0
  %1339 = vmatpush2.msra.mxu0 0.0
  %1340 = vmatprep.subr.mxu0 0.0
  %1341 = vmatpush2.msra.mxu0 0.0
  %1342 = vmatprep.subr.mxu0 0.0
  %1343 = vmatpush2.msra.mxu0 0.0
  %1344 = vmatprep.subr.mxu0 0.0
  %1345 = vmatpush2.msra.mxu0 0.0
  %1346 = vmatprep.subr.mxu0 0.0
  %1347 = vmatpush2.msra.mxu0 0.0
  %1348 = vmatprep.subr.mxu0 0.0
  %1349 = vmatpush2.msra.mxu0 0.0
  %1350 = vmatprep.subr.mxu0 0.0
  %1351 = vmatpush2.msra.mxu0 0.0
  %1352 = vmatprep.subr.mxu0 0.0
  %1353 = vmatpush2.msra.mxu0 0.0
  %1354 = vmatprep.subr.mxu0 0.0
  %1355 = vmatpush2.msra.mxu0 0.0
  %1356 = vmatprep.subr.mxu0 0.0
  %1357 = vmatpush2.msra.mxu0 0.0
  %1358 = vmatprep.subr.mxu0 0.0
  %1359 = vmatpush2.msra.mxu0 0.0
  %1360 = vmatprep.subr.mxu0 0.0
  %1361 = vmatpush2.msra.mxu0 0.0
  %1362 = vmatprep.subr.mxu0 0.0
  %1363 = vmatpush2.msra.mxu0 0.0
  %1364 = vmatprep.subr.mxu0 0.0
  %1365 = vmatpush2.msra.mxu0 0.0
  %1366 = vmatprep.mubr.f32.mxu0 0.0
  %1367 = vmatmul.mubr.f32.gmra.mxu0 %v1297
  %v1368 = vpop.f32.mrf.mxu0
  %v1369 = vadd.f32 %v1294, %v1368
  %v1370 = vpop.f32.mrf.mxu0
  %1371 = vmatprep.mubr.f32.mxu0 0.0
  %1372 = vmatmul.mubr.f32.gmra.mxu0 %v1300
  %v1373 = vpop.f32.mrf.mxu0
  %v1374 = vadd.f32 %v1294, %v1373
  %v1375 = vpop.f32.mrf.mxu0
  %1376 = vdwg.mxu0
  %v1377 = vmul.f32 %v1369, 0.5
  %v1378 = vmul.f32 %v1374, 0.5
  %v1379 = vmul.f32 %v1369, 0.044715
  %v1380 = vmul.f32 %v1374, 0.044715
  %v1381 = vmul.f32 %v1379, %v1369
  %v1382 = vmul.f32 %v1380, %v1374
  %v1383 = vmul.f32 %v1381, %v1369
  %v1384 = vmul.f32 %v1382, %v1374
  %v1385 = vadd.f32 %v1369, %v1383
  %v1386 = vadd.f32 %v1374, %v1384
  %v1387 = vmul.f32 %v1385, 0.7978846
  %v1388 = vmul.f32 %v1386, 0.7978846
  %v1389 = vtanh.pop %v1387
  %v1390 = vtanh.pop %v1388
  %v1391 = vadd.f32 %v1389, 1.0
  %v1392 = vadd.f32 %v1390, 1.0
  %v1393 = vmul.f32 %v1377, %v1391
  %v1394 = vmul.f32 %v1378, %v1392
  %v1395 = vld [vmem:[%s20] sm:$0xff]
  %v1396 = vld [vmem:[%s20 + $0x8] sm:$0xff]
  %v1397 = vld [vmem:[%s20 + $0x10] sm:$0xff]
  %v1398 = vld [vmem:[%s20 + $0x18] sm:$0xff]
  %v1399 = vld [vmem:[%s20 + $0x20] sm:$0xff]
  %v1400 = vld [vmem:[%s20 + $0x28] sm:$0xff]
  %v1401 = vld [vmem:[%s20 + $0x30] sm:$0xff]
  %v1402 = vld [vmem:[%s20 + $0x38] sm:$0xff]
  %v1403 = vld [vmem:[%s20 + $0x40] sm:$0xff]
  %v1404 = vld [vmem:[%s20 + $0x48] sm:$0xff]
  %v1405 = vld [vmem:[%s20 + $0x50] sm:$0xff]
  %v1406 = vld [vmem:[%s20 + $0x58] sm:$0xff]
  %v1407 = vld [vmem:[%s20 + $0x60] sm:$0xff]
  %v1408 = vld [vmem:[%s20 + $0x68] sm:$0xff]
  %v1409 = vld [vmem:[%s20 + $0x70] sm:$0xff]
  %v1410 = vld [vmem:[%s20 + $0x78] sm:$0xff]
  %1411 = vmatprep.subr.mxu0 0.0
  %1412 = vmatpush1.msra.mxu0 %v1410
  %1413 = vmatprep.subr.mxu0 0.0
  %1414 = vmatpush1.msra.mxu0 %v1409
  %1415 = vmatprep.subr.mxu0 0.0
  %1416 = vmatpush1.msra.mxu0 %v1408
  %1417 = vmatprep.subr.mxu0 0.0
  %1418 = vmatpush1.msra.mxu0 %v1407
  %1419 = vmatprep.subr.mxu0 0.0
  %1420 = vmatpush1.msra.mxu0 %v1406
  %1421 = vmatprep.subr.mxu0 0.0
  %1422 = vmatpush1.msra.mxu0 %v1405
  %1423 = vmatprep.subr.mxu0 0.0
  %1424 = vmatpush1.msra.mxu0 %v1404
  %1425 = vmatprep.subr.mxu0 0.0
  %1426 = vmatpush1.msra.mxu0 %v1403
  %1427 = vmatprep.subr.mxu0 0.0
  %1428 = vmatpush1.msra.mxu0 %v1402
  %1429 = vmatprep.subr.mxu0 0.0
  %1430 = vmatpush1.msra.mxu0 %v1401
  %1431 = vmatprep.subr.mxu0 0.0
  %1432 = vmatpush1.msra.mxu0 %v1400
  %1433 = vmatprep.subr.mxu0 0.0
  %1434 = vmatpush1.msra.mxu0 %v1399
  %1435 = vmatprep.subr.mxu0 0.0
  %1436 = vmatpush1.msra.mxu0 %v1398
  %1437 = vmatprep.subr.mxu0 0.0
  %1438 = vmatpush1.msra.mxu0 %v1397
  %1439 = vmatprep.subr.mxu0 0.0
  %1440 = vmatpush1.msra.mxu0 %v1396
  %1441 = vmatprep.subr.mxu0 0.0
  %1442 = vmatpush1.msra.mxu0 %v1395
  %1443 = vmatprep.subr.mxu0 0.0
  %1444 = vmatpush2.msra.mxu0 0.0
  %1445 = vmatprep.subr.mxu0 0.0
  %1446 = vmatpush2.msra.mxu0 0.0
  %1447 = vmatprep.subr.mxu0 0.0
  %1448 = vmatpush2.msra.mxu0 0.0
  %1449 = vmatprep.subr.mxu0 0.0
  %1450 = vmatpush2.msra.mxu0 0.0
  %1451 = vmatprep.subr.mxu0 0.0
  %1452 = vmatpush2.msra.mxu0 0.0
  %1453 = vmatprep.subr.mxu0 0.0
  %1454 = vmatpush2.msra.mxu0 0.0
  %1455 = vmatprep.subr.mxu0 0.0
  %1456 = vmatpush2.msra.mxu0 0.0
  %1457 = vmatprep.subr.mxu0 0.0
  %1458 = vmatpush2.msra.mxu0 0.0
  %1459 = vmatprep.subr.mxu0 0.0
  %1460 = vmatpush2.msra.mxu0 0.0
  %1461 = vmatprep.subr.mxu0 0.0
  %1462 = vmatpush2.msra.mxu0 0.0
  %1463 = vmatprep.subr.mxu0 0.0
  %1464 = vmatpush2.msra.mxu0 0.0
  %1465 = vmatprep.subr.mxu0 0.0
  %1466 = vmatpush2.msra.mxu0 0.0
  %1467 = vmatprep.subr.mxu0 0.0
  %1468 = vmatpush2.msra.mxu0 0.0
  %1469 = vmatprep.subr.mxu0 0.0
  %1470 = vmatpush2.msra.mxu0 0.0
  %1471 = vmatprep.subr.mxu0 0.0
  %1472 = vmatpush2.msra.mxu0 0.0
  %1473 = vmatprep.subr.mxu0 0.0
  %1474 = vmatpush2.msra.mxu0 0.0
  %1475 = vmatprep.mubr.f32.mxu0 0.0
  %1476 = vmatmul.mubr.f32.gmra.mxu0 %v1393
  %v1477 = vpop.f32.mrf.mxu0
  %v1478 = vadd.f32 0.0, %v1477
  %v1479 = vpop.f32.mrf.mxu0
  %1480 = vmatprep.mubr.f32.mxu0 0.0
  %1481 = vmatmul.mubr.f32.gmra.mxu0 %v1394
  %v1482 = vpop.f32.mrf.mxu0
  %v1483 = vadd.f32 0.0, %v1482
  %v1484 = vpop.f32.mrf.mxu0
  %1485 = vdwg.mxu0
  %v1486 = vadd.f32 %v1239, %v1478
  %v1487 = vadd.f32 %v1240, %v1483
  %v1488 = vld [vmem:[%s21] sm:$0x1]
  %v1490 = vlaneseq
  %v1491 = vshrl.u32 %v1490, 7
  %v1492 = vsub.s32 0, %v1491
  %v1493 = vrot.slane %v1488, %v1492
  %v1495 = vadd.f32 %v1486, %v1493
  %v1496 = vadd.f32 %v1487, %v1493
  %s1497 = scalar_lea.vmem %s6, 1
  %v1498 = vld [vmem:[%s1497] sm:$0x1]
  %s1499 = scalar_lea.vmem %s7, 1
  %v1500 = vld [vmem:[%s1499] sm:$0x1]
  %v1501 = vsel %vm422, %v1495, 0.0
  %1502 = vadd.xlane.f32.xlu0 %v1501
  %v1503 = vpop.xlane.xlu0 %1502
  %v1504 = vsel %vm426, %v1496, 0.0
  %1505 = vadd.xlane.f32.xlu0 %v1504
  %v1506 = vpop.xlane.xlu0 %1505
  %v1507 = vmul.f32 %v1503, %v430
  %v1508 = vmul.f32 %v1506, %v430
  %v1509 = vsub.f32 %v1495, %v1507
  %v1510 = vsub.f32 %v1496, %v1508
  %v1511 = vmul.f32 %v1509, %v1509
  %v1512 = vmul.f32 %v1510, %v1510
  %v1513 = vsel %vm422, %v1511, 0.0
  %1514 = vadd.xlane.f32.xlu0 %v1513
  %v1515 = vpop.xlane.xlu0 %1514
  %v1516 = vsel %vm426, %v1512, 0.0
  %1517 = vadd.xlane.f32.xlu0 %v1516
  %v1518 = vpop.xlane.xlu0 %1517
  %v1519 = vmul.f32 %v1515, %v430
  %v1520 = vmul.f32 %v1518, %v430
  %v1521 = vadd.f32 %v1519, 1e-06
  %v1522 = vadd.f32 %v1520, 1e-06
  %v1523 = vrsqrt.pop %v1521
  %v1524 = vrsqrt.pop %v1522
  %v1525 = vmul.f32 %v1509, %v1523
  %v1526 = vmul.f32 %v1510, %v1524
  %v1528 = vlaneseq
  %v1529 = vshrl.u32 %v1528, 7
  %v1530 = vsub.s32 0, %v1529
  %v1531 = vrot.slane %v1498, %v1530
  %v1533 = vmul.f32 %v1525, %v1531
  %v1534 = vmul.f32 %v1526, %v1531
  %v1536 = vlaneseq
  %v1537 = vshrl.u32 %v1536, 7
  %v1538 = vsub.s32 0, %v1537
  %v1539 = vrot.slane %v1500, %v1538
  %v1541 = vadd.f32 %v1533, %v1539
  %v1542 = vadd.f32 %v1534, %v1539
  %s1543 = scalar_lea.vmem %s8, 32
  %v1544 = vld [vmem:[%s1543] sm:$0xff]
  %v1545 = vld [vmem:[%s1543 + $0x8] sm:$0xff]
  %v1546 = vld [vmem:[%s1543 + $0x10] sm:$0xff]
  %v1547 = vld [vmem:[%s1543 + $0x18] sm:$0xff]
  %s1548 = scalar_lea.vmem %s9, 1
  %v1549 = vld [vmem:[%s1548] sm:$0x1]
  %v1551 = vlaneseq
  %v1552 = vshrl.u32 %v1551, 7
  %v1553 = vsub.s32 0, %v1552
  %v1554 = vrot.slane %v1549, %v1553
  %v1557 = vsel %vm422, %v1541, 0
  %v1560 = vsel %vm422, %v1542, 0
  %1562 = vmatprep.subr.mxu0 0.0
  %1563 = vmatpush1.msra.mxu0 0.0
  %1564 = vmatprep.subr.mxu0 0.0
  %1565 = vmatpush1.msra.mxu0 0.0
  %1566 = vmatprep.subr.mxu0 0.0
  %1567 = vmatpush1.msra.mxu0 0.0
  %1568 = vmatprep.subr.mxu0 0.0
  %1569 = vmatpush1.msra.mxu0 0.0
  %1570 = vmatprep.subr.mxu0 0.0
  %1571 = vmatpush1.msra.mxu0 0.0
  %1572 = vmatprep.subr.mxu0 0.0
  %1573 = vmatpush1.msra.mxu0 0.0
  %1574 = vmatprep.subr.mxu0 0.0
  %1575 = vmatpush1.msra.mxu0 0.0
  %1576 = vmatprep.subr.mxu0 0.0
  %1577 = vmatpush1.msra.mxu0 0.0
  %1578 = vmatprep.subr.mxu0 0.0
  %1579 = vmatpush1.msra.mxu0 0.0
  %1580 = vmatprep.subr.mxu0 0.0
  %1581 = vmatpush1.msra.mxu0 0.0
  %1582 = vmatprep.subr.mxu0 0.0
  %1583 = vmatpush1.msra.mxu0 0.0
  %1584 = vmatprep.subr.mxu0 0.0
  %1585 = vmatpush1.msra.mxu0 0.0
  %1586 = vmatprep.subr.mxu0 0.0
  %1587 = vmatpush1.msra.mxu0 %v1547
  %1588 = vmatprep.subr.mxu0 0.0
  %1589 = vmatpush1.msra.mxu0 %v1546
  %1590 = vmatprep.subr.mxu0 0.0
  %1591 = vmatpush1.msra.mxu0 %v1545
  %1592 = vmatprep.subr.mxu0 0.0
  %1593 = vmatpush1.msra.mxu0 %v1544
  %1594 = vmatprep.subr.mxu0 0.0
  %1595 = vmatpush2.msra.mxu0 0.0
  %1596 = vmatprep.subr.mxu0 0.0
  %1597 = vmatpush2.msra.mxu0 0.0
  %1598 = vmatprep.subr.mxu0 0.0
  %1599 = vmatpush2.msra.mxu0 0.0
  %1600 = vmatprep.subr.mxu0 0.0
  %1601 = vmatpush2.msra.mxu0 0.0
  %1602 = vmatprep.subr.mxu0 0.0
  %1603 = vmatpush2.msra.mxu0 0.0
  %1604 = vmatprep.subr.mxu0 0.0
  %1605 = vmatpush2.msra.mxu0 0.0
  %1606 = vmatprep.subr.mxu0 0.0
  %1607 = vmatpush2.msra.mxu0 0.0
  %1608 = vmatprep.subr.mxu0 0.0
  %1609 = vmatpush2.msra.mxu0 0.0
  %1610 = vmatprep.subr.mxu0 0.0
  %1611 = vmatpush2.msra.mxu0 0.0
  %1612 = vmatprep.subr.mxu0 0.0
  %1613 = vmatpush2.msra.mxu0 0.0
  %1614 = vmatprep.subr.mxu0 0.0
  %1615 = vmatpush2.msra.mxu0 0.0
  %1616 = vmatprep.subr.mxu0 0.0
  %1617 = vmatpush2.msra.mxu0 0.0
  %1618 = vmatprep.subr.mxu0 0.0
  %1619 = vmatpush2.msra.mxu0 0.0
  %1620 = vmatprep.subr.mxu0 0.0
  %1621 = vmatpush2.msra.mxu0 0.0
  %1622 = vmatprep.subr.mxu0 0.0
  %1623 = vmatpush2.msra.mxu0 0.0
  %1624 = vmatprep.subr.mxu0 0.0
  %1625 = vmatpush2.msra.mxu0 0.0
  %1626 = vmatprep.mubr.f32.mxu0 0.0
  %1627 = vmatmul.mubr.f32.gmra.mxu0 %v1557
  %v1628 = vpop.f32.mrf.mxu0
  %v1629 = vadd.f32 %v1554, %v1628
  %v1630 = vpop.f32.mrf.mxu0
  %1631 = vmatprep.mubr.f32.mxu0 0.0
  %1632 = vmatmul.mubr.f32.gmra.mxu0 %v1560
  %v1633 = vpop.f32.mrf.mxu0
  %v1634 = vadd.f32 %v1554, %v1633
  %v1635 = vpop.f32.mrf.mxu0
  %1636 = vdwg.mxu0
  %s1637 = scalar_lea.vmem %s10, 32
  %v1638 = vld [vmem:[%s1637] sm:$0xff]
  %v1639 = vld [vmem:[%s1637 + $0x8] sm:$0xff]
  %v1640 = vld [vmem:[%s1637 + $0x10] sm:$0xff]
  %v1641 = vld [vmem:[%s1637 + $0x18] sm:$0xff]
  %s1642 = scalar_lea.vmem %s11, 1
  %v1643 = vld [vmem:[%s1642] sm:$0x1]
  %v1645 = vlaneseq
  %v1646 = vshrl.u32 %v1645, 7
  %v1647 = vsub.s32 0, %v1646
  %v1648 = vrot.slane %v1643, %v1647
  %1650 = vmatprep.subr.mxu0 0.0
  %1651 = vmatpush1.msra.mxu0 0.0
  %1652 = vmatprep.subr.mxu0 0.0
  %1653 = vmatpush1.msra.mxu0 0.0
  %1654 = vmatprep.subr.mxu0 0.0
  %1655 = vmatpush1.msra.mxu0 0.0
  %1656 = vmatprep.subr.mxu0 0.0
  %1657 = vmatpush1.msra.mxu0 0.0
  %1658 = vmatprep.subr.mxu0 0.0
  %1659 = vmatpush1.msra.mxu0 0.0
  %1660 = vmatprep.subr.mxu0 0.0
  %1661 = vmatpush1.msra.mxu0 0.0
  %1662 = vmatprep.subr.mxu0 0.0
  %1663 = vmatpush1.msra.mxu0 0.0
  %1664 = vmatprep.subr.mxu0 0.0
  %1665 = vmatpush1.msra.mxu0 0.0
  %1666 = vmatprep.subr.mxu0 0.0
  %1667 = vmatpush1.msra.mxu0 0.0
  %1668 = vmatprep.subr.mxu0 0.0
  %1669 = vmatpush1.msra.mxu0 0.0
  %1670 = vmatprep.subr.mxu0 0.0
  %1671 = vmatpush1.msra.mxu0 0.0
  %1672 = vmatprep.subr.mxu0 0.0
  %1673 = vmatpush1.msra.mxu0 0.0
  %1674 = vmatprep.subr.mxu0 0.0
  %1675 = vmatpush1.msra.mxu0 %v1641
  %1676 = vmatprep.subr.mxu0 0.0
  %1677 = vmatpush1.msra.mxu0 %v1640
  %1678 = vmatprep.subr.mxu0 0.0
  %1679 = vmatpush1.msra.mxu0 %v1639
  %1680 = vmatprep.subr.mxu0 0.0
  %1681 = vmatpush1.msra.mxu0 %v1638
  %1682 = vmatprep.subr.mxu0 0.0
  %1683 = vmatpush2.msra.mxu0 0.0
  %1684 = vmatprep.subr.mxu0 0.0
  %1685 = vmatpush2.msra.mxu0 0.0
  %1686 = vmatprep.subr.mxu0 0.0
  %1687 = vmatpush2.msra.mxu0 0.0
  %1688 = vmatprep.subr.mxu0 0.0
  %1689 = vmatpush2.msra.mxu0 0.0
  %1690 = vmatprep.subr.mxu0 0.0
  %1691 = vmatpush2.msra.mxu0 0.0
  %1692 = vmatprep.subr.mxu0 0.0
  %1693 = vmatpush2.msra.mxu0 0.0
  %1694 = vmatprep.subr.mxu0 0.0
  %1695 = vmatpush2.msra.mxu0 0.0
  %1696 = vmatprep.subr.mxu0 0.0
  %1697 = vmatpush2.msra.mxu0 0.0
  %1698 = vmatprep.subr.mxu0 0.0
  %1699 = vmatpush2.msra.mxu0 0.0
  %1700 = vmatprep.subr.mxu0 0.0
  %1701 = vmatpush2.msra.mxu0 0.0
  %1702 = vmatprep.subr.mxu0 0.0
  %1703 = vmatpush2.msra.mxu0 0.0
  %1704 = vmatprep.subr.mxu0 0.0
  %1705 = vmatpush2.msra.mxu0 0.0
  %1706 = vmatprep.subr.mxu0 0.0
  %1707 = vmatpush2.msra.mxu0 0.0
  %1708 = vmatprep.subr.mxu0 0.0
  %1709 = vmatpush2.msra.mxu0 0.0
  %1710 = vmatprep.subr.mxu0 0.0
  %1711 = vmatpush2.msra.mxu0 0.0
  %1712 = vmatprep.subr.mxu0 0.0
  %1713 = vmatpush2.msra.mxu0 0.0
  %1714 = vmatprep.mubr.f32.mxu0 0.0
  %1715 = vmatmul.mubr.f32.gmra.mxu0 %v1557
  %v1716 = vpop.f32.mrf.mxu0
  %v1717 = vadd.f32 %v1648, %v1716
  %v1718 = vpop.f32.mrf.mxu0
  %1719 = vmatprep.mubr.f32.mxu0 0.0
  %1720 = vmatmul.mubr.f32.gmra.mxu0 %v1560
  %v1721 = vpop.f32.mrf.mxu0
  %v1722 = vadd.f32 %v1648, %v1721
  %v1723 = vpop.f32.mrf.mxu0
  %1724 = vdwg.mxu0
  %s1725 = scalar_lea.vmem %s12, 32
  %v1726 = vld [vmem:[%s1725] sm:$0xff]
  %v1727 = vld [vmem:[%s1725 + $0x8] sm:$0xff]
  %v1728 = vld [vmem:[%s1725 + $0x10] sm:$0xff]
  %v1729 = vld [vmem:[%s1725 + $0x18] sm:$0xff]
  %s1730 = scalar_lea.vmem %s13, 1
  %v1731 = vld [vmem:[%s1730] sm:$0x1]
  %v1733 = vlaneseq
  %v1734 = vshrl.u32 %v1733, 7
  %v1735 = vsub.s32 0, %v1734
  %v1736 = vrot.slane %v1731, %v1735
  %1738 = vmatprep.subr.mxu0 0.0
  %1739 = vmatpush1.msra.mxu0 0.0
  %1740 = vmatprep.subr.mxu0 0.0
  %1741 = vmatpush1.msra.mxu0 0.0
  %1742 = vmatprep.subr.mxu0 0.0
  %1743 = vmatpush1.msra.mxu0 0.0
  %1744 = vmatprep.subr.mxu0 0.0
  %1745 = vmatpush1.msra.mxu0 0.0
  %1746 = vmatprep.subr.mxu0 0.0
  %1747 = vmatpush1.msra.mxu0 0.0
  %1748 = vmatprep.subr.mxu0 0.0
  %1749 = vmatpush1.msra.mxu0 0.0
  %1750 = vmatprep.subr.mxu0 0.0
  %1751 = vmatpush1.msra.mxu0 0.0
  %1752 = vmatprep.subr.mxu0 0.0
  %1753 = vmatpush1.msra.mxu0 0.0
  %1754 = vmatprep.subr.mxu0 0.0
  %1755 = vmatpush1.msra.mxu0 0.0
  %1756 = vmatprep.subr.mxu0 0.0
  %1757 = vmatpush1.msra.mxu0 0.0
  %1758 = vmatprep.subr.mxu0 0.0
  %1759 = vmatpush1.msra.mxu0 0.0
  %1760 = vmatprep.subr.mxu0 0.0
  %1761 = vmatpush1.msra.mxu0 0.0
  %1762 = vmatprep.subr.mxu0 0.0
  %1763 = vmatpush1.msra.mxu0 %v1729
  %1764 = vmatprep.subr.mxu0 0.0
  %1765 = vmatpush1.msra.mxu0 %v1728
  %1766 = vmatprep.subr.mxu0 0.0
  %1767 = vmatpush1.msra.mxu0 %v1727
  %1768 = vmatprep.subr.mxu0 0.0
  %1769 = vmatpush1.msra.mxu0 %v1726
  %1770 = vmatprep.subr.mxu0 0.0
  %1771 = vmatpush2.msra.mxu0 0.0
  %1772 = vmatprep.subr.mxu0 0.0
  %1773 = vmatpush2.msra.mxu0 0.0
  %1774 = vmatprep.subr.mxu0 0.0
  %1775 = vmatpush2.msra.mxu0 0.0
  %1776 = vmatprep.subr.mxu0 0.0
  %1777 = vmatpush2.msra.mxu0 0.0
  %1778 = vmatprep.subr.mxu0 0.0
  %1779 = vmatpush2.msra.mxu0 0.0
  %1780 = vmatprep.subr.mxu0 0.0
  %1781 = vmatpush2.msra.mxu0 0.0
  %1782 = vmatprep.subr.mxu0 0.0
  %1783 = vmatpush2.msra.mxu0 0.0
  %1784 = vmatprep.subr.mxu0 0.0
  %1785 = vmatpush2.msra.mxu0 0.0
  %1786 = vmatprep.subr.mxu0 0.0
  %1787 = vmatpush2.msra.mxu0 0.0
  %1788 = vmatprep.subr.mxu0 0.0
  %1789 = vmatpush2.msra.mxu0 0.0
  %1790 = vmatprep.subr.mxu0 0.0
  %1791 = vmatpush2.msra.mxu0 0.0
  %1792 = vmatprep.subr.mxu0 0.0
  %1793 = vmatpush2.msra.mxu0 0.0
  %1794 = vmatprep.subr.mxu0 0.0
  %1795 = vmatpush2.msra.mxu0 0.0
  %1796 = vmatprep.subr.mxu0 0.0
  %1797 = vmatpush2.msra.mxu0 0.0
  %1798 = vmatprep.subr.mxu0 0.0
  %1799 = vmatpush2.msra.mxu0 0.0
  %1800 = vmatprep.subr.mxu0 0.0
  %1801 = vmatpush2.msra.mxu0 0.0
  %1802 = vmatprep.mubr.f32.mxu0 0.0
  %1803 = vmatmul.mubr.f32.gmra.mxu0 %v1557
  %v1804 = vpop.f32.mrf.mxu0
  %v1805 = vadd.f32 %v1736, %v1804
  %v1806 = vpop.f32.mrf.mxu0
  %1807 = vmatprep.mubr.f32.mxu0 0.0
  %1808 = vmatmul.mubr.f32.gmra.mxu0 %v1560
  %v1809 = vpop.f32.mrf.mxu0
  %v1810 = vadd.f32 %v1736, %v1809
  %v1811 = vpop.f32.mrf.mxu0
  %1812 = vdwg.mxu0
  %v1813 = vmul.f32 %v1629, %v736
  %v1814 = vmul.f32 %v1634, %v736
  %v1816 = vsel %vm422, %v1813, 0
  %v1819 = vsel %vm422, %v1814, 0
  %v1822 = vsel %vm422, %v1717, 0
  %v1825 = vsel %vm422, %v1722, 0
  %1827 = vmatprep.subr.mxu0 0.0
  %1828 = vmatpush1.xpose.msra.mxu0 0.0
  %1829 = vmatprep.subr.mxu0 0.0
  %1830 = vmatpush1.xpose.msra.mxu0 0.0
  %1831 = vmatprep.subr.mxu0 0.0
  %1832 = vmatpush1.xpose.msra.mxu0 0.0
  %1833 = vmatprep.subr.mxu0 0.0
  %1834 = vmatpush1.xpose.msra.mxu0 0.0
  %1835 = vmatprep.subr.mxu0 0.0
  %1836 = vmatpush1.xpose.msra.mxu0 0.0
  %1837 = vmatprep.subr.mxu0 0.0
  %1838 = vmatpush1.xpose.msra.mxu0 0.0
  %1839 = vmatprep.subr.mxu0 0.0
  %1840 = vmatpush1.xpose.msra.mxu0 0.0
  %1841 = vmatprep.subr.mxu0 0.0
  %1842 = vmatpush1.xpose.msra.mxu0 0.0
  %1843 = vmatprep.subr.mxu0 0.0
  %1844 = vmatpush1.xpose.msra.mxu0 0.0
  %1845 = vmatprep.subr.mxu0 0.0
  %1846 = vmatpush1.xpose.msra.mxu0 0.0
  %1847 = vmatprep.subr.mxu0 0.0
  %1848 = vmatpush1.xpose.msra.mxu0 0.0
  %1849 = vmatprep.subr.mxu0 0.0
  %1850 = vmatpush1.xpose.msra.mxu0 0.0
  %1851 = vmatprep.subr.mxu0 0.0
  %1852 = vmatpush1.xpose.msra.mxu0 0.0
  %1853 = vmatprep.subr.mxu0 0.0
  %1854 = vmatpush1.xpose.msra.mxu0 0.0
  %1855 = vmatprep.subr.mxu0 0.0
  %1856 = vmatpush1.xpose.msra.mxu0 %v1825
  %1857 = vmatprep.subr.mxu0 0.0
  %1858 = vmatpush1.xpose.msra.mxu0 %v1822
  %1859 = vmatprep.subr.mxu0 0.0
  %1860 = vmatpush2.xpose.msra.mxu0 0.0
  %1861 = vmatprep.subr.mxu0 0.0
  %1862 = vmatpush2.xpose.msra.mxu0 0.0
  %1863 = vmatprep.subr.mxu0 0.0
  %1864 = vmatpush2.xpose.msra.mxu0 0.0
  %1865 = vmatprep.subr.mxu0 0.0
  %1866 = vmatpush2.xpose.msra.mxu0 0.0
  %1867 = vmatprep.subr.mxu0 0.0
  %1868 = vmatpush2.xpose.msra.mxu0 0.0
  %1869 = vmatprep.subr.mxu0 0.0
  %1870 = vmatpush2.xpose.msra.mxu0 0.0
  %1871 = vmatprep.subr.mxu0 0.0
  %1872 = vmatpush2.xpose.msra.mxu0 0.0
  %1873 = vmatprep.subr.mxu0 0.0
  %1874 = vmatpush2.xpose.msra.mxu0 0.0
  %1875 = vmatprep.subr.mxu0 0.0
  %1876 = vmatpush2.xpose.msra.mxu0 0.0
  %1877 = vmatprep.subr.mxu0 0.0
  %1878 = vmatpush2.xpose.msra.mxu0 0.0
  %1879 = vmatprep.subr.mxu0 0.0
  %1880 = vmatpush2.xpose.msra.mxu0 0.0
  %1881 = vmatprep.subr.mxu0 0.0
  %1882 = vmatpush2.xpose.msra.mxu0 0.0
  %1883 = vmatprep.subr.mxu0 0.0
  %1884 = vmatpush2.xpose.msra.mxu0 0.0
  %1885 = vmatprep.subr.mxu0 0.0
  %1886 = vmatpush2.xpose.msra.mxu0 0.0
  %1887 = vmatprep.subr.mxu0 0.0
  %1888 = vmatpush2.xpose.msra.mxu0 0.0
  %1889 = vmatprep.subr.mxu0 0.0
  %1890 = vmatpush2.xpose.msra.mxu0 0.0
  %1891 = vmatprep.mubr.f32.mxu0 0.0
  %1892 = vmatmul.mubr.f32.gmra.mxu0 %v1816
  %v1893 = vpop.f32.mrf.mxu0
  %v1894 = vadd.f32 0.0, %v1893
  %v1895 = vpop.f32.mrf.mxu0
  %1896 = vmatprep.mubr.f32.mxu0 0.0
  %1897 = vmatmul.mubr.f32.gmra.mxu0 %v1819
  %v1898 = vpop.f32.mrf.mxu0
  %v1899 = vadd.f32 0.0, %v1898
  %v1900 = vpop.f32.mrf.mxu0
  %1901 = vdwg.mxu0
  %v1902 = vmul.f32 %v1894, 0.25
  %v1903 = vmul.f32 %v1899, 0.25
  %v1904 = vadd.f32 %v1902, %v418
  %v1905 = vadd.f32 %v1903, %v419
  %v1906 = vsel %vm831, %v1904, -inf
  %1907 = vmax.xlane.f32.xlu0 %v1906
  %v1908 = vpop.xlane.xlu0 %1907
  %v1909 = vsel %vm835, %v1905, -inf
  %1910 = vmax.xlane.f32.xlu0 %v1909
  %v1911 = vpop.xlane.xlu0 %1910
  %v1912 = vsub.f32 %v1904, %v1908
  %v1913 = vsub.f32 %v1905, %v1911
  %v1914 = vmul.f32 %v1912, 1.442695
  %v1915 = vpow.pop %v1914
  %v1916 = vmul.f32 %v1913, 1.442695
  %v1917 = vpow.pop %v1916
  %v1918 = vsel %vm831, %v1915, 0.0
  %1919 = vadd.xlane.f32.xlu0 %v1918
  %v1920 = vpop.xlane.xlu0 %1919
  %v1921 = vsel %vm835, %v1917, 0.0
  %1922 = vadd.xlane.f32.xlu0 %v1921
  %v1923 = vpop.xlane.xlu0 %1922
  %v1924 = vrcp.pop %v1920
  %v1925 = vrcp.pop %v1923
  %v1926 = vmul.f32 %v1915, %v1924
  %v1927 = vmul.f32 %v1917, %v1925
  %v1928 = vmul.f32 %v1805, %v736
  %v1929 = vmul.f32 %v1810, %v736
  %v1930 = vmul.f32 %v1629, %v863
  %v1931 = vmul.f32 %v1634, %v863
  %v1933 = vsel %vm422, %v1930, 0
  %v1936 = vsel %vm422, %v1931, 0
  %1938 = vmatprep.subr.mxu0 0.0
  %1939 = vmatpush1.xpose.msra.mxu0 0.0
  %1940 = vmatprep.subr.mxu0 0.0
  %1941 = vmatpush1.xpose.msra.mxu0 0.0
  %1942 = vmatprep.subr.mxu0 0.0
  %1943 = vmatpush1.xpose.msra.mxu0 0.0
  %1944 = vmatprep.subr.mxu0 0.0
  %1945 = vmatpush1.xpose.msra.mxu0 0.0
  %1946 = vmatprep.subr.mxu0 0.0
  %1947 = vmatpush1.xpose.msra.mxu0 0.0
  %1948 = vmatprep.subr.mxu0 0.0
  %1949 = vmatpush1.xpose.msra.mxu0 0.0
  %1950 = vmatprep.subr.mxu0 0.0
  %1951 = vmatpush1.xpose.msra.mxu0 0.0
  %1952 = vmatprep.subr.mxu0 0.0
  %1953 = vmatpush1.xpose.msra.mxu0 0.0
  %1954 = vmatprep.subr.mxu0 0.0
  %1955 = vmatpush1.xpose.msra.mxu0 0.0
  %1956 = vmatprep.subr.mxu0 0.0
  %1957 = vmatpush1.xpose.msra.mxu0 0.0
  %1958 = vmatprep.subr.mxu0 0.0
  %1959 = vmatpush1.xpose.msra.mxu0 0.0
  %1960 = vmatprep.subr.mxu0 0.0
  %1961 = vmatpush1.xpose.msra.mxu0 0.0
  %1962 = vmatprep.subr.mxu0 0.0
  %1963 = vmatpush1.xpose.msra.mxu0 0.0
  %1964 = vmatprep.subr.mxu0 0.0
  %1965 = vmatpush1.xpose.msra.mxu0 0.0
  %1966 = vmatprep.subr.mxu0 0.0
  %1967 = vmatpush1.xpose.msra.mxu0 %v1825
  %1968 = vmatprep.subr.mxu0 0.0
  %1969 = vmatpush1.xpose.msra.mxu0 %v1822
  %1970 = vmatprep.subr.mxu0 0.0
  %1971 = vmatpush2.xpose.msra.mxu0 0.0
  %1972 = vmatprep.subr.mxu0 0.0
  %1973 = vmatpush2.xpose.msra.mxu0 0.0
  %1974 = vmatprep.subr.mxu0 0.0
  %1975 = vmatpush2.xpose.msra.mxu0 0.0
  %1976 = vmatprep.subr.mxu0 0.0
  %1977 = vmatpush2.xpose.msra.mxu0 0.0
  %1978 = vmatprep.subr.mxu0 0.0
  %1979 = vmatpush2.xpose.msra.mxu0 0.0
  %1980 = vmatprep.subr.mxu0 0.0
  %1981 = vmatpush2.xpose.msra.mxu0 0.0
  %1982 = vmatprep.subr.mxu0 0.0
  %1983 = vmatpush2.xpose.msra.mxu0 0.0
  %1984 = vmatprep.subr.mxu0 0.0
  %1985 = vmatpush2.xpose.msra.mxu0 0.0
  %1986 = vmatprep.subr.mxu0 0.0
  %1987 = vmatpush2.xpose.msra.mxu0 0.0
  %1988 = vmatprep.subr.mxu0 0.0
  %1989 = vmatpush2.xpose.msra.mxu0 0.0
  %1990 = vmatprep.subr.mxu0 0.0
  %1991 = vmatpush2.xpose.msra.mxu0 0.0
  %1992 = vmatprep.subr.mxu0 0.0
  %1993 = vmatpush2.xpose.msra.mxu0 0.0
  %1994 = vmatprep.subr.mxu0 0.0
  %1995 = vmatpush2.xpose.msra.mxu0 0.0
  %1996 = vmatprep.subr.mxu0 0.0
  %1997 = vmatpush2.xpose.msra.mxu0 0.0
  %1998 = vmatprep.subr.mxu0 0.0
  %1999 = vmatpush2.xpose.msra.mxu0 0.0
  %2000 = vmatprep.subr.mxu0 0.0
  %2001 = vmatpush2.xpose.msra.mxu0 0.0
  %2002 = vmatprep.mubr.f32.mxu0 0.0
  %2003 = vmatmul.mubr.f32.gmra.mxu0 %v1933
  %v2004 = vpop.f32.mrf.mxu0
  %v2005 = vadd.f32 0.0, %v2004
  %v2006 = vpop.f32.mrf.mxu0
  %2007 = vmatprep.mubr.f32.mxu0 0.0
  %2008 = vmatmul.mubr.f32.gmra.mxu0 %v1936
  %v2009 = vpop.f32.mrf.mxu0
  %v2010 = vadd.f32 0.0, %v2009
  %v2011 = vpop.f32.mrf.mxu0
  %2012 = vdwg.mxu0
  %v2013 = vmul.f32 %v2005, 0.25
  %v2014 = vmul.f32 %v2010, 0.25
  %v2015 = vadd.f32 %v2013, %v418
  %v2016 = vadd.f32 %v2014, %v419
  %v2017 = vsel %vm831, %v2015, -inf
  %2018 = vmax.xlane.f32.xlu0 %v2017
  %v2019 = vpop.xlane.xlu0 %2018
  %v2020 = vsel %vm835, %v2016, -inf
  %2021 = vmax.xlane.f32.xlu0 %v2020
  %v2022 = vpop.xlane.xlu0 %2021
  %v2023 = vsub.f32 %v2015, %v2019
  %v2024 = vsub.f32 %v2016, %v2022
  %v2025 = vmul.f32 %v2023, 1.442695
  %v2026 = vpow.pop %v2025
  %v2027 = vmul.f32 %v2024, 1.442695
  %v2028 = vpow.pop %v2027
  %v2029 = vsel %vm831, %v2026, 0.0
  %2030 = vadd.xlane.f32.xlu0 %v2029
  %v2031 = vpop.xlane.xlu0 %2030
  %v2032 = vsel %vm835, %v2028, 0.0
  %2033 = vadd.xlane.f32.xlu0 %v2032
  %v2034 = vpop.xlane.xlu0 %2033
  %v2035 = vrcp.pop %v2031
  %v2036 = vrcp.pop %v2034
  %v2037 = vmul.f32 %v2026, %v2035
  %v2038 = vmul.f32 %v2028, %v2036
  %v2039 = vmul.f32 %v1805, %v863
  %v2040 = vmul.f32 %v1810, %v863
  %v2042 = vsel %vm831, %v2037, 0
  %v2045 = vsel %vm831, %v2038, 0
  %v2048 = vsel %vm982, %v2040, 0
  %2050 = vmatprep.subr.mxu0 0.0
  %2051 = vmatpush1.msra.mxu0 0.0
  %2052 = vmatprep.subr.mxu0 0.0
  %2053 = vmatpush1.msra.mxu0 0.0
  %2054 = vmatprep.subr.mxu0 0.0
  %2055 = vmatpush1.msra.mxu0 0.0
  %2056 = vmatprep.subr.mxu0 0.0
  %2057 = vmatpush1.msra.mxu0 0.0
  %2058 = vmatprep.subr.mxu0 0.0
  %2059 = vmatpush1.msra.mxu0 0.0
  %2060 = vmatprep.subr.mxu0 0.0
  %2061 = vmatpush1.msra.mxu0 0.0
  %2062 = vmatprep.subr.mxu0 0.0
  %2063 = vmatpush1.msra.mxu0 0.0
  %2064 = vmatprep.subr.mxu0 0.0
  %2065 = vmatpush1.msra.mxu0 0.0
  %2066 = vmatprep.subr.mxu0 0.0
  %2067 = vmatpush1.msra.mxu0 0.0
  %2068 = vmatprep.subr.mxu0 0.0
  %2069 = vmatpush1.msra.mxu0 0.0
  %2070 = vmatprep.subr.mxu0 0.0
  %2071 = vmatpush1.msra.mxu0 0.0
  %2072 = vmatprep.subr.mxu0 0.0
  %2073 = vmatpush1.msra.mxu0 0.0
  %2074 = vmatprep.subr.mxu0 0.0
  %2075 = vmatpush1.msra.mxu0 0.0
  %2076 = vmatprep.subr.mxu0 0.0
  %2077 = vmatpush1.msra.mxu0 0.0
  %2078 = vmatprep.subr.mxu0 0.0
  %2079 = vmatpush1.msra.mxu0 %v2048
  %2080 = vmatprep.subr.mxu0 0.0
  %2081 = vmatpush1.msra.mxu0 %v2039
  %2082 = vmatprep.subr.mxu0 0.0
  %2083 = vmatpush2.msra.mxu0 0.0
  %2084 = vmatprep.subr.mxu0 0.0
  %2085 = vmatpush2.msra.mxu0 0.0
  %2086 = vmatprep.subr.mxu0 0.0
  %2087 = vmatpush2.msra.mxu0 0.0
  %2088 = vmatprep.subr.mxu0 0.0
  %2089 = vmatpush2.msra.mxu0 0.0
  %2090 = vmatprep.subr.mxu0 0.0
  %2091 = vmatpush2.msra.mxu0 0.0
  %2092 = vmatprep.subr.mxu0 0.0
  %2093 = vmatpush2.msra.mxu0 0.0
  %2094 = vmatprep.subr.mxu0 0.0
  %2095 = vmatpush2.msra.mxu0 0.0
  %2096 = vmatprep.subr.mxu0 0.0
  %2097 = vmatpush2.msra.mxu0 0.0
  %2098 = vmatprep.subr.mxu0 0.0
  %2099 = vmatpush2.msra.mxu0 0.0
  %2100 = vmatprep.subr.mxu0 0.0
  %2101 = vmatpush2.msra.mxu0 0.0
  %2102 = vmatprep.subr.mxu0 0.0
  %2103 = vmatpush2.msra.mxu0 0.0
  %2104 = vmatprep.subr.mxu0 0.0
  %2105 = vmatpush2.msra.mxu0 0.0
  %2106 = vmatprep.subr.mxu0 0.0
  %2107 = vmatpush2.msra.mxu0 0.0
  %2108 = vmatprep.subr.mxu0 0.0
  %2109 = vmatpush2.msra.mxu0 0.0
  %2110 = vmatprep.subr.mxu0 0.0
  %2111 = vmatpush2.msra.mxu0 0.0
  %2112 = vmatprep.subr.mxu0 0.0
  %2113 = vmatpush2.msra.mxu0 0.0
  %2114 = vmatprep.mubr.f32.mxu0 0.0
  %2115 = vmatmul.mubr.f32.gmra.mxu0 %v2042
  %v2116 = vpop.f32.mrf.mxu0
  %v2117 = vadd.f32 0.0, %v2116
  %v2118 = vpop.f32.mrf.mxu0
  %2119 = vmatprep.mubr.f32.mxu0 0.0
  %2120 = vmatmul.mubr.f32.gmra.mxu0 %v2045
  %v2121 = vpop.f32.mrf.mxu0
  %v2122 = vadd.f32 0.0, %v2121
  %v2123 = vpop.f32.mrf.mxu0
  %2124 = vdwg.mxu0
  %v2126 = vsel %vm831, %v1926, 0
  %v2129 = vsel %vm831, %v1927, 0
  %v2132 = vsel %vm982, %v1929, 0
  %2134 = vmatprep.subr.mxu0 0.0
  %2135 = vmatpush1.msra.mxu0 0.0
  %2136 = vmatprep.subr.mxu0 0.0
  %2137 = vmatpush1.msra.mxu0 0.0
  %2138 = vmatprep.subr.mxu0 0.0
  %2139 = vmatpush1.msra.mxu0 0.0
  %2140 = vmatprep.subr.mxu0 0.0
  %2141 = vmatpush1.msra.mxu0 0.0
  %2142 = vmatprep.subr.mxu0 0.0
  %2143 = vmatpush1.msra.mxu0 0.0
  %2144 = vmatprep.subr.mxu0 0.0
  %2145 = vmatpush1.msra.mxu0 0.0
  %2146 = vmatprep.subr.mxu0 0.0
  %2147 = vmatpush1.msra.mxu0 0.0
  %2148 = vmatprep.subr.mxu0 0.0
  %2149 = vmatpush1.msra.mxu0 0.0
  %2150 = vmatprep.subr.mxu0 0.0
  %2151 = vmatpush1.msra.mxu0 0.0
  %2152 = vmatprep.subr.mxu0 0.0
  %2153 = vmatpush1.msra.mxu0 0.0
  %2154 = vmatprep.subr.mxu0 0.0
  %2155 = vmatpush1.msra.mxu0 0.0
  %2156 = vmatprep.subr.mxu0 0.0
  %2157 = vmatpush1.msra.mxu0 0.0
  %2158 = vmatprep.subr.mxu0 0.0
  %2159 = vmatpush1.msra.mxu0 0.0
  %2160 = vmatprep.subr.mxu0 0.0
  %2161 = vmatpush1.msra.mxu0 0.0
  %2162 = vmatprep.subr.mxu0 0.0
  %2163 = vmatpush1.msra.mxu0 %v2132
  %2164 = vmatprep.subr.mxu0 0.0
  %2165 = vmatpush1.msra.mxu0 %v1928
  %2166 = vmatprep.subr.mxu0 0.0
  %2167 = vmatpush2.msra.mxu0 0.0
  %2168 = vmatprep.subr.mxu0 0.0
  %2169 = vmatpush2.msra.mxu0 0.0
  %2170 = vmatprep.subr.mxu0 0.0
  %2171 = vmatpush2.msra.mxu0 0.0
  %2172 = vmatprep.subr.mxu0 0.0
  %2173 = vmatpush2.msra.mxu0 0.0
  %2174 = vmatprep.subr.mxu0 0.0
  %2175 = vmatpush2.msra.mxu0 0.0
  %2176 = vmatprep.subr.mxu0 0.0
  %2177 = vmatpush2.msra.mxu0 0.0
  %2178 = vmatprep.subr.mxu0 0.0
  %2179 = vmatpush2.msra.mxu0 0.0
  %2180 = vmatprep.subr.mxu0 0.0
  %2181 = vmatpush2.msra.mxu0 0.0
  %2182 = vmatprep.subr.mxu0 0.0
  %2183 = vmatpush2.msra.mxu0 0.0
  %2184 = vmatprep.subr.mxu0 0.0
  %2185 = vmatpush2.msra.mxu0 0.0
  %2186 = vmatprep.subr.mxu0 0.0
  %2187 = vmatpush2.msra.mxu0 0.0
  %2188 = vmatprep.subr.mxu0 0.0
  %2189 = vmatpush2.msra.mxu0 0.0
  %2190 = vmatprep.subr.mxu0 0.0
  %2191 = vmatpush2.msra.mxu0 0.0
  %2192 = vmatprep.subr.mxu0 0.0
  %2193 = vmatpush2.msra.mxu0 0.0
  %2194 = vmatprep.subr.mxu0 0.0
  %2195 = vmatpush2.msra.mxu0 0.0
  %2196 = vmatprep.subr.mxu0 0.0
  %2197 = vmatpush2.msra.mxu0 0.0
  %2198 = vmatprep.mubr.f32.mxu0 0.0
  %2199 = vmatmul.mubr.f32.gmra.mxu0 %v2126
  %v2200 = vpop.f32.mrf.mxu0
  %v2201 = vadd.f32 %v2117, %v2200
  %v2202 = vpop.f32.mrf.mxu0
  %2203 = vmatprep.mubr.f32.mxu0 0.0
  %2204 = vmatmul.mubr.f32.gmra.mxu0 %v2129
  %v2205 = vpop.f32.mrf.mxu0
  %v2206 = vadd.f32 %v2122, %v2205
  %v2207 = vpop.f32.mrf.mxu0
  %2208 = vdwg.mxu0
  %s2209 = scalar_lea.vmem %s14, 32
  %v2210 = vld [vmem:[%s2209] sm:$0xff]
  %v2211 = vld [vmem:[%s2209 + $0x8] sm:$0xff]
  %v2212 = vld [vmem:[%s2209 + $0x10] sm:$0xff]
  %v2213 = vld [vmem:[%s2209 + $0x18] sm:$0xff]
  %v2215 = vsel %vm422, %v2201, 0
  %v2218 = vsel %vm422, %v2206, 0
  %2220 = vmatprep.subr.mxu0 0.0
  %2221 = vmatpush1.msra.mxu0 0.0
  %2222 = vmatprep.subr.mxu0 0.0
  %2223 = vmatpush1.msra.mxu0 0.0
  %2224 = vmatprep.subr.mxu0 0.0
  %2225 = vmatpush1.msra.mxu0 0.0
  %2226 = vmatprep.subr.mxu0 0.0
  %2227 = vmatpush1.msra.mxu0 0.0
  %2228 = vmatprep.subr.mxu0 0.0
  %2229 = vmatpush1.msra.mxu0 0.0
  %2230 = vmatprep.subr.mxu0 0.0
  %2231 = vmatpush1.msra.mxu0 0.0
  %2232 = vmatprep.subr.mxu0 0.0
  %2233 = vmatpush1.msra.mxu0 0.0
  %2234 = vmatprep.subr.mxu0 0.0
  %2235 = vmatpush1.msra.mxu0 0.0
  %2236 = vmatprep.subr.mxu0 0.0
  %2237 = vmatpush1.msra.mxu0 0.0
  %2238 = vmatprep.subr.mxu0 0.0
  %2239 = vmatpush1.msra.mxu0 0.0
  %2240 = vmatprep.subr.mxu0 0.0
  %2241 = vmatpush1.msra.mxu0 0.0
  %2242 = vmatprep.subr.mxu0 0.0
  %2243 = vmatpush1.msra.mxu0 0.0
  %2244 = vmatprep.subr.mxu0 0.0
  %2245 = vmatpush1.msra.mxu0 %v2213
  %2246 = vmatprep.subr.mxu0 0.0
  %2247 = vmatpush1.msra.mxu0 %v2212
  %2248 = vmatprep.subr.mxu0 0.0
  %2249 = vmatpush1.msra.mxu0 %v2211
  %2250 = vmatprep.subr.mxu0 0.0
  %2251 = vmatpush1.msra.mxu0 %v2210
  %2252 = vmatprep.subr.mxu0 0.0
  %2253 = vmatpush2.msra.mxu0 0.0
  %2254 = vmatprep.subr.mxu0 0.0
  %2255 = vmatpush2.msra.mxu0 0.0
  %2256 = vmatprep.subr.mxu0 0.0
  %2257 = vmatpush2.msra.mxu0 0.0
  %2258 = vmatprep.subr.mxu0 0.0
  %2259 = vmatpush2.msra.mxu0 0.0
  %2260 = vmatprep.subr.mxu0 0.0
  %2261 = vmatpush2.msra.mxu0 0.0
  %2262 = vmatprep.subr.mxu0 0.0
  %2263 = vmatpush2.msra.mxu0 0.0
  %2264 = vmatprep.subr.mxu0 0.0
  %2265 = vmatpush2.msra.mxu0 0.0
  %2266 = vmatprep.subr.mxu0 0.0
  %2267 = vmatpush2.msra.mxu0 0.0
  %2268 = vmatprep.subr.mxu0 0.0
  %2269 = vmatpush2.msra.mxu0 0.0
  %2270 = vmatprep.subr.mxu0 0.0
  %2271 = vmatpush2.msra.mxu0 0.0
  %2272 = vmatprep.subr.mxu0 0.0
  %2273 = vmatpush2.msra.mxu0 0.0
  %2274 = vmatprep.subr.mxu0 0.0
  %2275 = vmatpush2.msra.mxu0 0.0
  %2276 = vmatprep.subr.mxu0 0.0
  %2277 = vmatpush2.msra.mxu0 0.0
  %2278 = vmatprep.subr.mxu0 0.0
  %2279 = vmatpush2.msra.mxu0 0.0
  %2280 = vmatprep.subr.mxu0 0.0
  %2281 = vmatpush2.msra.mxu0 0.0
  %2282 = vmatprep.subr.mxu0 0.0
  %2283 = vmatpush2.msra.mxu0 0.0
  %2284 = vmatprep.mubr.f32.mxu0 0.0
  %2285 = vmatmul.mubr.f32.gmra.mxu0 %v2215
  %v2286 = vpop.f32.mrf.mxu0
  %v2287 = vadd.f32 0.0, %v2286
  %v2288 = vpop.f32.mrf.mxu0
  %2289 = vmatprep.mubr.f32.mxu0 0.0
  %2290 = vmatmul.mubr.f32.gmra.mxu0 %v2218
  %v2291 = vpop.f32.mrf.mxu0
  %v2292 = vadd.f32 0.0, %v2291
  %v2293 = vpop.f32.mrf.mxu0
  %2294 = vdwg.mxu0
  %v2295 = vadd.f32 %v1495, %v2287
  %v2296 = vadd.f32 %v1496, %v2292
  %s2297 = scalar_lea.vmem %s15, 1
  %v2298 = vld [vmem:[%s2297] sm:$0x1]
  %v2300 = vlaneseq
  %v2301 = vshrl.u32 %v2300, 7
  %v2302 = vsub.s32 0, %v2301
  %v2303 = vrot.slane %v2298, %v2302
  %v2305 = vadd.f32 %v2295, %v2303
  %v2306 = vadd.f32 %v2296, %v2303
  %s2307 = scalar_lea.vmem %s16, 1
  %v2308 = vld [vmem:[%s2307] sm:$0x1]
  %s2309 = scalar_lea.vmem %s17, 1
  %v2310 = vld [vmem:[%s2309] sm:$0x1]
  %v2311 = vsel %vm422, %v2305, 0.0
  %2312 = vadd.xlane.f32.xlu0 %v2311
  %v2313 = vpop.xlane.xlu0 %2312
  %v2314 = vsel %vm426, %v2306, 0.0
  %2315 = vadd.xlane.f32.xlu0 %v2314
  %v2316 = vpop.xlane.xlu0 %2315
  %v2317 = vmul.f32 %v2313, %v430
  %v2318 = vmul.f32 %v2316, %v430
  %v2319 = vsub.f32 %v2305, %v2317
  %v2320 = vsub.f32 %v2306, %v2318
  %v2321 = vmul.f32 %v2319, %v2319
  %v2322 = vmul.f32 %v2320, %v2320
  %v2323 = vsel %vm422, %v2321, 0.0
  %2324 = vadd.xlane.f32.xlu0 %v2323
  %v2325 = vpop.xlane.xlu0 %2324
  %v2326 = vsel %vm426, %v2322, 0.0
  %2327 = vadd.xlane.f32.xlu0 %v2326
  %v2328 = vpop.xlane.xlu0 %2327
  %v2329 = vmul.f32 %v2325, %v430
  %v2330 = vmul.f32 %v2328, %v430
  %v2331 = vadd.f32 %v2329, 1e-06
  %v2332 = vadd.f32 %v2330, 1e-06
  %v2333 = vrsqrt.pop %v2331
  %v2334 = vrsqrt.pop %v2332
  %v2335 = vmul.f32 %v2319, %v2333
  %v2336 = vmul.f32 %v2320, %v2334
  %v2338 = vlaneseq
  %v2339 = vshrl.u32 %v2338, 7
  %v2340 = vsub.s32 0, %v2339
  %v2341 = vrot.slane %v2308, %v2340
  %v2343 = vmul.f32 %v2335, %v2341
  %v2344 = vmul.f32 %v2336, %v2341
  %v2346 = vlaneseq
  %v2347 = vshrl.u32 %v2346, 7
  %v2348 = vsub.s32 0, %v2347
  %v2349 = vrot.slane %v2310, %v2348
  %v2351 = vadd.f32 %v2343, %v2349
  %v2352 = vadd.f32 %v2344, %v2349
  %s2353 = scalar_lea.vmem %s18, 32
  %v2354 = vld [vmem:[%s2353] sm:$0xff]
  %v2355 = vld [vmem:[%s2353 + $0x8] sm:$0xff]
  %v2356 = vld [vmem:[%s2353 + $0x10] sm:$0xff]
  %v2357 = vld [vmem:[%s2353 + $0x18] sm:$0xff]
  %s2358 = scalar_lea.vmem %s19, 1
  %v2359 = vld [vmem:[%s2358] sm:$0x1]
  %v2361 = vlaneseq
  %v2362 = vshrl.u32 %v2361, 7
  %v2363 = vsub.s32 0, %v2362
  %v2364 = vrot.slane %v2359, %v2363
  %v2367 = vsel %vm422, %v2351, 0
  %v2370 = vsel %vm422, %v2352, 0
  %2372 = vmatprep.subr.mxu0 0.0
  %2373 = vmatpush1.msra.mxu0 0.0
  %2374 = vmatprep.subr.mxu0 0.0
  %2375 = vmatpush1.msra.mxu0 0.0
  %2376 = vmatprep.subr.mxu0 0.0
  %2377 = vmatpush1.msra.mxu0 0.0
  %2378 = vmatprep.subr.mxu0 0.0
  %2379 = vmatpush1.msra.mxu0 0.0
  %2380 = vmatprep.subr.mxu0 0.0
  %2381 = vmatpush1.msra.mxu0 0.0
  %2382 = vmatprep.subr.mxu0 0.0
  %2383 = vmatpush1.msra.mxu0 0.0
  %2384 = vmatprep.subr.mxu0 0.0
  %2385 = vmatpush1.msra.mxu0 0.0
  %2386 = vmatprep.subr.mxu0 0.0
  %2387 = vmatpush1.msra.mxu0 0.0
  %2388 = vmatprep.subr.mxu0 0.0
  %2389 = vmatpush1.msra.mxu0 0.0
  %2390 = vmatprep.subr.mxu0 0.0
  %2391 = vmatpush1.msra.mxu0 0.0
  %2392 = vmatprep.subr.mxu0 0.0
  %2393 = vmatpush1.msra.mxu0 0.0
  %2394 = vmatprep.subr.mxu0 0.0
  %2395 = vmatpush1.msra.mxu0 0.0
  %2396 = vmatprep.subr.mxu0 0.0
  %2397 = vmatpush1.msra.mxu0 %v2357
  %2398 = vmatprep.subr.mxu0 0.0
  %2399 = vmatpush1.msra.mxu0 %v2356
  %2400 = vmatprep.subr.mxu0 0.0
  %2401 = vmatpush1.msra.mxu0 %v2355
  %2402 = vmatprep.subr.mxu0 0.0
  %2403 = vmatpush1.msra.mxu0 %v2354
  %2404 = vmatprep.subr.mxu0 0.0
  %2405 = vmatpush2.msra.mxu0 0.0
  %2406 = vmatprep.subr.mxu0 0.0
  %2407 = vmatpush2.msra.mxu0 0.0
  %2408 = vmatprep.subr.mxu0 0.0
  %2409 = vmatpush2.msra.mxu0 0.0
  %2410 = vmatprep.subr.mxu0 0.0
  %2411 = vmatpush2.msra.mxu0 0.0
  %2412 = vmatprep.subr.mxu0 0.0
  %2413 = vmatpush2.msra.mxu0 0.0
  %2414 = vmatprep.subr.mxu0 0.0
  %2415 = vmatpush2.msra.mxu0 0.0
  %2416 = vmatprep.subr.mxu0 0.0
  %2417 = vmatpush2.msra.mxu0 0.0
  %2418 = vmatprep.subr.mxu0 0.0
  %2419 = vmatpush2.msra.mxu0 0.0
  %2420 = vmatprep.subr.mxu0 0.0
  %2421 = vmatpush2.msra.mxu0 0.0
  %2422 = vmatprep.subr.mxu0 0.0
  %2423 = vmatpush2.msra.mxu0 0.0
  %2424 = vmatprep.subr.mxu0 0.0
  %2425 = vmatpush2.msra.mxu0 0.0
  %2426 = vmatprep.subr.mxu0 0.0
  %2427 = vmatpush2.msra.mxu0 0.0
  %2428 = vmatprep.subr.mxu0 0.0
  %2429 = vmatpush2.msra.mxu0 0.0
  %2430 = vmatprep.subr.mxu0 0.0
  %2431 = vmatpush2.msra.mxu0 0.0
  %2432 = vmatprep.subr.mxu0 0.0
  %2433 = vmatpush2.msra.mxu0 0.0
  %2434 = vmatprep.subr.mxu0 0.0
  %2435 = vmatpush2.msra.mxu0 0.0
  %2436 = vmatprep.mubr.f32.mxu0 0.0
  %2437 = vmatmul.mubr.f32.gmra.mxu0 %v2367
  %v2438 = vpop.f32.mrf.mxu0
  %v2439 = vadd.f32 %v2364, %v2438
  %v2440 = vpop.f32.mrf.mxu0
  %2441 = vmatprep.mubr.f32.mxu0 0.0
  %2442 = vmatmul.mubr.f32.gmra.mxu0 %v2370
  %v2443 = vpop.f32.mrf.mxu0
  %v2444 = vadd.f32 %v2364, %v2443
  %v2445 = vpop.f32.mrf.mxu0
  %2446 = vdwg.mxu0
  %v2447 = vmul.f32 %v2439, 0.5
  %v2448 = vmul.f32 %v2444, 0.5
  %v2449 = vmul.f32 %v2439, 0.044715
  %v2450 = vmul.f32 %v2444, 0.044715
  %v2451 = vmul.f32 %v2449, %v2439
  %v2452 = vmul.f32 %v2450, %v2444
  %v2453 = vmul.f32 %v2451, %v2439
  %v2454 = vmul.f32 %v2452, %v2444
  %v2455 = vadd.f32 %v2439, %v2453
  %v2456 = vadd.f32 %v2444, %v2454
  %v2457 = vmul.f32 %v2455, 0.7978846
  %v2458 = vmul.f32 %v2456, 0.7978846
  %v2459 = vtanh.pop %v2457
  %v2460 = vtanh.pop %v2458
  %v2461 = vadd.f32 %v2459, 1.0
  %v2462 = vadd.f32 %v2460, 1.0
  %v2463 = vmul.f32 %v2447, %v2461
  %v2464 = vmul.f32 %v2448, %v2462
  %s2465 = scalar_lea.vmem %s20, 128
  %v2466 = vld [vmem:[%s2465] sm:$0xff]
  %v2467 = vld [vmem:[%s2465 + $0x8] sm:$0xff]
  %v2468 = vld [vmem:[%s2465 + $0x10] sm:$0xff]
  %v2469 = vld [vmem:[%s2465 + $0x18] sm:$0xff]
  %v2470 = vld [vmem:[%s2465 + $0x20] sm:$0xff]
  %v2471 = vld [vmem:[%s2465 + $0x28] sm:$0xff]
  %v2472 = vld [vmem:[%s2465 + $0x30] sm:$0xff]
  %v2473 = vld [vmem:[%s2465 + $0x38] sm:$0xff]
  %v2474 = vld [vmem:[%s2465 + $0x40] sm:$0xff]
  %v2475 = vld [vmem:[%s2465 + $0x48] sm:$0xff]
  %v2476 = vld [vmem:[%s2465 + $0x50] sm:$0xff]
  %v2477 = vld [vmem:[%s2465 + $0x58] sm:$0xff]
  %v2478 = vld [vmem:[%s2465 + $0x60] sm:$0xff]
  %v2479 = vld [vmem:[%s2465 + $0x68] sm:$0xff]
  %v2480 = vld [vmem:[%s2465 + $0x70] sm:$0xff]
  %v2481 = vld [vmem:[%s2465 + $0x78] sm:$0xff]
  %2482 = vmatprep.subr.mxu0 0.0
  %2483 = vmatpush1.msra.mxu0 %v2481
  %2484 = vmatprep.subr.mxu0 0.0
  %2485 = vmatpush1.msra.mxu0 %v2480
  %2486 = vmatprep.subr.mxu0 0.0
  %2487 = vmatpush1.msra.mxu0 %v2479
  %2488 = vmatprep.subr.mxu0 0.0
  %2489 = vmatpush1.msra.mxu0 %v2478
  %2490 = vmatprep.subr.mxu0 0.0
  %2491 = vmatpush1.msra.mxu0 %v2477
  %2492 = vmatprep.subr.mxu0 0.0
  %2493 = vmatpush1.msra.mxu0 %v2476
  %2494 = vmatprep.subr.mxu0 0.0
  %2495 = vmatpush1.msra.mxu0 %v2475
  %2496 = vmatprep.subr.mxu0 0.0
  %2497 = vmatpush1.msra.mxu0 %v2474
  %2498 = vmatprep.subr.mxu0 0.0
  %2499 = vmatpush1.msra.mxu0 %v2473
  %2500 = vmatprep.subr.mxu0 0.0
  %2501 = vmatpush1.msra.mxu0 %v2472
  %2502 = vmatprep.subr.mxu0 0.0
  %2503 = vmatpush1.msra.mxu0 %v2471
  %2504 = vmatprep.subr.mxu0 0.0
  %2505 = vmatpush1.msra.mxu0 %v2470
  %2506 = vmatprep.subr.mxu0 0.0
  %2507 = vmatpush1.msra.mxu0 %v2469
  %2508 = vmatprep.subr.mxu0 0.0
  %2509 = vmatpush1.msra.mxu0 %v2468
  %2510 = vmatprep.subr.mxu0 0.0
  %2511 = vmatpush1.msra.mxu0 %v2467
  %2512 = vmatprep.subr.mxu0 0.0
  %2513 = vmatpush1.msra.mxu0 %v2466
  %2514 = vmatprep.subr.mxu0 0.0
  %2515 = vmatpush2.msra.mxu0 0.0
  %2516 = vmatprep.subr.mxu0 0.0
  %2517 = vmatpush2.msra.mxu0 0.0
  %2518 = vmatprep.subr.mxu0 0.0
  %2519 = vmatpush2.msra.mxu0 0.0
  %2520 = vmatprep.subr.mxu0 0.0
  %2521 = vmatpush2.msra.mxu0 0.0
  %2522 = vmatprep.subr.mxu0 0.0
  %2523 = vmatpush2.msra.mxu0 0.0
  %2524 = vmatprep.subr.mxu0 0.0
  %2525 = vmatpush2.msra.mxu0 0.0
  %2526 = vmatprep.subr.mxu0 0.0
  %2527 = vmatpush2.msra.mxu0 0.0
  %2528 = vmatprep.subr.mxu0 0.0
  %2529 = vmatpush2.msra.mxu0 0.0
  %2530 = vmatprep.subr.mxu0 0.0
  %2531 = vmatpush2.msra.mxu0 0.0
  %2532 = vmatprep.subr.mxu0 0.0
  %2533 = vmatpush2.msra.mxu0 0.0
  %2534 = vmatprep.subr.mxu0 0.0
  %2535 = vmatpush2.msra.mxu0 0.0
  %2536 = vmatprep.subr.mxu0 0.0
  %2537 = vmatpush2.msra.mxu0 0.0
  %2538 = vmatprep.subr.mxu0 0.0
  %2539 = vmatpush2.msra.mxu0 0.0
  %2540 = vmatprep.subr.mxu0 0.0
  %2541 = vmatpush2.msra.mxu0 0.0
  %2542 = vmatprep.subr.mxu0 0.0
  %2543 = vmatpush2.msra.mxu0 0.0
  %2544 = vmatprep.subr.mxu0 0.0
  %2545 = vmatpush2.msra.mxu0 0.0
  %2546 = vmatprep.mubr.f32.mxu0 0.0
  %2547 = vmatmul.mubr.f32.gmra.mxu0 %v2463
  %v2548 = vpop.f32.mrf.mxu0
  %v2549 = vadd.f32 0.0, %v2548
  %v2550 = vpop.f32.mrf.mxu0
  %2551 = vmatprep.mubr.f32.mxu0 0.0
  %2552 = vmatmul.mubr.f32.gmra.mxu0 %v2464
  %v2553 = vpop.f32.mrf.mxu0
  %v2554 = vadd.f32 0.0, %v2553
  %v2555 = vpop.f32.mrf.mxu0
  %2556 = vdwg.mxu0
  %v2557 = vadd.f32 %v2305, %v2549
  %v2558 = vadd.f32 %v2306, %v2554
  %s2559 = scalar_lea.vmem %s21, 1
  %v2560 = vld [vmem:[%s2559] sm:$0x1]
  %v2562 = vlaneseq
  %v2563 = vshrl.u32 %v2562, 7
  %v2564 = vsub.s32 0, %v2563
  %v2565 = vrot.slane %v2560, %v2564
  %v2567 = vadd.f32 %v2557, %v2565
  %v2568 = vadd.f32 %v2558, %v2565
  %v2569 = vld [vmem:[%s22] sm:$0x1]
  %v2570 = vld [vmem:[%s23] sm:$0x1]
  %v2571 = vsel %vm422, %v2567, 0.0
  %2572 = vadd.xlane.f32.xlu0 %v2571
  %v2573 = vpop.xlane.xlu0 %2572
  %v2574 = vsel %vm426, %v2568, 0.0
  %2575 = vadd.xlane.f32.xlu0 %v2574
  %v2576 = vpop.xlane.xlu0 %2575
  %v2577 = vmul.f32 %v2573, %v430
  %v2578 = vmul.f32 %v2576, %v430
  %v2579 = vsub.f32 %v2567, %v2577
  %v2580 = vsub.f32 %v2568, %v2578
  %v2581 = vmul.f32 %v2579, %v2579
  %v2582 = vmul.f32 %v2580, %v2580
  %v2583 = vsel %vm422, %v2581, 0.0
  %2584 = vadd.xlane.f32.xlu0 %v2583
  %v2585 = vpop.xlane.xlu0 %2584
  %v2586 = vsel %vm426, %v2582, 0.0
  %2587 = vadd.xlane.f32.xlu0 %v2586
  %v2588 = vpop.xlane.xlu0 %2587
  %v2589 = vmul.f32 %v2585, %v430
  %v2590 = vmul.f32 %v2588, %v430
  %v2591 = vadd.f32 %v2589, 1e-06
  %v2592 = vadd.f32 %v2590, 1e-06
  %v2593 = vrsqrt.pop %v2591
  %v2594 = vrsqrt.pop %v2592
  %v2595 = vmul.f32 %v2579, %v2593
  %v2596 = vmul.f32 %v2580, %v2594
  %v2598 = vlaneseq
  %v2599 = vshrl.u32 %v2598, 7
  %v2600 = vsub.s32 0, %v2599
  %v2601 = vrot.slane %v2569, %v2600
  %v2603 = vmul.f32 %v2595, %v2601
  %v2604 = vmul.f32 %v2596, %v2601
  %v2606 = vlaneseq
  %v2607 = vshrl.u32 %v2606, 7
  %v2608 = vsub.s32 0, %v2607
  %v2609 = vrot.slane %v2570, %v2608
  %v2611 = vadd.f32 %v2603, %v2609
  %v2612 = vadd.f32 %v2604, %v2609
  %v2613 = vld [vmem:[%s5] sm:$0xff]
  %v2615 = vsel %vm831, %v2613, 0
  %v2618 = vsel %vm982, %v2612, 0
  %2620 = vmatprep.subr.mxu0 0.0
  %2621 = vmatpush1.msra.mxu0 0.0
  %2622 = vmatprep.subr.mxu0 0.0
  %2623 = vmatpush1.msra.mxu0 0.0
  %2624 = vmatprep.subr.mxu0 0.0
  %2625 = vmatpush1.msra.mxu0 0.0
  %2626 = vmatprep.subr.mxu0 0.0
  %2627 = vmatpush1.msra.mxu0 0.0
  %2628 = vmatprep.subr.mxu0 0.0
  %2629 = vmatpush1.msra.mxu0 0.0
  %2630 = vmatprep.subr.mxu0 0.0
  %2631 = vmatpush1.msra.mxu0 0.0
  %2632 = vmatprep.subr.mxu0 0.0
  %2633 = vmatpush1.msra.mxu0 0.0
  %2634 = vmatprep.subr.mxu0 0.0
  %2635 = vmatpush1.msra.mxu0 0.0
  %2636 = vmatprep.subr.mxu0 0.0
  %2637 = vmatpush1.msra.mxu0 0.0
  %2638 = vmatprep.subr.mxu0 0.0
  %2639 = vmatpush1.msra.mxu0 0.0
  %2640 = vmatprep.subr.mxu0 0.0
  %2641 = vmatpush1.msra.mxu0 0.0
  %2642 = vmatprep.subr.mxu0 0.0
  %2643 = vmatpush1.msra.mxu0 0.0
  %2644 = vmatprep.subr.mxu0 0.0
  %2645 = vmatpush1.msra.mxu0 0.0
  %2646 = vmatprep.subr.mxu0 0.0
  %2647 = vmatpush1.msra.mxu0 0.0
  %2648 = vmatprep.subr.mxu0 0.0
  %2649 = vmatpush1.msra.mxu0 %v2618
  %2650 = vmatprep.subr.mxu0 0.0
  %2651 = vmatpush1.msra.mxu0 %v2611
  %2652 = vmatprep.subr.mxu0 0.0
  %2653 = vmatpush2.msra.mxu0 0.0
  %2654 = vmatprep.subr.mxu0 0.0
  %2655 = vmatpush2.msra.mxu0 0.0
  %2656 = vmatprep.subr.mxu0 0.0
  %2657 = vmatpush2.msra.mxu0 0.0
  %2658 = vmatprep.subr.mxu0 0.0
  %2659 = vmatpush2.msra.mxu0 0.0
  %2660 = vmatprep.subr.mxu0 0.0
  %2661 = vmatpush2.msra.mxu0 0.0
  %2662 = vmatprep.subr.mxu0 0.0
  %2663 = vmatpush2.msra.mxu0 0.0
  %2664 = vmatprep.subr.mxu0 0.0
  %2665 = vmatpush2.msra.mxu0 0.0
  %2666 = vmatprep.subr.mxu0 0.0
  %2667 = vmatpush2.msra.mxu0 0.0
  %2668 = vmatprep.subr.mxu0 0.0
  %2669 = vmatpush2.msra.mxu0 0.0
  %2670 = vmatprep.subr.mxu0 0.0
  %2671 = vmatpush2.msra.mxu0 0.0
  %2672 = vmatprep.subr.mxu0 0.0
  %2673 = vmatpush2.msra.mxu0 0.0
  %2674 = vmatprep.subr.mxu0 0.0
  %2675 = vmatpush2.msra.mxu0 0.0
  %2676 = vmatprep.subr.mxu0 0.0
  %2677 = vmatpush2.msra.mxu0 0.0
  %2678 = vmatprep.subr.mxu0 0.0
  %2679 = vmatpush2.msra.mxu0 0.0
  %2680 = vmatprep.subr.mxu0 0.0
  %2681 = vmatpush2.msra.mxu0 0.0
  %2682 = vmatprep.subr.mxu0 0.0
  %2683 = vmatpush2.msra.mxu0 0.0
  %2684 = vmatprep.mubr.f32.mxu0 0.0
  %2685 = vmatmul.mubr.f32.gmra.mxu0 %v2615
  %v2686 = vpop.f32.mrf.mxu0
  %v2687 = vadd.f32 0.0, %v2686
  %v2688 = vpop.f32.mrf.mxu0
  %2689 = vdwg.mxu0
  %v2690 = vld [vmem:[%s24] sm:$0xff]
  %v2691 = vld [vmem:[%s24 + $0x8] sm:$0xff]
  %v2692 = vld [vmem:[%s24 + $0x10] sm:$0xff]
  %v2693 = vld [vmem:[%s24 + $0x18] sm:$0xff]
  %v2694 = vld [vmem:[%s25] sm:$0x1]
  %v2696 = vlaneseq
  %v2697 = vshrl.u32 %v2696, 7
  %v2698 = vsub.s32 0, %v2697
  %v2699 = vrot.slane %v2694, %v2698
  %v2702 = vsel %vm422, %v2687, 0
  %2704 = vmatprep.subr.mxu0 0.0
  %2705 = vmatpush1.msra.mxu0 0.0
  %2706 = vmatprep.subr.mxu0 0.0
  %2707 = vmatpush1.msra.mxu0 0.0
  %2708 = vmatprep.subr.mxu0 0.0
  %2709 = vmatpush1.msra.mxu0 0.0
  %2710 = vmatprep.subr.mxu0 0.0
  %2711 = vmatpush1.msra.mxu0 0.0
  %2712 = vmatprep.subr.mxu0 0.0
  %2713 = vmatpush1.msra.mxu0 0.0
  %2714 = vmatprep.subr.mxu0 0.0
  %2715 = vmatpush1.msra.mxu0 0.0
  %2716 = vmatprep.subr.mxu0 0.0
  %2717 = vmatpush1.msra.mxu0 0.0
  %2718 = vmatprep.subr.mxu0 0.0
  %2719 = vmatpush1.msra.mxu0 0.0
  %2720 = vmatprep.subr.mxu0 0.0
  %2721 = vmatpush1.msra.mxu0 0.0
  %2722 = vmatprep.subr.mxu0 0.0
  %2723 = vmatpush1.msra.mxu0 0.0
  %2724 = vmatprep.subr.mxu0 0.0
  %2725 = vmatpush1.msra.mxu0 0.0
  %2726 = vmatprep.subr.mxu0 0.0
  %2727 = vmatpush1.msra.mxu0 0.0
  %2728 = vmatprep.subr.mxu0 0.0
  %2729 = vmatpush1.msra.mxu0 %v2693
  %2730 = vmatprep.subr.mxu0 0.0
  %2731 = vmatpush1.msra.mxu0 %v2692
  %2732 = vmatprep.subr.mxu0 0.0
  %2733 = vmatpush1.msra.mxu0 %v2691
  %2734 = vmatprep.subr.mxu0 0.0
  %2735 = vmatpush1.msra.mxu0 %v2690
  %2736 = vmatprep.subr.mxu0 0.0
  %2737 = vmatpush2.msra.mxu0 0.0
  %2738 = vmatprep.subr.mxu0 0.0
  %2739 = vmatpush2.msra.mxu0 0.0
  %2740 = vmatprep.subr.mxu0 0.0
  %2741 = vmatpush2.msra.mxu0 0.0
  %2742 = vmatprep.subr.mxu0 0.0
  %2743 = vmatpush2.msra.mxu0 0.0
  %2744 = vmatprep.subr.mxu0 0.0
  %2745 = vmatpush2.msra.mxu0 0.0
  %2746 = vmatprep.subr.mxu0 0.0
  %2747 = vmatpush2.msra.mxu0 0.0
  %2748 = vmatprep.subr.mxu0 0.0
  %2749 = vmatpush2.msra.mxu0 0.0
  %2750 = vmatprep.subr.mxu0 0.0
  %2751 = vmatpush2.msra.mxu0 0.0
  %2752 = vmatprep.subr.mxu0 0.0
  %2753 = vmatpush2.msra.mxu0 0.0
  %2754 = vmatprep.subr.mxu0 0.0
  %2755 = vmatpush2.msra.mxu0 0.0
  %2756 = vmatprep.subr.mxu0 0.0
  %2757 = vmatpush2.msra.mxu0 0.0
  %2758 = vmatprep.subr.mxu0 0.0
  %2759 = vmatpush2.msra.mxu0 0.0
  %2760 = vmatprep.subr.mxu0 0.0
  %2761 = vmatpush2.msra.mxu0 0.0
  %2762 = vmatprep.subr.mxu0 0.0
  %2763 = vmatpush2.msra.mxu0 0.0
  %2764 = vmatprep.subr.mxu0 0.0
  %2765 = vmatpush2.msra.mxu0 0.0
  %2766 = vmatprep.subr.mxu0 0.0
  %2767 = vmatpush2.msra.mxu0 0.0
  %2768 = vmatprep.mubr.f32.mxu0 0.0
  %2769 = vmatmul.mubr.f32.gmra.mxu0 %v2702
  %v2770 = vpop.f32.mrf.mxu0
  %v2771 = vadd.f32 %v2699, %v2770
  %v2772 = vpop.f32.mrf.mxu0
  %2773 = vdwg.mxu0
  %2774 = vst [vmem:[%s26] sm:$0xff] %v2771
  // Predicated region
  $region106: #{vit_forward.1} parent=0 // pred_check
    _
  $region107: #{vit_forward.1} parent=0 // pred_check_branch
    %2776 = sbr.rel (0) target = $region109
  $region108: #{vit_forward.1} parent=0 // pred_region
    _
  $region109: #{vit_forward.1} parent=0 // pred_fallthru
    _
  // Predicated region
  $region110: #{vit_forward.1} parent=0 // pred_check
    _
  $region111: #{vit_forward.1} parent=0 // pred_check_branch
    %2778 = sbr.rel (0) target = $region113
  $region112: #{vit_forward.1} parent=0 // pred_region
    _
  $region113: #{vit_forward.1} parent=0 // pred_fallthru
    _

</llo_original>
